<compile_context>
chip_gen: v7x
topology: tpu7x:2x2x1
jax: 0.10.0
libtpu: 0.0.40
codegen_flags: <defaults>
</compile_context>

<pallas_src>
import jax
import jax.numpy as jnp
from jax import lax
from jax.experimental import pallas as pl
from jax.experimental.pallas import tpu as pltpu


def _mf_single_kernel(x_ref, w1_ref, w2_ref, p_ref, o_ref, eca_pad_ref):
    # x_ref:       (1, H, W, C)        VMEM  one batch element, channels-last (C == 3)
    # w1_ref:      (9*C, C1)           VMEM  bf16, bottleneck2 weight, im2col (tap-major)
    # w2_ref:      (9, C1, C2)         VMEM  bf16, final stride-2 conv weight, per tap
    # p_ref:       (C + 1 + 3,)        SMEM  [mask_w(C), mask_b, eca_w(3)]
    # o_ref:       (1, H//2, W//2, C2) VMEM
    # eca_pad_ref: (H+2, W+2, C1)      VMEM scratch, zero-padded ECA-gated feature map
    H, W, C = x_ref.shape[1], x_ref.shape[2], x_ref.shape[3]
    H2, W2, C2 = o_ref.shape[1], o_ref.shape[2], o_ref.shape[3]
    C1 = w2_ref.shape[1]
    HW = H * W

    x = x_ref[0].astype(jnp.float32)                      # (H, W, C)

    # ---------- mask_map_r (1x1 conv + bias) fused with the gating (VPU) ----------
    # m = mask_map_r(0.5*x);  gated = m*(0.5*x) + x = x * (1 + 0.5*m)
    s = p_ref[0] * x[:, :, 0:1]
    for ci in range(1, C):
        s = s + p_ref[ci] * x[:, :, ci:ci + 1]            # (H, W, 1) = x . w_mask
    m = 0.5 * s + p_ref[C]
    gated = x * (1.0 + 0.5 * m)                           # (H, W, C)

    def pad_hw(a):
        # zero-pad by 1 on both spatial dims; channels stay on the lane axis.
        h, w, c = a.shape
        zc = jnp.zeros((h, 1, c), a.dtype)
        a = jnp.concatenate([zc, a, zc], axis=1)
        zr = jnp.zeros((1, w + 2, c), a.dtype)
        return jnp.concatenate([zr, a, zr], axis=0)       # (h+2, w+2, c)

    # ---------- bottleneck2: 3x3 conv C -> C1, stride 1, pad 1 (one bf16 MXU matmul) ----------
    gp = pad_hw(gated)                                    # (H+2, W+2, C)
    cols = []
    for dh in range(3):
        for dw in range(3):
            cols.append(
                lax.slice(gp, (dh, dw, 0), (dh + H, dw + W, C)).reshape(HW, C))
    patches1 = jnp.concatenate(cols, axis=1)              # (HW, 9*C), K = 27
    rgb = jnp.dot(patches1.astype(jnp.bfloat16), w1_ref[...],
                  preferred_element_type=jnp.float32)     # (HW, C1) f32

    # ---------- ECA channel attention (gate applied twice, as in ECA.forward) ----------
    e0, e1, e2 = p_ref[C + 1], p_ref[C + 2], p_ref[C + 3]
    avg = jnp.mean(rgb, axis=0, keepdims=True)            # (1, C1)   AdaptiveAvgPool2d(1)
    zp = jnp.zeros((1, 1), jnp.float32)
    ap = jnp.concatenate([zp, avg, zp], axis=1)           # (1, C1 + 2)
    z = e0 * ap[:, 0:C1] + e1 * ap[:, 1:C1 + 1] + e2 * ap[:, 2:C1 + 2]
    y = jax.nn.sigmoid(z)                                 # (1, C1)
    eca = rgb * (y * y)                                   # x * y * y

    # ---------- final conv: 3x3, C1 -> C2, stride 2, pad 1 ----------
    # Stage the zero-padded ECA output in a VMEM scratch, then read each of the nine
    # 3x3 taps directly at stride-2 spatial positions (strided ref loads) and
    # accumulate nine (H2*W2, C1) @ (C1, C2) bf16 MXU matmuls.  No O(HW^2) selection,
    # no lane-misaligned 432-wide concat.
    eca_pad_ref[...] = pad_hw(eca.reshape(H, W, C1))      # (H+2, W+2, C1)

    acc = jnp.zeros((H2 * W2, C2), jnp.float32)
    for dh in range(3):
        for dw in range(3):
            tap = eca_pad_ref[pl.ds(dh, H2, 2), pl.ds(dw, W2, 2), :]   # (H2, W2, C1)
            acc = acc + jnp.dot(
                tap.reshape(H2 * W2, C1).astype(jnp.bfloat16),
                w2_ref[dh * 3 + dw],                       # (C1, C2), static tap index
                preferred_element_type=jnp.float32)

    o_ref[0] = acc.reshape(H2, W2, C2).astype(o_ref.dtype)


def mf_single_pallas(x_nchw, w_mask, b_mask, w_b2, w_eca, w_conv):
    """Fused MF_single forward.

    x_nchw: (B, 3, H, W) f32   (channels must be 3: mask.repeat(1,3,1,1))
    w_mask: (1, 3, 1, 1), b_mask: (1,)  mask_map_r  (Conv2d 3->1, 1x1, bias)
    w_b2:   (48, 3, 3, 3)               bottleneck2 (Conv2d 3->48, 3x3, pad 1)
    w_eca:  (1, 1, 3)                   eca.conv    (Conv1d 1->1, k=3, pad 1)
    w_conv: (16, 48, 3, 3)              conv        (Conv2d 48->16, 3x3, s=2, pad 1)
    returns (B, 16, H//2, W//2)
    """
    B, C, H, W = x_nchw.shape
    assert C == 3, "MF_single's mask repeat(1,3,1,1) requires 3 input channels"
    # TODO(synk): odd H/W (PyTorch would produce ceil(H/2)) not supported.
    assert H % 2 == 0 and W % 2 == 0
    C1 = w_b2.shape[0]     # 48
    C2 = w_conv.shape[0]   # 16
    H2, W2 = H // 2, W // 2

    # NCHW -> NHWC once (would be dropped entirely in an NHWC end-to-end model).
    x_nhwc = jnp.transpose(x_nchw, (0, 2, 3, 1))

    # Conv1 weight in im2col layout (row = (kh*3+kw)*Cin + cin, col = cout), bf16.
    w1m = jnp.transpose(w_b2, (2, 3, 1, 0)).reshape(9 * C, C1).astype(jnp.bfloat16)
    # Conv2 weight split per tap: (9, C1, C2), tap index t = kh*3 + kw, bf16.
    w2m = jnp.transpose(w_conv, (2, 3, 1, 0)).reshape(9, C1, C2).astype(jnp.bfloat16)

    # Small scalar params go to SMEM: [mask_w (C), mask_b, eca_w (3)].
    scalars = jnp.concatenate(
        [w_mask.reshape(-1), b_mask.reshape(-1), w_eca.reshape(-1)]
    ).astype(jnp.float32)

    # Generation-aware scoped-VMEM limit (v7x has 64 MiB physical, v5e/v6e 128 MiB).
    try:
        vmem_limit = min((3 * int(pltpu.get_tpu_info().vmem_capacity_bytes)) // 4,
                         96 * 1024 * 1024)
    except Exception:
        vmem_limit = 48 * 1024 * 1024

    out_nhwc = pl.pallas_call(
        _mf_single_kernel,
        out_shape=jax.ShapeDtypeStruct((B, H2, W2, C2), x_nhwc.dtype),
        grid_spec=pltpu.PrefetchScalarGridSpec(
            num_scalar_prefetch=0,
            grid=(B,),
            in_specs=[
                pl.BlockSpec((1, H, W, C), lambda b: (b, 0, 0, 0)),
                pl.BlockSpec((9 * C, C1), lambda b: (0, 0)),
                pl.BlockSpec((9, C1, C2), lambda b: (0, 0, 0)),
                pl.BlockSpec(memory_space=pltpu.SMEM),
            ],
            out_specs=pl.BlockSpec((1, H2, W2, C2), lambda b: (b, 0, 0, 0)),
            scratch_shapes=[pltpu.VMEM((H + 2, W + 2, C1), jnp.float32)],
        ),
        compiler_params=pltpu.CompilerParams(
            # Batch elements are independent -> both v7x TensorCores get work (B >= 2).
            dimension_semantics=("parallel",),
            vmem_limit_bytes=vmem_limit,
        ),
    )(x_nhwc, w1m, w2m, scalars)

    return jnp.transpose(out_nhwc, (0, 3, 1, 2))          # NHWC -> NCHW


def mf_single_reference(x, w_mask, b_mask, w_b2, w_eca, w_conv):
    """Pure-JAX reference matching the PyTorch module (NCHW, f32 HIGHEST precision)."""
    hp = lax.Precision.HIGHEST
    x_left = 0.5 * x
    m = jnp.einsum("bchw,c->bhw", x_left, w_mask.reshape(-1), precision=hp) + b_mask[0]
    gated = m[:, None, :, :] * x_left + x                  # mask.repeat(1,3,1,1)*x_left + x
    out_rgb = lax.conv_general_dilated(
        gated, w_b2, (1, 1), [(1, 1), (1, 1)],
        dimension_numbers=("NCHW", "OIHW", "NCHW"), precision=hp)
    # ECA
    y = jnp.mean(out_rgb, axis=(2, 3))                     # (B, 48)
    yp = jnp.pad(y, ((0, 0), (1, 1)))
    e = w_eca.reshape(-1)
    z = e[0] * yp[:, :-2] + e[1] * yp[:, 1:-1] + e[2] * yp[:, 2:]
    sig = jax.nn.sigmoid(z)[:, :, None, None]
    out_eca = out_rgb * sig * sig                          # gate applied twice in ECA.forward
    return lax.conv_general_dilated(
        out_eca, w_conv, (2, 2), [(1, 1), (1, 1)],
        dimension_numbers=("NCHW", "OIHW", "NCHW"), precision=hp)


if __name__ == "__main__":
    B, C, H, W = 2, 3, 16, 16
    key = jax.random.PRNGKey(0)
    kx, k1, k2, k3, k4, k5 = jax.random.split(key, 6)
    x = jax.random.normal(kx, (B, C, H, W), jnp.float32)
    # Deterministic synthetic parameters (module __init__ shapes, no checkpoint).
    w_mask = jax.random.normal(k1, (1, C, 1, 1), jnp.float32) * 0.1   # mask_map_r
    b_mask = jax.random.normal(k2, (1,), jnp.float32) * 0.1
    w_b2 = jax.random.normal(k3, (48, C, 3, 3), jnp.float32) * 0.1    # bottleneck2
    w_eca = jax.random.normal(k4, (1, 1, 3), jnp.float32) * 0.5       # eca.conv
    w_conv = jax.random.normal(k5, (16, 48, 3, 3), jnp.float32) * 0.1 # conv (stride 2)

    out = jax.block_until_ready(mf_single_pallas(x, w_mask, b_mask, w_b2, w_eca, w_conv))
    ref = jax.block_until_ready(mf_single_reference(x, w_mask, b_mask, w_b2, w_eca, w_conv))

    assert out.shape == (B, 16, H // 2, W // 2), out.shape
    # Kernel uses bf16 MXU operands with f32 accumulation vs. an f32 HIGHEST-precision
    # reference: expected error is O(1e-3..1e-2); a tap/stride/layout bug would be O(0.1-1).
    err = float(jnp.max(jnp.abs(out - ref)))
    assert jnp.allclose(out, ref, atol=5e-2, rtol=5e-2), err
    print("KERNEL_OK")
</pallas_src>

<mosaic_0001>
module attributes {stable_mosaic.version = 11 : i64} {
  func.func @_mf_single_kernel(%arg0: i32, %arg1: memref<1x16x16x3xf32, #tpu.memory_space<vmem>>, %arg2: memref<27x48xbf16, #tpu.memory_space<vmem>>, %arg3: memref<9x48x16xbf16, #tpu.memory_space<vmem>>, %arg4: memref<7xf32, #tpu.memory_space<smem>>, %arg5: memref<1x8x8x16xf32, #tpu.memory_space<vmem>>, %arg6: memref<18x18x48xf32, #tpu.memory_space<vmem>>) attributes {dimension_semantics = [#tpu.dimension_semantics<parallel>], iteration_bounds = array<i64: 2>, scalar_prefetch = 0 : i64, scratch_operands = 1 : i64, tpu.core_type = #tpu.core_type<tc>, window_params = [{transform_indices = @transform_0, window_bounds = array<i64: 1, 16, 16, 3>}, {pipeline_mode = #tpu.pipeline_mode<synchronous>, transform_indices = @transform_1, window_bounds = array<i64: 27, 48>}, {pipeline_mode = #tpu.pipeline_mode<synchronous>, transform_indices = @transform_2, window_bounds = array<i64: 9, 48, 16>}, {transform_indices = @transform_3, window_bounds = array<i64: 7>}, {transform_indices = @transform_4, window_bounds = array<i64: 1, 8, 8, 16>}]} {
    %c0 = arith.constant 0 : index
    %c0_0 = arith.constant 0 : index
    %c0_1 = arith.constant 0 : index
    %c0_2 = arith.constant 0 : index
    %0 = vector.load %arg1[%c0, %c0_0, %c0_1, %c0_2] : memref<1x16x16x3xf32, #tpu.memory_space<vmem>>, vector<1x16x16x3xf32>
    %1 = vector.shape_cast %0 : vector<1x16x16x3xf32> to vector<16x16x3xf32>
    %c0_3 = arith.constant 0 : index
    %2 = memref.load %arg4[%c0_3] : memref<7xf32, #tpu.memory_space<smem>>
    %3 = vector.extract_strided_slice %1 {offsets = [0, 0, 0], sizes = [16, 16, 1], strides = [1, 1, 1]} : vector<16x16x3xf32> to vector<16x16x1xf32>
    %4 = vector.broadcast %2 : f32 to vector<16x16x1xf32>
    %5 = arith.mulf %4, %3 : vector<16x16x1xf32>
    %c1 = arith.constant 1 : index
    %6 = memref.load %arg4[%c1] : memref<7xf32, #tpu.memory_space<smem>>
    %7 = vector.extract_strided_slice %1 {offsets = [0, 0, 1], sizes = [16, 16, 1], strides = [1, 1, 1]} : vector<16x16x3xf32> to vector<16x16x1xf32>
    %8 = vector.broadcast %6 : f32 to vector<16x16x1xf32>
    %9 = arith.mulf %8, %7 : vector<16x16x1xf32>
    %10 = arith.addf %5, %9 : vector<16x16x1xf32>
    %c2 = arith.constant 2 : index
    %11 = memref.load %arg4[%c2] : memref<7xf32, #tpu.memory_space<smem>>
    %12 = vector.extract_strided_slice %1 {offsets = [0, 0, 2], sizes = [16, 16, 1], strides = [1, 1, 1]} : vector<16x16x3xf32> to vector<16x16x1xf32>
    %13 = vector.broadcast %11 : f32 to vector<16x16x1xf32>
    %14 = arith.mulf %13, %12 : vector<16x16x1xf32>
    %15 = arith.addf %10, %14 : vector<16x16x1xf32>
    %cst = arith.constant 5.000000e-01 : f32
    %16 = vector.broadcast %cst : f32 to vector<16x16x1xf32>
    %17 = arith.mulf %16, %15 : vector<16x16x1xf32>
    %c3 = arith.constant 3 : index
    %18 = memref.load %arg4[%c3] : memref<7xf32, #tpu.memory_space<smem>>
    %19 = vector.broadcast %18 : f32 to vector<16x16x1xf32>
    %20 = arith.addf %17, %19 : vector<16x16x1xf32>
    %cst_4 = arith.constant 5.000000e-01 : f32
    %21 = vector.broadcast %cst_4 : f32 to vector<16x16x1xf32>
    %22 = arith.mulf %21, %20 : vector<16x16x1xf32>
    %cst_5 = arith.constant 1.000000e+00 : f32
    %23 = vector.broadcast %cst_5 : f32 to vector<16x16x1xf32>
    %24 = arith.addf %23, %22 : vector<16x16x1xf32>
    %25 = vector.broadcast %24 : vector<16x16x1xf32> to vector<16x16x3xf32>
    %26 = arith.mulf %1, %25 : vector<16x16x3xf32>
    %cst_6 = arith.constant 0.000000e+00 : f32
    %27 = vector.broadcast %cst_6 : f32 to vector<16x1x3xf32>
    %28 = tpu.concatenate %27, %26, %27 in 1 : vector<16x1x3xf32>, vector<16x16x3xf32>, vector<16x1x3xf32> -> vector<16x18x3xf32>
    %cst_7 = arith.constant 0.000000e+00 : f32
    %29 = vector.broadcast %cst_7 : f32 to vector<1x18x3xf32>
    %30 = tpu.concatenate %29, %28, %29 in 0 : vector<1x18x3xf32>, vector<16x18x3xf32>, vector<1x18x3xf32> -> vector<18x18x3xf32>
    %31 = vector.extract_strided_slice %30 {offsets = [0, 0, 0], sizes = [16, 16, 3], strides = [1, 1, 1]} : vector<18x18x3xf32> to vector<16x16x3xf32>
    %32 = vector.shape_cast %31 : vector<16x16x3xf32> to vector<256x3xf32>
    %33 = vector.extract_strided_slice %30 {offsets = [0, 1, 0], sizes = [16, 16, 3], strides = [1, 1, 1]} : vector<18x18x3xf32> to vector<16x16x3xf32>
    %34 = vector.shape_cast %33 : vector<16x16x3xf32> to vector<256x3xf32>
    %35 = vector.extract_strided_slice %30 {offsets = [0, 2, 0], sizes = [16, 16, 3], strides = [1, 1, 1]} : vector<18x18x3xf32> to vector<16x16x3xf32>
    %36 = vector.shape_cast %35 : vector<16x16x3xf32> to vector<256x3xf32>
    %37 = vector.extract_strided_slice %30 {offsets = [1, 0, 0], sizes = [16, 16, 3], strides = [1, 1, 1]} : vector<18x18x3xf32> to vector<16x16x3xf32>
    %38 = vector.shape_cast %37 : vector<16x16x3xf32> to vector<256x3xf32>
    %39 = vector.extract_strided_slice %30 {offsets = [1, 1, 0], sizes = [16, 16, 3], strides = [1, 1, 1]} : vector<18x18x3xf32> to vector<16x16x3xf32>
    %40 = vector.shape_cast %39 : vector<16x16x3xf32> to vector<256x3xf32>
    %41 = vector.extract_strided_slice %30 {offsets = [1, 2, 0], sizes = [16, 16, 3], strides = [1, 1, 1]} : vector<18x18x3xf32> to vector<16x16x3xf32>
    %42 = vector.shape_cast %41 : vector<16x16x3xf32> to vector<256x3xf32>
    %43 = vector.extract_strided_slice %30 {offsets = [2, 0, 0], sizes = [16, 16, 3], strides = [1, 1, 1]} : vector<18x18x3xf32> to vector<16x16x3xf32>
    %44 = vector.shape_cast %43 : vector<16x16x3xf32> to vector<256x3xf32>
    %45 = vector.extract_strided_slice %30 {offsets = [2, 1, 0], sizes = [16, 16, 3], strides = [1, 1, 1]} : vector<18x18x3xf32> to vector<16x16x3xf32>
    %46 = vector.shape_cast %45 : vector<16x16x3xf32> to vector<256x3xf32>
    %47 = vector.extract_strided_slice %30 {offsets = [2, 2, 0], sizes = [16, 16, 3], strides = [1, 1, 1]} : vector<18x18x3xf32> to vector<16x16x3xf32>
    %48 = vector.shape_cast %47 : vector<16x16x3xf32> to vector<256x3xf32>
    %49 = tpu.concatenate %32, %34, %36, %38, %40, %42, %44, %46, %48 in 1 : vector<256x3xf32>, vector<256x3xf32>, vector<256x3xf32>, vector<256x3xf32>, vector<256x3xf32>, vector<256x3xf32>, vector<256x3xf32>, vector<256x3xf32>, vector<256x3xf32> -> vector<256x27xf32>
    %50 = arith.truncf %49 : vector<256x27xf32> to vector<256x27xbf16>
    %c0_8 = arith.constant 0 : index
    %c0_9 = arith.constant 0 : index
    %51 = vector.load %arg2[%c0_8, %c0_9] : memref<27x48xbf16, #tpu.memory_space<vmem>>, vector<27x48xbf16>
    %cst_10 = arith.constant dense<0.000000e+00> : vector<256x48xf32>
    %52 = tpu.matmul %50, %51, %cst_10 {dimension_numbers = #tpu.dot_dimension_numbers<[1], [0], [0], [1], [0, 0, 1, 1], [], []>} : vector<256x27xbf16>, vector<27x48xbf16>, vector<256x48xf32> -> vector<256x48xf32>
    %c4 = arith.constant 4 : index
    %53 = memref.load %arg4[%c4] : memref<7xf32, #tpu.memory_space<smem>>
    %c5 = arith.constant 5 : index
    %54 = memref.load %arg4[%c5] : memref<7xf32, #tpu.memory_space<smem>>
    %c6 = arith.constant 6 : index
    %55 = memref.load %arg4[%c6] : memref<7xf32, #tpu.memory_space<smem>>
    %cst_11 = arith.constant dense<0.000000e+00> : vector<48xf32>
    %56 = vector.multi_reduction <add>, %52, %cst_11 [0] : vector<256x48xf32> to vector<48xf32>
    %57 = vector.shape_cast %56 : vector<48xf32> to vector<1x48xf32>
    %cst_12 = arith.constant 2.560000e+02 : f32
    %58 = vector.broadcast %cst_12 : f32 to vector<1x48xf32>
    %59 = arith.divf %57, %58 : vector<1x48xf32>
    %cst_13 = arith.constant 0.000000e+00 : f32
    %60 = vector.broadcast %cst_13 : f32 to vector<1x1xf32>
    %61 = tpu.concatenate %60, %59, %60 in 1 : vector<1x1xf32>, vector<1x48xf32>, vector<1x1xf32> -> vector<1x50xf32>
    %62 = vector.extract_strided_slice %61 {offsets = [0, 0], sizes = [1, 48], strides = [1, 1]} : vector<1x50xf32> to vector<1x48xf32>
    %63 = vector.broadcast %53 : f32 to vector<1x48xf32>
    %64 = arith.mulf %63, %62 : vector<1x48xf32>
    %65 = vector.extract_strided_slice %61 {offsets = [0, 1], sizes = [1, 48], strides = [1, 1]} : vector<1x50xf32> to vector<1x48xf32>
    %66 = vector.broadcast %54 : f32 to vector<1x48xf32>
    %67 = arith.mulf %66, %65 : vector<1x48xf32>
    %68 = arith.addf %64, %67 : vector<1x48xf32>
    %69 = vector.extract_strided_slice %61 {offsets = [0, 2], sizes = [1, 48], strides = [1, 1]} : vector<1x50xf32> to vector<1x48xf32>
    %70 = vector.broadcast %55 : f32 to vector<1x48xf32>
    %71 = arith.mulf %70, %69 : vector<1x48xf32>
    %72 = arith.addf %68, %71 : vector<1x48xf32>
    %73 = arith.negf %72 : vector<1x48xf32>
    %74 = math.exp %73 : vector<1x48xf32>
    %cst_14 = arith.constant 1.000000e+00 : f32
    %75 = vector.broadcast %cst_14 : f32 to vector<1x48xf32>
    %76 = arith.addf %75, %74 : vector<1x48xf32>
    %77 = arith.divf %75, %76 : vector<1x48xf32>
    %78 = arith.mulf %77, %77 : vector<1x48xf32>
    %79 = vector.broadcast %78 : vector<1x48xf32> to vector<256x48xf32>
    %80 = arith.mulf %52, %79 : vector<256x48xf32>
    %81 = vector.shape_cast %80 : vector<256x48xf32> to vector<16x16x48xf32>
    %cst_15 = arith.constant 0.000000e+00 : f32
    %82 = vector.broadcast %cst_15 : f32 to vector<16x1x48xf32>
    %83 = tpu.concatenate %82, %81, %82 in 1 : vector<16x1x48xf32>, vector<16x16x48xf32>, vector<16x1x48xf32> -> vector<16x18x48xf32>
    %cst_16 = arith.constant 0.000000e+00 : f32
    %84 = vector.broadcast %cst_16 : f32 to vector<1x18x48xf32>
    %85 = tpu.concatenate %84, %83, %84 in 0 : vector<1x18x48xf32>, vector<16x18x48xf32>, vector<1x18x48xf32> -> vector<18x18x48xf32>
    %c0_17 = arith.constant 0 : index
    %c0_18 = arith.constant 0 : index
    %c0_19 = arith.constant 0 : index
    %86 = vector.load %arg6[%c0_17, %c0_18, %c0_19] : memref<18x18x48xf32, #tpu.memory_space<vmem>>, vector<18x18x48xf32>
    tpu.vector_store %arg6[%c0_17, %c0_18, %c0_19], %85 {strides = array<i32>} : memref<18x18x48xf32, #tpu.memory_space<vmem>>, vector<18x18x48xf32>,
    %cst_20 = arith.constant 0.000000e+00 : f32
    %87 = vector.broadcast %cst_20 : f32 to vector<64x16xf32>
    %c0_21 = arith.constant 0 : index
    %c0_22 = arith.constant 0 : index
    %c0_23 = arith.constant 0 : index
    %88 = tpu.strided_load %arg6[%c0_21, %c0_22, %c0_23] {strides = array<i32: 2, 2, 1>} : memref<18x18x48xf32, #tpu.memory_space<vmem>>, vector<8x8x48xf32>
    %89 = vector.shape_cast %88 : vector<8x8x48xf32> to vector<64x48xf32>
    %90 = arith.truncf %89 : vector<64x48xf32> to vector<64x48xbf16>
    %c0_24 = arith.constant 0 : index
    %c0_25 = arith.constant 0 : index
    %c0_26 = arith.constant 0 : index
    %91 = vector.load %arg3[%c0_24, %c0_25, %c0_26] : memref<9x48x16xbf16, #tpu.memory_space<vmem>>, vector<1x48x16xbf16>
    %92 = vector.shape_cast %91 : vector<1x48x16xbf16> to vector<48x16xbf16>
    %cst_27 = arith.constant dense<0.000000e+00> : vector<64x16xf32>
    %93 = tpu.matmul %90, %92, %cst_27 {dimension_numbers = #tpu.dot_dimension_numbers<[1], [0], [0], [1], [0, 0, 1, 1], [], []>} : vector<64x48xbf16>, vector<48x16xbf16>, vector<64x16xf32> -> vector<64x16xf32>
    %94 = arith.addf %87, %93 : vector<64x16xf32>
    %c0_28 = arith.constant 0 : index
    %c1_29 = arith.constant 1 : index
    %c0_30 = arith.constant 0 : index
    %95 = tpu.strided_load %arg6[%c0_28, %c1_29, %c0_30] {strides = array<i32: 2, 2, 1>} : memref<18x18x48xf32, #tpu.memory_space<vmem>>, vector<8x8x48xf32>
    %96 = vector.shape_cast %95 : vector<8x8x48xf32> to vector<64x48xf32>
    %97 = arith.truncf %96 : vector<64x48xf32> to vector<64x48xbf16>
    %c1_31 = arith.constant 1 : index
    %c0_32 = arith.constant 0 : index
    %c0_33 = arith.constant 0 : index
    %98 = vector.load %arg3[%c1_31, %c0_32, %c0_33] : memref<9x48x16xbf16, #tpu.memory_space<vmem>>, vector<1x48x16xbf16>
    %99 = vector.shape_cast %98 : vector<1x48x16xbf16> to vector<48x16xbf16>
    %cst_34 = arith.constant dense<0.000000e+00> : vector<64x16xf32>
    %100 = tpu.matmul %97, %99, %cst_34 {dimension_numbers = #tpu.dot_dimension_numbers<[1], [0], [0], [1], [0, 0, 1, 1], [], []>} : vector<64x48xbf16>, vector<48x16xbf16>, vector<64x16xf32> -> vector<64x16xf32>
    %101 = arith.addf %94, %100 : vector<64x16xf32>
    %c0_35 = arith.constant 0 : index
    %c2_36 = arith.constant 2 : index
    %c0_37 = arith.constant 0 : index
    %102 = tpu.strided_load %arg6[%c0_35, %c2_36, %c0_37] {strides = array<i32: 2, 2, 1>} : memref<18x18x48xf32, #tpu.memory_space<vmem>>, vector<8x8x48xf32>
    %103 = vector.shape_cast %102 : vector<8x8x48xf32> to vector<64x48xf32>
    %104 = arith.truncf %103 : vector<64x48xf32> to vector<64x48xbf16>
    %c2_38 = arith.constant 2 : index
    %c0_39 = arith.constant 0 : index
    %c0_40 = arith.constant 0 : index
    %105 = vector.load %arg3[%c2_38, %c0_39, %c0_40] : memref<9x48x16xbf16, #tpu.memory_space<vmem>>, vector<1x48x16xbf16>
    %106 = vector.shape_cast %105 : vector<1x48x16xbf16> to vector<48x16xbf16>
    %cst_41 = arith.constant dense<0.000000e+00> : vector<64x16xf32>
    %107 = tpu.matmul %104, %106, %cst_41 {dimension_numbers = #tpu.dot_dimension_numbers<[1], [0], [0], [1], [0, 0, 1, 1], [], []>} : vector<64x48xbf16>, vector<48x16xbf16>, vector<64x16xf32> -> vector<64x16xf32>
    %108 = arith.addf %101, %107 : vector<64x16xf32>
    %c1_42 = arith.constant 1 : index
    %c0_43 = arith.constant 0 : index
    %c0_44 = arith.constant 0 : index
    %109 = tpu.strided_load %arg6[%c1_42, %c0_43, %c0_44] {strides = array<i32: 2, 2, 1>} : memref<18x18x48xf32, #tpu.memory_space<vmem>>, vector<8x8x48xf32>
    %110 = vector.shape_cast %109 : vector<8x8x48xf32> to vector<64x48xf32>
    %111 = arith.truncf %110 : vector<64x48xf32> to vector<64x48xbf16>
    %c3_45 = arith.constant 3 : index
    %c0_46 = arith.constant 0 : index
    %c0_47 = arith.constant 0 : index
    %112 = vector.load %arg3[%c3_45, %c0_46, %c0_47] : memref<9x48x16xbf16, #tpu.memory_space<vmem>>, vector<1x48x16xbf16>
    %113 = vector.shape_cast %112 : vector<1x48x16xbf16> to vector<48x16xbf16>
    %cst_48 = arith.constant dense<0.000000e+00> : vector<64x16xf32>
    %114 = tpu.matmul %111, %113, %cst_48 {dimension_numbers = #tpu.dot_dimension_numbers<[1], [0], [0], [1], [0, 0, 1, 1], [], []>} : vector<64x48xbf16>, vector<48x16xbf16>, vector<64x16xf32> -> vector<64x16xf32>
    %115 = arith.addf %108, %114 : vector<64x16xf32>
    %c1_49 = arith.constant 1 : index
    %c1_50 = arith.constant 1 : index
    %c0_51 = arith.constant 0 : index
    %116 = tpu.strided_load %arg6[%c1_49, %c1_50, %c0_51] {strides = array<i32: 2, 2, 1>} : memref<18x18x48xf32, #tpu.memory_space<vmem>>, vector<8x8x48xf32>
    %117 = vector.shape_cast %116 : vector<8x8x48xf32> to vector<64x48xf32>
    %118 = arith.truncf %117 : vector<64x48xf32> to vector<64x48xbf16>
    %c4_52 = arith.constant 4 : index
    %c0_53 = arith.constant 0 : index
    %c0_54 = arith.constant 0 : index
    %119 = vector.load %arg3[%c4_52, %c0_53, %c0_54] : memref<9x48x16xbf16, #tpu.memory_space<vmem>>, vector<1x48x16xbf16>
    %120 = vector.shape_cast %119 : vector<1x48x16xbf16> to vector<48x16xbf16>
    %cst_55 = arith.constant dense<0.000000e+00> : vector<64x16xf32>
    %121 = tpu.matmul %118, %120, %cst_55 {dimension_numbers = #tpu.dot_dimension_numbers<[1], [0], [0], [1], [0, 0, 1, 1], [], []>} : vector<64x48xbf16>, vector<48x16xbf16>, vector<64x16xf32> -> vector<64x16xf32>
    %122 = arith.addf %115, %121 : vector<64x16xf32>
    %c1_56 = arith.constant 1 : index
    %c2_57 = arith.constant 2 : index
    %c0_58 = arith.constant 0 : index
    %123 = tpu.strided_load %arg6[%c1_56, %c2_57, %c0_58] {strides = array<i32: 2, 2, 1>} : memref<18x18x48xf32, #tpu.memory_space<vmem>>, vector<8x8x48xf32>
    %124 = vector.shape_cast %123 : vector<8x8x48xf32> to vector<64x48xf32>
    %125 = arith.truncf %124 : vector<64x48xf32> to vector<64x48xbf16>
    %c5_59 = arith.constant 5 : index
    %c0_60 = arith.constant 0 : index
    %c0_61 = arith.constant 0 : index
    %126 = vector.load %arg3[%c5_59, %c0_60, %c0_61] : memref<9x48x16xbf16, #tpu.memory_space<vmem>>, vector<1x48x16xbf16>
    %127 = vector.shape_cast %126 : vector<1x48x16xbf16> to vector<48x16xbf16>
    %cst_62 = arith.constant dense<0.000000e+00> : vector<64x16xf32>
    %128 = tpu.matmul %125, %127, %cst_62 {dimension_numbers = #tpu.dot_dimension_numbers<[1], [0], [0], [1], [0, 0, 1, 1], [], []>} : vector<64x48xbf16>, vector<48x16xbf16>, vector<64x16xf32> -> vector<64x16xf32>
    %129 = arith.addf %122, %128 : vector<64x16xf32>
    %c2_63 = arith.constant 2 : index
    %c0_64 = arith.constant 0 : index
    %c0_65 = arith.constant 0 : index
    %130 = tpu.strided_load %arg6[%c2_63, %c0_64, %c0_65] {strides = array<i32: 2, 2, 1>} : memref<18x18x48xf32, #tpu.memory_space<vmem>>, vector<8x8x48xf32>
    %131 = vector.shape_cast %130 : vector<8x8x48xf32> to vector<64x48xf32>
    %132 = arith.truncf %131 : vector<64x48xf32> to vector<64x48xbf16>
    %c6_66 = arith.constant 6 : index
    %c0_67 = arith.constant 0 : index
    %c0_68 = arith.constant 0 : index
    %133 = vector.load %arg3[%c6_66, %c0_67, %c0_68] : memref<9x48x16xbf16, #tpu.memory_space<vmem>>, vector<1x48x16xbf16>
    %134 = vector.shape_cast %133 : vector<1x48x16xbf16> to vector<48x16xbf16>
    %cst_69 = arith.constant dense<0.000000e+00> : vector<64x16xf32>
    %135 = tpu.matmul %132, %134, %cst_69 {dimension_numbers = #tpu.dot_dimension_numbers<[1], [0], [0], [1], [0, 0, 1, 1], [], []>} : vector<64x48xbf16>, vector<48x16xbf16>, vector<64x16xf32> -> vector<64x16xf32>
    %136 = arith.addf %129, %135 : vector<64x16xf32>
    %c2_70 = arith.constant 2 : index
    %c1_71 = arith.constant 1 : index
    %c0_72 = arith.constant 0 : index
    %137 = tpu.strided_load %arg6[%c2_70, %c1_71, %c0_72] {strides = array<i32: 2, 2, 1>} : memref<18x18x48xf32, #tpu.memory_space<vmem>>, vector<8x8x48xf32>
    %138 = vector.shape_cast %137 : vector<8x8x48xf32> to vector<64x48xf32>
    %139 = arith.truncf %138 : vector<64x48xf32> to vector<64x48xbf16>
    %c7 = arith.constant 7 : index
    %c0_73 = arith.constant 0 : index
    %c0_74 = arith.constant 0 : index
    %140 = vector.load %arg3[%c7, %c0_73, %c0_74] : memref<9x48x16xbf16, #tpu.memory_space<vmem>>, vector<1x48x16xbf16>
    %141 = vector.shape_cast %140 : vector<1x48x16xbf16> to vector<48x16xbf16>
    %cst_75 = arith.constant dense<0.000000e+00> : vector<64x16xf32>
    %142 = tpu.matmul %139, %141, %cst_75 {dimension_numbers = #tpu.dot_dimension_numbers<[1], [0], [0], [1], [0, 0, 1, 1], [], []>} : vector<64x48xbf16>, vector<48x16xbf16>, vector<64x16xf32> -> vector<64x16xf32>
    %143 = arith.addf %136, %142 : vector<64x16xf32>
    %c2_76 = arith.constant 2 : index
    %c2_77 = arith.constant 2 : index
    %c0_78 = arith.constant 0 : index
    %144 = tpu.strided_load %arg6[%c2_76, %c2_77, %c0_78] {strides = array<i32: 2, 2, 1>} : memref<18x18x48xf32, #tpu.memory_space<vmem>>, vector<8x8x48xf32>
    %145 = vector.shape_cast %144 : vector<8x8x48xf32> to vector<64x48xf32>
    %146 = arith.truncf %145 : vector<64x48xf32> to vector<64x48xbf16>
    %c8 = arith.constant 8 : index
    %c0_79 = arith.constant 0 : index
    %c0_80 = arith.constant 0 : index
    %147 = vector.load %arg3[%c8, %c0_79, %c0_80] : memref<9x48x16xbf16, #tpu.memory_space<vmem>>, vector<1x48x16xbf16>
    %148 = vector.shape_cast %147 : vector<1x48x16xbf16> to vector<48x16xbf16>
    %cst_81 = arith.constant dense<0.000000e+00> : vector<64x16xf32>
    %149 = tpu.matmul %146, %148, %cst_81 {dimension_numbers = #tpu.dot_dimension_numbers<[1], [0], [0], [1], [0, 0, 1, 1], [], []>} : vector<64x48xbf16>, vector<48x16xbf16>, vector<64x16xf32> -> vector<64x16xf32>
    %150 = arith.addf %143, %149 : vector<64x16xf32>
    %151 = vector.shape_cast %150 : vector<64x16xf32> to vector<8x8x16xf32>
    %c0_82 = arith.constant 0 : index
    %c0_83 = arith.constant 0 : index
    %c0_84 = arith.constant 0 : index
    %c0_85 = arith.constant 0 : index
    %152 = vector.load %arg5[%c0_82, %c0_83, %c0_84, %c0_85] : memref<1x8x8x16xf32, #tpu.memory_space<vmem>>, vector<1x8x8x16xf32>
    %153 = vector.shape_cast %152 : vector<1x8x8x16xf32> to vector<8x8x16xf32>
    %154 = vector.shape_cast %151 : vector<8x8x16xf32> to vector<1x8x8x16xf32>
    tpu.vector_store %arg5[%c0_82, %c0_83, %c0_84, %c0_85], %154 {strides = array<i32>} : memref<1x8x8x16xf32, #tpu.memory_space<vmem>>, vector<1x8x8x16xf32>,
    return
  }
  func.func @transform_0(%arg0: i32) -> (i32, i32, i32, i32) {
    %c0_i32 = arith.constant 0 : i32
    %c0_i32_0 = arith.constant 0 : i32
    %c0_i32_1 = arith.constant 0 : i32
    %c0_i32_2 = arith.constant 0 : i32
    return %arg0, %c0_i32, %c0_i32_0, %c0_i32_1 : i32, i32, i32, i32
  }
  func.func @transform_1(%arg0: i32) -> (i32, i32) {
    %c0_i32 = arith.constant 0 : i32
    %c0_i32_0 = arith.constant 0 : i32
    %c0_i32_1 = arith.constant 0 : i32
    return %c0_i32, %c0_i32_0 : i32, i32
  }
  func.func @transform_2(%arg0: i32) -> (i32, i32, i32) {
    %c0_i32 = arith.constant 0 : i32
    %c0_i32_0 = arith.constant 0 : i32
    %c0_i32_1 = arith.constant 0 : i32
    %c0_i32_2 = arith.constant 0 : i32
    return %c0_i32, %c0_i32_0, %c0_i32_1 : i32, i32, i32
  }
  func.func @transform_3(%arg0: i32) -> i32 {
    %c0_i32 = arith.constant 0 : i32
    %c0_i32_0 = arith.constant 0 : i32
    return %c0_i32 : i32
  }
  func.func @transform_4(%arg0: i32) -> (i32, i32, i32, i32) {
    %c0_i32 = arith.constant 0 : i32
    %c0_i32_0 = arith.constant 0 : i32
    %c0_i32_1 = arith.constant 0 : i32
    %c0_i32_2 = arith.constant 0 : i32
    return %arg0, %c0_i32, %c0_i32_0, %c0_i32_1 : i32, i32, i32, i32
  }
}

</mosaic_0001>

<llo_original>
// kernel: tpu_custom_call.1
$region0: #{tpu_custom_call.1}
  #allocation0 [shape = 'u32[]', space=smem, size = 0x4, offset = 0x4, fixed_abs, tag = 'smem constant byte address 0x4 - core index']
  #allocation1 [shape = 'u32[144,128]{1,0:T(1,128)}', space=vmem, size = 0x12000, scoped, tag = 'internal scratch']
  #allocation2 [shape = 'f32[18,18,48]{2,1,0:T(8,128)}', space=vmem, size = 0x36000, scoped, tag = 'scratch operand']
  %s0 = inlined_call_operand.vmem [shape: f32[2,16,16,3], index: 0, kind: input, shape index: {}]
  %s1 = inlined_call_operand.vmem [shape: bf16[27,48], index: 1, kind: input, shape index: {}]
  %s2 = inlined_call_operand.vmem [shape: bf16[9,48,16], index: 2, kind: input, shape index: {}]
  %s3 = inlined_call_operand.vmem [shape: f32[7], index: 3, kind: input, shape index: {}]
  %s4 = inlined_call_operand.hbm [shape: f32[2,8,8,16], index: 4, kind: output, shape index: {}]
  %s5 = sld [smem:[#allocation0]]
  $region53: #{tpu_custom_call.1} parent=0
    _
  %s7 = ssub.s32 1, %s5
  %s8 = scalar_select 0, %s7, %s5
  $region1: #{tpu_custom_call.1} parent=0
    #allocation3 [shape = 'u8[512]{0}', space=smem, size = 0x200, scoped, tag = 'input window, operand 3, single buffered']
    #allocation4 [shape = 's32[2]{0}', space=sflag, size = 0x8, scoped, tag = 'scoped memory for tpu_custom_call.1']
    #allocation5 [shape = 's32[2]{0}', space=sflag, size = 0x8, scoped, tag = 'scoped memory for tpu_custom_call.1']
    #allocation6 [shape = 'u8[65536]{0}', space=vmem, size = 0x10000, scoped, tag = 'output window, operand 0']
    %9 = vsyncpa [#allocation5], 0
    %10 = vsyncpa [#allocation4], 0
    %s11 = scalar_lea.sflag [#allocation4], 1
    %12 = vsyncpa %s11, 0
    loop: start=0, step=1, limit=4
    $region2: #{tpu_custom_call.1} parent=1 // loop_pre_header
      _
    $region3: #{tpu_custom_call.1} parent=1 // loop_header
      %s14 = sphi 0, %s18
      %p15 = scmp.ge.s32.totalorder %s14, 4
      %s24 = sphi 0, %s26
      %s27 = sphi 0, %s24
      %s28 = sphi 0, %s27
      %s44 = sphi 0, %s28
      %s48 = sphi 0, %s48
      %s50 = sphi 0, %s48
      %s51 = sphi 0, %s50
      %s65 = sphi 0, %s51
      %s69 = sphi 0, %s69
      %s71 = sphi 0, %s69
      %s72 = sphi 0, %s71
      %s86 = sphi 0, %s72
      %s90 = sphi 0, %s90
      %s92 = sphi 0, %s90
      %s93 = sphi 0, %s92
      %s107 = sphi 0, %s93
      %s113 = sphi 0, %s115
      %s116 = sphi 0, %s113
      %s117 = sphi 0, %s116
      %s133 = sphi 0, %s117
    $region4: #{tpu_custom_call.1} parent=1 // loop_header_branch
      %17 = sbr.rel (%p15) target = $region8
    $region5: #{tpu_custom_call.1} parent=1 // loop_body
      %s19 = ssub.s32 %s14, 1
      %s20 = ssub.s32 %s14, 2
      %s21 = sadd.s32 %s14, 1
      %s22 = ssub.s32 %s14, %s21
      %p23 = scmp.eq.s32.totalorder %s22, 0
      %s25 = sadd.s32 %s24, 1
      %s26 = scalar_select %p23, %s24, %s25
      %p29 = pneg %p23
      %p30 = scmp.eq.s32.totalorder %s14, 1
      %p31 = por %p29, %p30
      %p32 = scmp.ne.s32.totalorder %s24, %s27
      %p33 = scmp.eq.s32.totalorder %s14, 0
      %p34 = por %p32, %p33
      %p35 = scmp.ne.s32.totalorder %s24, %s27
      %p36 = scmp.eq.s32.totalorder %s19, 1
      %p37 = por %p35, %p36
      %p38 = scmp.ne.s32.totalorder %s27, %s28
      %p39 = scmp.eq.s32.totalorder %s19, 0
      %p40 = por %p38, %p39
      %p41 = scmp.ne.s32.totalorder %s27, %s28
      %p42 = scmp.eq.s32.totalorder %s20, 1
      %p43 = por %p41, %p42
      %p45 = scmp.ne.s32.totalorder %s28, %s44
      %p46 = scmp.eq.s32.totalorder %s20, 0
      %p47 = por %p45, %p46
      %s49 = sadd.s32 %s48, 1
      %p52 = scmp.eq.s32.totalorder %s14, 1
      %p53 = scmp.ne.s32.totalorder %s48, %s50
      %p54 = scmp.eq.s32.totalorder %s14, 0
      %p55 = por %p53, %p54
      %p56 = scmp.ne.s32.totalorder %s48, %s50
      %p57 = scmp.eq.s32.totalorder %s19, 1
      %p58 = por %p56, %p57
      %p59 = scmp.ne.s32.totalorder %s50, %s51
      %p60 = scmp.eq.s32.totalorder %s19, 0
      %p61 = por %p59, %p60
      %p62 = scmp.ne.s32.totalorder %s50, %s51
      %p63 = scmp.eq.s32.totalorder %s20, 1
      %p64 = por %p62, %p63
      %p66 = scmp.ne.s32.totalorder %s51, %s65
      %p67 = scmp.eq.s32.totalorder %s20, 0
      %p68 = por %p66, %p67
      %s70 = sadd.s32 %s69, 1
      %p73 = scmp.eq.s32.totalorder %s14, 1
      %p74 = scmp.ne.s32.totalorder %s69, %s71
      %p75 = scmp.eq.s32.totalorder %s14, 0
      %p76 = por %p74, %p75
      %p77 = scmp.ne.s32.totalorder %s69, %s71
      %p78 = scmp.eq.s32.totalorder %s19, 1
      %p79 = por %p77, %p78
      %p80 = scmp.ne.s32.totalorder %s71, %s72
      %p81 = scmp.eq.s32.totalorder %s19, 0
      %p82 = por %p80, %p81
      %p83 = scmp.ne.s32.totalorder %s71, %s72
      %p84 = scmp.eq.s32.totalorder %s20, 1
      %p85 = por %p83, %p84
      %p87 = scmp.ne.s32.totalorder %s72, %s86
      %p88 = scmp.eq.s32.totalorder %s20, 0
      %p89 = por %p87, %p88
      %s91 = sadd.s32 %s90, 1
      %p94 = scmp.eq.s32.totalorder %s14, 1
      %p95 = scmp.ne.s32.totalorder %s90, %s92
      %p96 = scmp.eq.s32.totalorder %s14, 0
      %p97 = por %p95, %p96
      %p98 = scmp.ne.s32.totalorder %s90, %s92
      %p99 = scmp.eq.s32.totalorder %s19, 1
      %p100 = por %p98, %p99
      %p101 = scmp.ne.s32.totalorder %s92, %s93
      %p102 = scmp.eq.s32.totalorder %s19, 0
      %p103 = por %p101, %p102
      %p104 = scmp.ne.s32.totalorder %s92, %s93
      %p105 = scmp.eq.s32.totalorder %s20, 1
      %p106 = por %p104, %p105
      %p108 = scmp.ne.s32.totalorder %s93, %s107
      %p109 = scmp.eq.s32.totalorder %s20, 0
      %p110 = por %p108, %p109
      %s111 = ssub.s32 %s14, %s21
      %p112 = scmp.eq.s32.totalorder %s111, 0
      %s114 = sadd.s32 %s113, 1
      %s115 = scalar_select %p112, %s113, %s114
      %p118 = pneg %p112
      %p119 = scmp.eq.s32.totalorder %s14, 1
      %p120 = por %p118, %p119
      %p121 = scmp.ne.s32.totalorder %s113, %s116
      %p122 = scmp.eq.s32.totalorder %s14, 0
      %p123 = por %p121, %p122
      %p124 = scmp.ne.s32.totalorder %s113, %s116
      %p125 = scmp.eq.s32.totalorder %s19, 1
      %p126 = por %p124, %p125
      %p127 = scmp.ne.s32.totalorder %s116, %s117
      %p128 = scmp.eq.s32.totalorder %s19, 0
      %p129 = por %p127, %p128
      %p130 = scmp.ne.s32.totalorder %s116, %s117
      %p131 = scmp.eq.s32.totalorder %s20, 1
      %p132 = por %p130, %p131
      %p134 = scmp.ne.s32.totalorder %s117, %s133
      %p135 = scmp.eq.s32.totalorder %s20, 0
      %p136 = por %p134, %p135
      %p137 = scmp.le.s32.totalorder 1, %s14
      %p138 = scmp.lt.s32.totalorder %s14, 3
      %p139 = pnand %p137, %p138
      %p140 = pneg %p139
      // Predicated region
      $region9: #{tpu_custom_call.1} parent=5 // pred_check
        _
      $region10: #{tpu_custom_call.1} parent=5 // pred_check_branch
        %142 = sbr.rel (%p139) target = $region12
      $region11: #{tpu_custom_call.1} parent=5 // pred_region
        %s143 = ssub.s32 %s14, 1
        // Predicated region
        $region13: #{tpu_custom_call.1} parent=11 // pred_check
          %p144 = pneg %p61
        $region14: #{tpu_custom_call.1} parent=11 // pred_check_branch
          %146 = sbr.rel (%p144) target = $region16
        $region15: #{tpu_custom_call.1} parent=11 // pred_region
          _
        $region16: #{tpu_custom_call.1} parent=11 // pred_fallthru
          _
        // Predicated region
        $region17: #{tpu_custom_call.1} parent=11 // pred_check
          %p147 = pneg %p82
        $region18: #{tpu_custom_call.1} parent=11 // pred_check_branch
          %149 = sbr.rel (%p147) target = $region20
        $region19: #{tpu_custom_call.1} parent=11 // pred_region
          _
        $region20: #{tpu_custom_call.1} parent=11 // pred_fallthru
          _
        // Predicated region
        $region21: #{tpu_custom_call.1} parent=11 // pred_check
          %p150 = pneg %p103
        $region22: #{tpu_custom_call.1} parent=11 // pred_check_branch
          %152 = sbr.rel (%p150) target = $region24
        $region23: #{tpu_custom_call.1} parent=11 // pred_region
          %s154 = ssub.s32 16, 16
          %155 = vsyncadd [#allocation5], %s154
          %s157 = sshll.u32 %s3, 4
          %s158 = int_to_ptr.vmem [resolvable:$true] %s157
          %160 = dma.vmem_to_smem %s158, 16, [#allocation3], [#allocation5]
        $region24: #{tpu_custom_call.1} parent=11 // pred_fallthru
          _
      $region12: #{tpu_custom_call.1} parent=5 // pred_fallthru
        _
      %p161 = scmp.lt.s32.totalorder %s14, 2
      // Predicated region
      $region25: #{tpu_custom_call.1} parent=5 // pred_check
        %p162 = pneg %p161
      $region26: #{tpu_custom_call.1} parent=5 // pred_check_branch
        %164 = sbr.rel (%p162) target = $region28
      $region27: #{tpu_custom_call.1} parent=5 // pred_region
        // Predicated region
        $region29: #{tpu_custom_call.1} parent=27 // pred_check
          %p165 = pneg %p34
        $region30: #{tpu_custom_call.1} parent=27 // pred_check_branch
          %167 = sbr.rel (%p165) target = $region32
        $region31: #{tpu_custom_call.1} parent=27 // pred_region
          %p168 = scmp.lt.s32.totalorder %s14, 1
          %s169 = scalar_select %p168, %s14, 1
          %s170 = smul.addr %s169, 32
          %s171 = smul.addr %s170, 8
          %s172 = scalar_lea.vmem %s0, %s171
        $region32: #{tpu_custom_call.1} parent=27 // pred_fallthru
          _
      $region28: #{tpu_custom_call.1} parent=5 // pred_fallthru
        _
      %p173 = scmp.le.s32.totalorder 1, %s14
      %p174 = scmp.lt.s32.totalorder %s14, 3
      %p175 = pnand %p173, %p174
      %p176 = pneg %p175
      // Predicated region
      $region33: #{tpu_custom_call.1} parent=5 // pred_check
        _
      $region34: #{tpu_custom_call.1} parent=5 // pred_check_branch
        %178 = sbr.rel (%p175) target = $region36
      $region35: #{tpu_custom_call.1} parent=5 // pred_region
        %s179 = ssub.s32 %s14, 1
        // Predicated region
        $region37: #{tpu_custom_call.1} parent=35 // pred_check
          %p180 = pneg %p103
        $region38: #{tpu_custom_call.1} parent=35 // pred_check_branch
          %182 = sbr.rel (%p180) target = $region40
        $region39: #{tpu_custom_call.1} parent=35 // pred_region
          %183 = dma.done [#allocation5], 16
        $region40: #{tpu_custom_call.1} parent=35 // pred_fallthru
          _
        %184 = sfence
        %p185 = scmp.lt.s32.totalorder %s19, 1
        %s186 = scalar_select %p185, %s19, 1
        %s187 = smul.addr %s186, 32
        %s188 = smul.addr %s187, 8
        %s189 = scalar_lea.vmem %s0, %s188
        %p190 = pneg %p40
        %p191 = pneg %p37
        %p192 = pneg %p61
        %p193 = pneg %p58
        %p194 = pneg %p82
        %p195 = pneg %p79
        %p196 = pneg %p103
        %p197 = pneg %p100
        %p198 = pneg %p129
        %p199 = pneg %p126
        %s200 = sand.u32 %s116, 1
        %s201 = scalar_lea.sflag [#allocation4], %s200
        %s202 = sand.u32 %s116, 1
        %s203 = smul.addr %s202, 64
        %s204 = scalar_lea.vmem [#allocation6], %s203
        %p205 = scmp.lt.s32.totalorder %s19, 1
        %s206 = scalar_select %p205, %s19, 1
        %s207 = smul.addr %s206, 32
        %s208 = smul.addr %s207, 8
        %s209 = scalar_lea.vmem %s0, %s208
        %v211 = vld [vmem:[%s209] sm:$0xff]
        %v212 = vld [vmem:[%s209 + $0x8] sm:$0xff]
        %v213 = vld [vmem:[%s209 + $0x10] sm:$0xff]
        %v214 = vld [vmem:[%s209 + $0x18] sm:$0xff]
        %v215 = vld [vmem:[%s209 + $0x20] sm:$0xff]
        %v216 = vld [vmem:[%s209 + $0x28] sm:$0xff]
        %v217 = vld [vmem:[%s209 + $0x30] sm:$0xff]
        %v218 = vld [vmem:[%s209 + $0x38] sm:$0xff]
        %v219 = vld [vmem:[%s209 + $0x40] sm:$0xff]
        %v220 = vld [vmem:[%s209 + $0x48] sm:$0xff]
        %v221 = vld [vmem:[%s209 + $0x50] sm:$0xff]
        %v222 = vld [vmem:[%s209 + $0x58] sm:$0xff]
        %v223 = vld [vmem:[%s209 + $0x60] sm:$0xff]
        %v224 = vld [vmem:[%s209 + $0x68] sm:$0xff]
        %v225 = vld [vmem:[%s209 + $0x70] sm:$0xff]
        %v226 = vld [vmem:[%s209 + $0x78] sm:$0xff]
        %v227 = vld [vmem:[%s209 + $0x80] sm:$0xff]
        %v228 = vld [vmem:[%s209 + $0x88] sm:$0xff]
        %v229 = vld [vmem:[%s209 + $0x90] sm:$0xff]
        %v230 = vld [vmem:[%s209 + $0x98] sm:$0xff]
        %v231 = vld [vmem:[%s209 + $0xa0] sm:$0xff]
        %v232 = vld [vmem:[%s209 + $0xa8] sm:$0xff]
        %v233 = vld [vmem:[%s209 + $0xb0] sm:$0xff]
        %v234 = vld [vmem:[%s209 + $0xb8] sm:$0xff]
        %v235 = vld [vmem:[%s209 + $0xc0] sm:$0xff]
        %v236 = vld [vmem:[%s209 + $0xc8] sm:$0xff]
        %v237 = vld [vmem:[%s209 + $0xd0] sm:$0xff]
        %v238 = vld [vmem:[%s209 + $0xd8] sm:$0xff]
        %v239 = vld [vmem:[%s209 + $0xe0] sm:$0xff]
        %v240 = vld [vmem:[%s209 + $0xe8] sm:$0xff]
        %v241 = vld [vmem:[%s209 + $0xf0] sm:$0xff]
        %v242 = vld [vmem:[%s209 + $0xf8] sm:$0xff]
        %s243 = sld [smem:[#allocation3]]
        %v244 = vstv %s243
        %v245 = vmul.f32 %v244, %v211
        %v246 = vmul.f32 %v244, %v212
        %v247 = vmul.f32 %v244, %v213
        %v248 = vmul.f32 %v244, %v214
        %v249 = vmul.f32 %v244, %v215
        %v250 = vmul.f32 %v244, %v216
        %v251 = vmul.f32 %v244, %v217
        %v252 = vmul.f32 %v244, %v218
        %v253 = vmul.f32 %v244, %v219
        %v254 = vmul.f32 %v244, %v220
        %v255 = vmul.f32 %v244, %v221
        %v256 = vmul.f32 %v244, %v222
        %v257 = vmul.f32 %v244, %v223
        %v258 = vmul.f32 %v244, %v224
        %v259 = vmul.f32 %v244, %v225
        %v260 = vmul.f32 %v244, %v226
        %v261 = vmul.f32 %v244, %v227
        %v262 = vmul.f32 %v244, %v228
        %v263 = vmul.f32 %v244, %v229
        %v264 = vmul.f32 %v244, %v230
        %v265 = vmul.f32 %v244, %v231
        %v266 = vmul.f32 %v244, %v232
        %v267 = vmul.f32 %v244, %v233
        %v268 = vmul.f32 %v244, %v234
        %v269 = vmul.f32 %v244, %v235
        %v270 = vmul.f32 %v244, %v236
        %v271 = vmul.f32 %v244, %v237
        %v272 = vmul.f32 %v244, %v238
        %v273 = vmul.f32 %v244, %v239
        %v274 = vmul.f32 %v244, %v240
        %v275 = vmul.f32 %v244, %v241
        %v276 = vmul.f32 %v244, %v242
        %s277 = sld [smem:[#allocation3 + $0x1]]
        %v278 = vstv %s277
        %v279 = vmul.f32 %v278, %v211
        %v280 = vmul.f32 %v278, %v212
        %v281 = vmul.f32 %v278, %v213
        %v282 = vmul.f32 %v278, %v214
        %v283 = vmul.f32 %v278, %v215
        %v284 = vmul.f32 %v278, %v216
        %v285 = vmul.f32 %v278, %v217
        %v286 = vmul.f32 %v278, %v218
        %v287 = vmul.f32 %v278, %v219
        %v288 = vmul.f32 %v278, %v220
        %v289 = vmul.f32 %v278, %v221
        %v290 = vmul.f32 %v278, %v222
        %v291 = vmul.f32 %v278, %v223
        %v292 = vmul.f32 %v278, %v224
        %v293 = vmul.f32 %v278, %v225
        %v294 = vmul.f32 %v278, %v226
        %v295 = vmul.f32 %v278, %v227
        %v296 = vmul.f32 %v278, %v228
        %v297 = vmul.f32 %v278, %v229
        %v298 = vmul.f32 %v278, %v230
        %v299 = vmul.f32 %v278, %v231
        %v300 = vmul.f32 %v278, %v232
        %v301 = vmul.f32 %v278, %v233
        %v302 = vmul.f32 %v278, %v234
        %v303 = vmul.f32 %v278, %v235
        %v304 = vmul.f32 %v278, %v236
        %v305 = vmul.f32 %v278, %v237
        %v306 = vmul.f32 %v278, %v238
        %v307 = vmul.f32 %v278, %v239
        %v308 = vmul.f32 %v278, %v240
        %v309 = vmul.f32 %v278, %v241
        %v310 = vmul.f32 %v278, %v242
        %343 = vrot.lane.b32.xlu0 %v279, 127
        %v344 = vpop.permute.xlu0 %343
        %345 = vrot.lane.b32.xlu0 %v280, 127
        %v346 = vpop.permute.xlu0 %345
        %347 = vrot.lane.b32.xlu0 %v281, 127
        %v348 = vpop.permute.xlu0 %347
        %349 = vrot.lane.b32.xlu0 %v282, 127
        %v350 = vpop.permute.xlu0 %349
        %351 = vrot.lane.b32.xlu0 %v283, 127
        %v352 = vpop.permute.xlu0 %351
        %353 = vrot.lane.b32.xlu0 %v284, 127
        %v354 = vpop.permute.xlu0 %353
        %355 = vrot.lane.b32.xlu0 %v285, 127
        %v356 = vpop.permute.xlu0 %355
        %357 = vrot.lane.b32.xlu0 %v286, 127
        %v358 = vpop.permute.xlu0 %357
        %359 = vrot.lane.b32.xlu0 %v287, 127
        %v360 = vpop.permute.xlu0 %359
        %361 = vrot.lane.b32.xlu0 %v288, 127
        %v362 = vpop.permute.xlu0 %361
        %363 = vrot.lane.b32.xlu0 %v289, 127
        %v364 = vpop.permute.xlu0 %363
        %365 = vrot.lane.b32.xlu0 %v290, 127
        %v366 = vpop.permute.xlu0 %365
        %367 = vrot.lane.b32.xlu0 %v291, 127
        %v368 = vpop.permute.xlu0 %367
        %369 = vrot.lane.b32.xlu0 %v292, 127
        %v370 = vpop.permute.xlu0 %369
        %371 = vrot.lane.b32.xlu0 %v293, 127
        %v372 = vpop.permute.xlu0 %371
        %373 = vrot.lane.b32.xlu0 %v294, 127
        %v374 = vpop.permute.xlu0 %373
        %375 = vrot.lane.b32.xlu0 %v295, 127
        %v376 = vpop.permute.xlu0 %375
        %377 = vrot.lane.b32.xlu0 %v296, 127
        %v378 = vpop.permute.xlu0 %377
        %379 = vrot.lane.b32.xlu0 %v297, 127
        %v380 = vpop.permute.xlu0 %379
        %381 = vrot.lane.b32.xlu0 %v298, 127
        %v382 = vpop.permute.xlu0 %381
        %383 = vrot.lane.b32.xlu0 %v299, 127
        %v384 = vpop.permute.xlu0 %383
        %385 = vrot.lane.b32.xlu0 %v300, 127
        %v386 = vpop.permute.xlu0 %385
        %387 = vrot.lane.b32.xlu0 %v301, 127
        %v388 = vpop.permute.xlu0 %387
        %389 = vrot.lane.b32.xlu0 %v302, 127
        %v390 = vpop.permute.xlu0 %389
        %391 = vrot.lane.b32.xlu0 %v303, 127
        %v392 = vpop.permute.xlu0 %391
        %393 = vrot.lane.b32.xlu0 %v304, 127
        %v394 = vpop.permute.xlu0 %393
        %395 = vrot.lane.b32.xlu0 %v305, 127
        %v396 = vpop.permute.xlu0 %395
        %397 = vrot.lane.b32.xlu0 %v306, 127
        %v398 = vpop.permute.xlu0 %397
        %399 = vrot.lane.b32.xlu0 %v307, 127
        %v400 = vpop.permute.xlu0 %399
        %401 = vrot.lane.b32.xlu0 %v308, 127
        %v402 = vpop.permute.xlu0 %401
        %403 = vrot.lane.b32.xlu0 %v309, 127
        %v404 = vpop.permute.xlu0 %403
        %405 = vrot.lane.b32.xlu0 %v310, 127
        %v406 = vpop.permute.xlu0 %405
        %v439 = vadd.f32 %v245, %v344
        %v440 = vadd.f32 %v246, %v346
        %v441 = vadd.f32 %v247, %v348
        %v442 = vadd.f32 %v248, %v350
        %v443 = vadd.f32 %v249, %v352
        %v444 = vadd.f32 %v250, %v354
        %v445 = vadd.f32 %v251, %v356
        %v446 = vadd.f32 %v252, %v358
        %v447 = vadd.f32 %v253, %v360
        %v448 = vadd.f32 %v254, %v362
        %v449 = vadd.f32 %v255, %v364
        %v450 = vadd.f32 %v256, %v366
        %v451 = vadd.f32 %v257, %v368
        %v452 = vadd.f32 %v258, %v370
        %v453 = vadd.f32 %v259, %v372
        %v454 = vadd.f32 %v260, %v374
        %v455 = vadd.f32 %v261, %v376
        %v456 = vadd.f32 %v262, %v378
        %v457 = vadd.f32 %v263, %v380
        %v458 = vadd.f32 %v264, %v382
        %v459 = vadd.f32 %v265, %v384
        %v460 = vadd.f32 %v266, %v386
        %v461 = vadd.f32 %v267, %v388
        %v462 = vadd.f32 %v268, %v390
        %v463 = vadd.f32 %v269, %v392
        %v464 = vadd.f32 %v270, %v394
        %v465 = vadd.f32 %v271, %v396
        %v466 = vadd.f32 %v272, %v398
        %v467 = vadd.f32 %v273, %v400
        %v468 = vadd.f32 %v274, %v402
        %v469 = vadd.f32 %v275, %v404
        %v470 = vadd.f32 %v276, %v406
        %s471 = sld [smem:[#allocation3 + $0x2]]
        %v472 = vstv %s471
        %v473 = vmul.f32 %v472, %v211
        %v474 = vmul.f32 %v472, %v212
        %v475 = vmul.f32 %v472, %v213
        %v476 = vmul.f32 %v472, %v214
        %v477 = vmul.f32 %v472, %v215
        %v478 = vmul.f32 %v472, %v216
        %v479 = vmul.f32 %v472, %v217
        %v480 = vmul.f32 %v472, %v218
        %v481 = vmul.f32 %v472, %v219
        %v482 = vmul.f32 %v472, %v220
        %v483 = vmul.f32 %v472, %v221
        %v484 = vmul.f32 %v472, %v222
        %v485 = vmul.f32 %v472, %v223
        %v486 = vmul.f32 %v472, %v224
        %v487 = vmul.f32 %v472, %v225
        %v488 = vmul.f32 %v472, %v226
        %v489 = vmul.f32 %v472, %v227
        %v490 = vmul.f32 %v472, %v228
        %v491 = vmul.f32 %v472, %v229
        %v492 = vmul.f32 %v472, %v230
        %v493 = vmul.f32 %v472, %v231
        %v494 = vmul.f32 %v472, %v232
        %v495 = vmul.f32 %v472, %v233
        %v496 = vmul.f32 %v472, %v234
        %v497 = vmul.f32 %v472, %v235
        %v498 = vmul.f32 %v472, %v236
        %v499 = vmul.f32 %v472, %v237
        %v500 = vmul.f32 %v472, %v238
        %v501 = vmul.f32 %v472, %v239
        %v502 = vmul.f32 %v472, %v240
        %v503 = vmul.f32 %v472, %v241
        %v504 = vmul.f32 %v472, %v242
        %537 = vrot.lane.b32.xlu0 %v473, 126
        %v538 = vpop.permute.xlu0 %537
        %539 = vrot.lane.b32.xlu0 %v474, 126
        %v540 = vpop.permute.xlu0 %539
        %541 = vrot.lane.b32.xlu0 %v475, 126
        %v542 = vpop.permute.xlu0 %541
        %543 = vrot.lane.b32.xlu0 %v476, 126
        %v544 = vpop.permute.xlu0 %543
        %545 = vrot.lane.b32.xlu0 %v477, 126
        %v546 = vpop.permute.xlu0 %545
        %547 = vrot.lane.b32.xlu0 %v478, 126
        %v548 = vpop.permute.xlu0 %547
        %549 = vrot.lane.b32.xlu0 %v479, 126
        %v550 = vpop.permute.xlu0 %549
        %551 = vrot.lane.b32.xlu0 %v480, 126
        %v552 = vpop.permute.xlu0 %551
        %553 = vrot.lane.b32.xlu0 %v481, 126
        %v554 = vpop.permute.xlu0 %553
        %555 = vrot.lane.b32.xlu0 %v482, 126
        %v556 = vpop.permute.xlu0 %555
        %557 = vrot.lane.b32.xlu0 %v483, 126
        %v558 = vpop.permute.xlu0 %557
        %559 = vrot.lane.b32.xlu0 %v484, 126
        %v560 = vpop.permute.xlu0 %559
        %561 = vrot.lane.b32.xlu0 %v485, 126
        %v562 = vpop.permute.xlu0 %561
        %563 = vrot.lane.b32.xlu0 %v486, 126
        %v564 = vpop.permute.xlu0 %563
        %565 = vrot.lane.b32.xlu0 %v487, 126
        %v566 = vpop.permute.xlu0 %565
        %567 = vrot.lane.b32.xlu0 %v488, 126
        %v568 = vpop.permute.xlu0 %567
        %569 = vrot.lane.b32.xlu0 %v489, 126
        %v570 = vpop.permute.xlu0 %569
        %571 = vrot.lane.b32.xlu0 %v490, 126
        %v572 = vpop.permute.xlu0 %571
        %573 = vrot.lane.b32.xlu0 %v491, 126
        %v574 = vpop.permute.xlu0 %573
        %575 = vrot.lane.b32.xlu0 %v492, 126
        %v576 = vpop.permute.xlu0 %575
        %577 = vrot.lane.b32.xlu0 %v493, 126
        %v578 = vpop.permute.xlu0 %577
        %579 = vrot.lane.b32.xlu0 %v494, 126
        %v580 = vpop.permute.xlu0 %579
        %581 = vrot.lane.b32.xlu0 %v495, 126
        %v582 = vpop.permute.xlu0 %581
        %583 = vrot.lane.b32.xlu0 %v496, 126
        %v584 = vpop.permute.xlu0 %583
        %585 = vrot.lane.b32.xlu0 %v497, 126
        %v586 = vpop.permute.xlu0 %585
        %587 = vrot.lane.b32.xlu0 %v498, 126
        %v588 = vpop.permute.xlu0 %587
        %589 = vrot.lane.b32.xlu0 %v499, 126
        %v590 = vpop.permute.xlu0 %589
        %591 = vrot.lane.b32.xlu0 %v500, 126
        %v592 = vpop.permute.xlu0 %591
        %593 = vrot.lane.b32.xlu0 %v501, 126
        %v594 = vpop.permute.xlu0 %593
        %595 = vrot.lane.b32.xlu0 %v502, 126
        %v596 = vpop.permute.xlu0 %595
        %597 = vrot.lane.b32.xlu0 %v503, 126
        %v598 = vpop.permute.xlu0 %597
        %599 = vrot.lane.b32.xlu0 %v504, 126
        %v600 = vpop.permute.xlu0 %599
        %v633 = vadd.f32 %v439, %v538
        %v634 = vadd.f32 %v440, %v540
        %v635 = vadd.f32 %v441, %v542
        %v636 = vadd.f32 %v442, %v544
        %v637 = vadd.f32 %v443, %v546
        %v638 = vadd.f32 %v444, %v548
        %v639 = vadd.f32 %v445, %v550
        %v640 = vadd.f32 %v446, %v552
        %v641 = vadd.f32 %v447, %v554
        %v642 = vadd.f32 %v448, %v556
        %v643 = vadd.f32 %v449, %v558
        %v644 = vadd.f32 %v450, %v560
        %v645 = vadd.f32 %v451, %v562
        %v646 = vadd.f32 %v452, %v564
        %v647 = vadd.f32 %v453, %v566
        %v648 = vadd.f32 %v454, %v568
        %v649 = vadd.f32 %v455, %v570
        %v650 = vadd.f32 %v456, %v572
        %v651 = vadd.f32 %v457, %v574
        %v652 = vadd.f32 %v458, %v576
        %v653 = vadd.f32 %v459, %v578
        %v654 = vadd.f32 %v460, %v580
        %v655 = vadd.f32 %v461, %v582
        %v656 = vadd.f32 %v462, %v584
        %v657 = vadd.f32 %v463, %v586
        %v658 = vadd.f32 %v464, %v588
        %v659 = vadd.f32 %v465, %v590
        %v660 = vadd.f32 %v466, %v592
        %v661 = vadd.f32 %v467, %v594
        %v662 = vadd.f32 %v468, %v596
        %v663 = vadd.f32 %v469, %v598
        %v664 = vadd.f32 %v470, %v600
        %v665 = vmul.f32 %v633, 0.5
        %v666 = vmul.f32 %v634, 0.5
        %v667 = vmul.f32 %v635, 0.5
        %v668 = vmul.f32 %v636, 0.5
        %v669 = vmul.f32 %v637, 0.5
        %v670 = vmul.f32 %v638, 0.5
        %v671 = vmul.f32 %v639, 0.5
        %v672 = vmul.f32 %v640, 0.5
        %v673 = vmul.f32 %v641, 0.5
        %v674 = vmul.f32 %v642, 0.5
        %v675 = vmul.f32 %v643, 0.5
        %v676 = vmul.f32 %v644, 0.5
        %v677 = vmul.f32 %v645, 0.5
        %v678 = vmul.f32 %v646, 0.5
        %v679 = vmul.f32 %v647, 0.5
        %v680 = vmul.f32 %v648, 0.5
        %v681 = vmul.f32 %v649, 0.5
        %v682 = vmul.f32 %v650, 0.5
        %v683 = vmul.f32 %v651, 0.5
        %v684 = vmul.f32 %v652, 0.5
        %v685 = vmul.f32 %v653, 0.5
        %v686 = vmul.f32 %v654, 0.5
        %v687 = vmul.f32 %v655, 0.5
        %v688 = vmul.f32 %v656, 0.5
        %v689 = vmul.f32 %v657, 0.5
        %v690 = vmul.f32 %v658, 0.5
        %v691 = vmul.f32 %v659, 0.5
        %v692 = vmul.f32 %v660, 0.5
        %v693 = vmul.f32 %v661, 0.5
        %v694 = vmul.f32 %v662, 0.5
        %v695 = vmul.f32 %v663, 0.5
        %v696 = vmul.f32 %v664, 0.5
        %s697 = sld [smem:[#allocation3 + $0x3]]
        %v698 = vstv %s697
        %v699 = vadd.f32 %v665, %v698
        %v700 = vadd.f32 %v666, %v698
        %v701 = vadd.f32 %v667, %v698
        %v702 = vadd.f32 %v668, %v698
        %v703 = vadd.f32 %v669, %v698
        %v704 = vadd.f32 %v670, %v698
        %v705 = vadd.f32 %v671, %v698
        %v706 = vadd.f32 %v672, %v698
        %v707 = vadd.f32 %v673, %v698
        %v708 = vadd.f32 %v674, %v698
        %v709 = vadd.f32 %v675, %v698
        %v710 = vadd.f32 %v676, %v698
        %v711 = vadd.f32 %v677, %v698
        %v712 = vadd.f32 %v678, %v698
        %v713 = vadd.f32 %v679, %v698
        %v714 = vadd.f32 %v680, %v698
        %v715 = vadd.f32 %v681, %v698
        %v716 = vadd.f32 %v682, %v698
        %v717 = vadd.f32 %v683, %v698
        %v718 = vadd.f32 %v684, %v698
        %v719 = vadd.f32 %v685, %v698
        %v720 = vadd.f32 %v686, %v698
        %v721 = vadd.f32 %v687, %v698
        %v722 = vadd.f32 %v688, %v698
        %v723 = vadd.f32 %v689, %v698
        %v724 = vadd.f32 %v690, %v698
        %v725 = vadd.f32 %v691, %v698
        %v726 = vadd.f32 %v692, %v698
        %v727 = vadd.f32 %v693, %v698
        %v728 = vadd.f32 %v694, %v698
        %v729 = vadd.f32 %v695, %v698
        %v730 = vadd.f32 %v696, %v698
        %v731 = vmul.f32 %v699, 0.5
        %v732 = vmul.f32 %v700, 0.5
        %v733 = vmul.f32 %v701, 0.5
        %v734 = vmul.f32 %v702, 0.5
        %v735 = vmul.f32 %v703, 0.5
        %v736 = vmul.f32 %v704, 0.5
        %v737 = vmul.f32 %v705, 0.5
        %v738 = vmul.f32 %v706, 0.5
        %v739 = vmul.f32 %v707, 0.5
        %v740 = vmul.f32 %v708, 0.5
        %v741 = vmul.f32 %v709, 0.5
        %v742 = vmul.f32 %v710, 0.5
        %v743 = vmul.f32 %v711, 0.5
        %v744 = vmul.f32 %v712, 0.5
        %v745 = vmul.f32 %v713, 0.5
        %v746 = vmul.f32 %v714, 0.5
        %v747 = vmul.f32 %v715, 0.5
        %v748 = vmul.f32 %v716, 0.5
        %v749 = vmul.f32 %v717, 0.5
        %v750 = vmul.f32 %v718, 0.5
        %v751 = vmul.f32 %v719, 0.5
        %v752 = vmul.f32 %v720, 0.5
        %v753 = vmul.f32 %v721, 0.5
        %v754 = vmul.f32 %v722, 0.5
        %v755 = vmul.f32 %v723, 0.5
        %v756 = vmul.f32 %v724, 0.5
        %v757 = vmul.f32 %v725, 0.5
        %v758 = vmul.f32 %v726, 0.5
        %v759 = vmul.f32 %v727, 0.5
        %v760 = vmul.f32 %v728, 0.5
        %v761 = vmul.f32 %v729, 0.5
        %v762 = vmul.f32 %v730, 0.5
        %v763 = vadd.f32 %v731, 1.0
        %v764 = vadd.f32 %v732, 1.0
        %v765 = vadd.f32 %v733, 1.0
        %v766 = vadd.f32 %v734, 1.0
        %v767 = vadd.f32 %v735, 1.0
        %v768 = vadd.f32 %v736, 1.0
        %v769 = vadd.f32 %v737, 1.0
        %v770 = vadd.f32 %v738, 1.0
        %v771 = vadd.f32 %v739, 1.0
        %v772 = vadd.f32 %v740, 1.0
        %v773 = vadd.f32 %v741, 1.0
        %v774 = vadd.f32 %v742, 1.0
        %v775 = vadd.f32 %v743, 1.0
        %v776 = vadd.f32 %v744, 1.0
        %v777 = vadd.f32 %v745, 1.0
        %v778 = vadd.f32 %v746, 1.0
        %v779 = vadd.f32 %v747, 1.0
        %v780 = vadd.f32 %v748, 1.0
        %v781 = vadd.f32 %v749, 1.0
        %v782 = vadd.f32 %v750, 1.0
        %v783 = vadd.f32 %v751, 1.0
        %v784 = vadd.f32 %v752, 1.0
        %v785 = vadd.f32 %v753, 1.0
        %v786 = vadd.f32 %v754, 1.0
        %v787 = vadd.f32 %v755, 1.0
        %v788 = vadd.f32 %v756, 1.0
        %v789 = vadd.f32 %v757, 1.0
        %v790 = vadd.f32 %v758, 1.0
        %v791 = vadd.f32 %v759, 1.0
        %v792 = vadd.f32 %v760, 1.0
        %v793 = vadd.f32 %v761, 1.0
        %v794 = vadd.f32 %v762, 1.0
        %796 = vset.pattern.permute.xlu0 0
        %797 = vperm.xlu0 %796, %v763
        %v798 = vpop.permute.xlu0 %797
        %801 = vset.pattern.permute.xlu0 0
        %802 = vperm.xlu0 %801, %v764
        %v803 = vpop.permute.xlu0 %802
        %806 = vset.pattern.permute.xlu0 0
        %807 = vperm.xlu0 %806, %v765
        %v808 = vpop.permute.xlu0 %807
        %811 = vset.pattern.permute.xlu0 0
        %812 = vperm.xlu0 %811, %v766
        %v813 = vpop.permute.xlu0 %812
        %816 = vset.pattern.permute.xlu0 0
        %817 = vperm.xlu0 %816, %v767
        %v818 = vpop.permute.xlu0 %817
        %821 = vset.pattern.permute.xlu0 0
        %822 = vperm.xlu0 %821, %v768
        %v823 = vpop.permute.xlu0 %822
        %826 = vset.pattern.permute.xlu0 0
        %827 = vperm.xlu0 %826, %v769
        %v828 = vpop.permute.xlu0 %827
        %831 = vset.pattern.permute.xlu0 0
        %832 = vperm.xlu0 %831, %v770
        %v833 = vpop.permute.xlu0 %832
        %836 = vset.pattern.permute.xlu0 0
        %837 = vperm.xlu0 %836, %v771
        %v838 = vpop.permute.xlu0 %837
        %841 = vset.pattern.permute.xlu0 0
        %842 = vperm.xlu0 %841, %v772
        %v843 = vpop.permute.xlu0 %842
        %846 = vset.pattern.permute.xlu0 0
        %847 = vperm.xlu0 %846, %v773
        %v848 = vpop.permute.xlu0 %847
        %851 = vset.pattern.permute.xlu0 0
        %852 = vperm.xlu0 %851, %v774
        %v853 = vpop.permute.xlu0 %852
        %856 = vset.pattern.permute.xlu0 0
        %857 = vperm.xlu0 %856, %v775
        %v858 = vpop.permute.xlu0 %857
        %861 = vset.pattern.permute.xlu0 0
        %862 = vperm.xlu0 %861, %v776
        %v863 = vpop.permute.xlu0 %862
        %866 = vset.pattern.permute.xlu0 0
        %867 = vperm.xlu0 %866, %v777
        %v868 = vpop.permute.xlu0 %867
        %871 = vset.pattern.permute.xlu0 0
        %872 = vperm.xlu0 %871, %v778
        %v873 = vpop.permute.xlu0 %872
        %876 = vset.pattern.permute.xlu0 0
        %877 = vperm.xlu0 %876, %v779
        %v878 = vpop.permute.xlu0 %877
        %881 = vset.pattern.permute.xlu0 0
        %882 = vperm.xlu0 %881, %v780
        %v883 = vpop.permute.xlu0 %882
        %886 = vset.pattern.permute.xlu0 0
        %887 = vperm.xlu0 %886, %v781
        %v888 = vpop.permute.xlu0 %887
        %891 = vset.pattern.permute.xlu0 0
        %892 = vperm.xlu0 %891, %v782
        %v893 = vpop.permute.xlu0 %892
        %896 = vset.pattern.permute.xlu0 0
        %897 = vperm.xlu0 %896, %v783
        %v898 = vpop.permute.xlu0 %897
        %901 = vset.pattern.permute.xlu0 0
        %902 = vperm.xlu0 %901, %v784
        %v903 = vpop.permute.xlu0 %902
        %906 = vset.pattern.permute.xlu0 0
        %907 = vperm.xlu0 %906, %v785
        %v908 = vpop.permute.xlu0 %907
        %911 = vset.pattern.permute.xlu0 0
        %912 = vperm.xlu0 %911, %v786
        %v913 = vpop.permute.xlu0 %912
        %916 = vset.pattern.permute.xlu0 0
        %917 = vperm.xlu0 %916, %v787
        %v918 = vpop.permute.xlu0 %917
        %921 = vset.pattern.permute.xlu0 0
        %922 = vperm.xlu0 %921, %v788
        %v923 = vpop.permute.xlu0 %922
        %926 = vset.pattern.permute.xlu0 0
        %927 = vperm.xlu0 %926, %v789
        %v928 = vpop.permute.xlu0 %927
        %931 = vset.pattern.permute.xlu0 0
        %932 = vperm.xlu0 %931, %v790
        %v933 = vpop.permute.xlu0 %932
        %936 = vset.pattern.permute.xlu0 0
        %937 = vperm.xlu0 %936, %v791
        %v938 = vpop.permute.xlu0 %937
        %941 = vset.pattern.permute.xlu0 0
        %942 = vperm.xlu0 %941, %v792
        %v943 = vpop.permute.xlu0 %942
        %946 = vset.pattern.permute.xlu0 0
        %947 = vperm.xlu0 %946, %v793
        %v948 = vpop.permute.xlu0 %947
        %951 = vset.pattern.permute.xlu0 0
        %952 = vperm.xlu0 %951, %v794
        %v953 = vpop.permute.xlu0 %952
        %v955 = vmul.f32 %v211, %v798
        %v956 = vmul.f32 %v212, %v803
        %v957 = vmul.f32 %v213, %v808
        %v958 = vmul.f32 %v214, %v813
        %v959 = vmul.f32 %v215, %v818
        %v960 = vmul.f32 %v216, %v823
        %v961 = vmul.f32 %v217, %v828
        %v962 = vmul.f32 %v218, %v833
        %v963 = vmul.f32 %v219, %v838
        %v964 = vmul.f32 %v220, %v843
        %v965 = vmul.f32 %v221, %v848
        %v966 = vmul.f32 %v222, %v853
        %v967 = vmul.f32 %v223, %v858
        %v968 = vmul.f32 %v224, %v863
        %v969 = vmul.f32 %v225, %v868
        %v970 = vmul.f32 %v226, %v873
        %v971 = vmul.f32 %v227, %v878
        %v972 = vmul.f32 %v228, %v883
        %v973 = vmul.f32 %v229, %v888
        %v974 = vmul.f32 %v230, %v893
        %v975 = vmul.f32 %v231, %v898
        %v976 = vmul.f32 %v232, %v903
        %v977 = vmul.f32 %v233, %v908
        %v978 = vmul.f32 %v234, %v913
        %v979 = vmul.f32 %v235, %v918
        %v980 = vmul.f32 %v236, %v923
        %v981 = vmul.f32 %v237, %v928
        %v982 = vmul.f32 %v238, %v933
        %v983 = vmul.f32 %v239, %v938
        %v984 = vmul.f32 %v240, %v943
        %v985 = vmul.f32 %v241, %v948
        %v986 = vmul.f32 %v242, %v953
        %vm1019 = vcmask 1040384
        %v1020 = vrot.slane %v955, 7
        %v1021 = vrot.slane %v956, 7
        %v1022 = vsel %vm1019, %v1020, %v1021
        %v1023 = vrot.slane %v957, 7
        %v1024 = vrot.slane %v958, 7
        %v1025 = vsel %vm1019, %v1023, %v1024
        %v1026 = vrot.slane %v959, 7
        %v1027 = vrot.slane %v960, 7
        %v1028 = vsel %vm1019, %v1026, %v1027
        %v1029 = vrot.slane %v961, 7
        %v1030 = vrot.slane %v962, 7
        %v1031 = vsel %vm1019, %v1029, %v1030
        %v1032 = vrot.slane %v963, 7
        %v1033 = vrot.slane %v964, 7
        %v1034 = vsel %vm1019, %v1032, %v1033
        %v1035 = vrot.slane %v965, 7
        %v1036 = vrot.slane %v966, 7
        %v1037 = vsel %vm1019, %v1035, %v1036
        %v1038 = vrot.slane %v967, 7
        %v1039 = vrot.slane %v968, 7
        %v1040 = vsel %vm1019, %v1038, %v1039
        %v1041 = vrot.slane %v969, 7
        %v1042 = vrot.slane %v970, 7
        %v1043 = vsel %vm1019, %v1041, %v1042
        %v1044 = vrot.slane %v971, 7
        %v1045 = vrot.slane %v972, 7
        %v1046 = vsel %vm1019, %v1044, %v1045
        %v1047 = vrot.slane %v973, 7
        %v1048 = vrot.slane %v974, 7
        %v1049 = vsel %vm1019, %v1047, %v1048
        %v1050 = vrot.slane %v975, 7
        %v1051 = vrot.slane %v976, 7
        %v1052 = vsel %vm1019, %v1050, %v1051
        %v1053 = vrot.slane %v977, 7
        %v1054 = vrot.slane %v978, 7
        %v1055 = vsel %vm1019, %v1053, %v1054
        %v1056 = vrot.slane %v979, 7
        %v1057 = vrot.slane %v980, 7
        %v1058 = vsel %vm1019, %v1056, %v1057
        %v1059 = vrot.slane %v981, 7
        %v1060 = vrot.slane %v982, 7
        %v1061 = vsel %vm1019, %v1059, %v1060
        %v1062 = vrot.slane %v983, 7
        %v1063 = vrot.slane %v984, 7
        %v1064 = vsel %vm1019, %v1062, %v1063
        %v1065 = vrot.slane %v985, 7
        %v1066 = vrot.slane %v986, 7
        %v1067 = vsel %vm1019, %v1065, %v1066
        %v1115 = vsel %vm1019, 0.0, %v1020
        %v1116 = vsel %vm1019, 0.0, %v1023
        %v1117 = vsel %vm1019, 0.0, %v1026
        %v1118 = vsel %vm1019, 0.0, %v1029
        %v1119 = vsel %vm1019, 0.0, %v1032
        %v1120 = vsel %vm1019, 0.0, %v1035
        %v1121 = vsel %vm1019, 0.0, %v1038
        %v1122 = vsel %vm1019, 0.0, %v1041
        %v1123 = vsel %vm1019, 0.0, %v1044
        %v1124 = vsel %vm1019, 0.0, %v1047
        %v1125 = vsel %vm1019, 0.0, %v1050
        %v1126 = vsel %vm1019, 0.0, %v1053
        %v1127 = vsel %vm1019, 0.0, %v1056
        %v1128 = vsel %vm1019, 0.0, %v1059
        %v1129 = vsel %vm1019, 0.0, %v1062
        %v1130 = vsel %vm1019, 0.0, %v1065
        %v1131 = vsel %vm1019, %v1021, 0.0
        %v1132 = vsel %vm1019, %v1024, 0.0
        %v1133 = vsel %vm1019, %v1027, 0.0
        %v1134 = vsel %vm1019, %v1030, 0.0
        %v1135 = vsel %vm1019, %v1033, 0.0
        %v1136 = vsel %vm1019, %v1036, 0.0
        %v1137 = vsel %vm1019, %v1039, 0.0
        %v1138 = vsel %vm1019, %v1042, 0.0
        %v1139 = vsel %vm1019, %v1045, 0.0
        %v1140 = vsel %vm1019, %v1048, 0.0
        %v1141 = vsel %vm1019, %v1051, 0.0
        %v1142 = vsel %vm1019, %v1054, 0.0
        %v1143 = vsel %vm1019, %v1057, 0.0
        %v1144 = vsel %vm1019, %v1060, 0.0
        %v1145 = vsel %vm1019, %v1063, 0.0
        %v1146 = vsel %vm1019, %v1066, 0.0
        %vm1178 = vcmask 1046528
        %v1179 = vrot.slane 0.0, 1
        %v1180 = vsel %vm1178, %v1179, %v1179
        %v1181 = vrot.slane %v1115, 1
        %v1182 = vrot.slane %v1022, 1
        %v1183 = vsel %vm1178, %v1181, %v1182
        %v1184 = vrot.slane %v1131, 1
        %v1185 = vsel %vm1178, %v1182, %v1184
        %v1186 = vrot.slane %v1116, 1
        %v1187 = vrot.slane %v1025, 1
        %v1188 = vsel %vm1178, %v1186, %v1187
        %v1189 = vrot.slane %v1132, 1
        %v1190 = vsel %vm1178, %v1187, %v1189
        %v1191 = vrot.slane %v1117, 1
        %v1192 = vrot.slane %v1028, 1
        %v1193 = vsel %vm1178, %v1191, %v1192
        %v1194 = vrot.slane %v1133, 1
        %v1195 = vsel %vm1178, %v1192, %v1194
        %v1196 = vrot.slane %v1118, 1
        %v1197 = vrot.slane %v1031, 1
        %v1198 = vsel %vm1178, %v1196, %v1197
        %v1199 = vrot.slane %v1134, 1
        %v1200 = vsel %vm1178, %v1197, %v1199
        %v1201 = vrot.slane %v1119, 1
        %v1202 = vrot.slane %v1034, 1
        %v1203 = vsel %vm1178, %v1201, %v1202
        %v1204 = vrot.slane %v1135, 1
        %v1205 = vsel %vm1178, %v1202, %v1204
        %v1206 = vrot.slane %v1120, 1
        %v1207 = vrot.slane %v1037, 1
        %v1208 = vsel %vm1178, %v1206, %v1207
        %v1209 = vrot.slane %v1136, 1
        %v1210 = vsel %vm1178, %v1207, %v1209
        %v1211 = vrot.slane %v1121, 1
        %v1212 = vrot.slane %v1040, 1
        %v1213 = vsel %vm1178, %v1211, %v1212
        %v1214 = vrot.slane %v1137, 1
        %v1215 = vsel %vm1178, %v1212, %v1214
        %v1216 = vrot.slane %v1122, 1
        %v1217 = vrot.slane %v1043, 1
        %v1218 = vsel %vm1178, %v1216, %v1217
        %v1219 = vrot.slane %v1138, 1
        %v1220 = vsel %vm1178, %v1217, %v1219
        %v1221 = vrot.slane %v1123, 1
        %v1222 = vrot.slane %v1046, 1
        %v1223 = vsel %vm1178, %v1221, %v1222
        %v1224 = vrot.slane %v1139, 1
        %v1225 = vsel %vm1178, %v1222, %v1224
        %v1226 = vrot.slane %v1124, 1
        %v1227 = vrot.slane %v1049, 1
        %v1228 = vsel %vm1178, %v1226, %v1227
        %v1229 = vrot.slane %v1140, 1
        %v1230 = vsel %vm1178, %v1227, %v1229
        %v1231 = vrot.slane %v1125, 1
        %v1232 = vrot.slane %v1052, 1
        %v1233 = vsel %vm1178, %v1231, %v1232
        %v1234 = vrot.slane %v1141, 1
        %v1235 = vsel %vm1178, %v1232, %v1234
        %v1236 = vrot.slane %v1126, 1
        %v1237 = vrot.slane %v1055, 1
        %v1238 = vsel %vm1178, %v1236, %v1237
        %v1239 = vrot.slane %v1142, 1
        %v1240 = vsel %vm1178, %v1237, %v1239
        %v1241 = vrot.slane %v1127, 1
        %v1242 = vrot.slane %v1058, 1
        %v1243 = vsel %vm1178, %v1241, %v1242
        %v1244 = vrot.slane %v1143, 1
        %v1245 = vsel %vm1178, %v1242, %v1244
        %v1246 = vrot.slane %v1128, 1
        %v1247 = vrot.slane %v1061, 1
        %v1248 = vsel %vm1178, %v1246, %v1247
        %v1249 = vrot.slane %v1144, 1
        %v1250 = vsel %vm1178, %v1247, %v1249
        %v1251 = vrot.slane %v1129, 1
        %v1252 = vrot.slane %v1064, 1
        %v1253 = vsel %vm1178, %v1251, %v1252
        %v1254 = vrot.slane %v1145, 1
        %v1255 = vsel %vm1178, %v1252, %v1254
        %vm1256 = vcmask 1045504
        %v1257 = vrot.slane 0.0, 2
        %v1258 = vsel %vm1256, %v1257, %v1257
        %v1259 = vrot.slane %v1115, 2
        %v1260 = vrot.slane %v1022, 2
        %v1261 = vsel %vm1256, %v1259, %v1260
        %v1262 = vrot.slane %v1131, 2
        %v1263 = vsel %vm1256, %v1260, %v1262
        %v1264 = vrot.slane %v1116, 2
        %v1265 = vrot.slane %v1025, 2
        %v1266 = vsel %vm1256, %v1264, %v1265
        %v1267 = vrot.slane %v1132, 2
        %v1268 = vsel %vm1256, %v1265, %v1267
        %v1269 = vrot.slane %v1117, 2
        %v1270 = vrot.slane %v1028, 2
        %v1271 = vsel %vm1256, %v1269, %v1270
        %v1272 = vrot.slane %v1133, 2
        %v1273 = vsel %vm1256, %v1270, %v1272
        %v1274 = vrot.slane %v1118, 2
        %v1275 = vrot.slane %v1031, 2
        %v1276 = vsel %vm1256, %v1274, %v1275
        %v1277 = vrot.slane %v1134, 2
        %v1278 = vsel %vm1256, %v1275, %v1277
        %v1279 = vrot.slane %v1119, 2
        %v1280 = vrot.slane %v1034, 2
        %v1281 = vsel %vm1256, %v1279, %v1280
        %v1282 = vrot.slane %v1135, 2
        %v1283 = vsel %vm1256, %v1280, %v1282
        %v1284 = vrot.slane %v1120, 2
        %v1285 = vrot.slane %v1037, 2
        %v1286 = vsel %vm1256, %v1284, %v1285
        %v1287 = vrot.slane %v1136, 2
        %v1288 = vsel %vm1256, %v1285, %v1287
        %v1289 = vrot.slane %v1121, 2
        %v1290 = vrot.slane %v1040, 2
        %v1291 = vsel %vm1256, %v1289, %v1290
        %v1292 = vrot.slane %v1137, 2
        %v1293 = vsel %vm1256, %v1290, %v1292
        %v1294 = vrot.slane %v1122, 2
        %v1295 = vrot.slane %v1043, 2
        %v1296 = vsel %vm1256, %v1294, %v1295
        %v1297 = vrot.slane %v1138, 2
        %v1298 = vsel %vm1256, %v1295, %v1297
        %v1299 = vrot.slane %v1123, 2
        %v1300 = vrot.slane %v1046, 2
        %v1301 = vsel %vm1256, %v1299, %v1300
        %v1302 = vrot.slane %v1139, 2
        %v1303 = vsel %vm1256, %v1300, %v1302
        %v1304 = vrot.slane %v1124, 2
        %v1305 = vrot.slane %v1049, 2
        %v1306 = vsel %vm1256, %v1304, %v1305
        %v1307 = vrot.slane %v1140, 2
        %v1308 = vsel %vm1256, %v1305, %v1307
        %v1309 = vrot.slane %v1125, 2
        %v1310 = vrot.slane %v1052, 2
        %v1311 = vsel %vm1256, %v1309, %v1310
        %v1312 = vrot.slane %v1141, 2
        %v1313 = vsel %vm1256, %v1310, %v1312
        %v1314 = vrot.slane %v1126, 2
        %v1315 = vrot.slane %v1055, 2
        %v1316 = vsel %vm1256, %v1314, %v1315
        %v1317 = vrot.slane %v1142, 2
        %v1318 = vsel %vm1256, %v1315, %v1317
        %v1319 = vrot.slane %v1127, 2
        %v1320 = vrot.slane %v1058, 2
        %v1321 = vsel %vm1256, %v1319, %v1320
        %v1322 = vrot.slane %v1143, 2
        %v1323 = vsel %vm1256, %v1320, %v1322
        %v1324 = vrot.slane %v1128, 2
        %v1325 = vrot.slane %v1061, 2
        %v1326 = vsel %vm1256, %v1324, %v1325
        %v1327 = vrot.slane %v1144, 2
        %v1328 = vsel %vm1256, %v1325, %v1327
        %v1329 = vrot.slane %v1129, 2
        %v1330 = vrot.slane %v1064, 2
        %v1331 = vsel %vm1256, %v1329, %v1330
        %v1332 = vrot.slane %v1145, 2
        %v1333 = vsel %vm1256, %v1330, %v1332
        %v1336 = vrot.slane %v1130, 1
        %v1337 = vrot.slane %v1067, 1
        %v1338 = vsel %vm1178, %v1336, %v1337
        %v1339 = vrot.slane %v1146, 1
        %v1340 = vsel %vm1178, %v1337, %v1339
        %v1341 = vrot.slane %v1130, 2
        %v1342 = vrot.slane %v1067, 2
        %v1343 = vsel %vm1256, %v1341, %v1342
        %v1344 = vrot.slane %v1146, 2
        %v1345 = vsel %vm1256, %v1342, %v1344
        %1346 = vrot.lane.b32.xlu0 %v1180, 3
        %v1347 = vpop.permute.xlu0 %1346
        %1348 = vrot.lane.b32.xlu0 %v1183, 3
        %v1349 = vpop.permute.xlu0 %1348
        %1350 = vrot.lane.b32.xlu0 %v1185, 3
        %v1351 = vpop.permute.xlu0 %1350
        %1352 = vrot.lane.b32.xlu0 %v1188, 3
        %v1353 = vpop.permute.xlu0 %1352
        %1354 = vrot.lane.b32.xlu0 %v1190, 3
        %v1355 = vpop.permute.xlu0 %1354
        %1356 = vrot.lane.b32.xlu0 %v1193, 3
        %v1357 = vpop.permute.xlu0 %1356
        %1358 = vrot.lane.b32.xlu0 %v1195, 3
        %v1359 = vpop.permute.xlu0 %1358
        %1360 = vrot.lane.b32.xlu0 %v1198, 3
        %v1361 = vpop.permute.xlu0 %1360
        %1362 = vrot.lane.b32.xlu0 %v1200, 3
        %v1363 = vpop.permute.xlu0 %1362
        %1364 = vrot.lane.b32.xlu0 %v1203, 3
        %v1365 = vpop.permute.xlu0 %1364
        %1366 = vrot.lane.b32.xlu0 %v1205, 3
        %v1367 = vpop.permute.xlu0 %1366
        %1368 = vrot.lane.b32.xlu0 %v1208, 3
        %v1369 = vpop.permute.xlu0 %1368
        %1370 = vrot.lane.b32.xlu0 %v1210, 3
        %v1371 = vpop.permute.xlu0 %1370
        %1372 = vrot.lane.b32.xlu0 %v1213, 3
        %v1373 = vpop.permute.xlu0 %1372
        %1374 = vrot.lane.b32.xlu0 %v1215, 3
        %v1375 = vpop.permute.xlu0 %1374
        %1376 = vrot.lane.b32.xlu0 %v1218, 3
        %v1377 = vpop.permute.xlu0 %1376
        %1378 = vrot.lane.b32.xlu0 %v1220, 3
        %v1379 = vpop.permute.xlu0 %1378
        %1380 = vrot.lane.b32.xlu0 %v1223, 3
        %v1381 = vpop.permute.xlu0 %1380
        %1382 = vrot.lane.b32.xlu0 %v1225, 3
        %v1383 = vpop.permute.xlu0 %1382
        %1384 = vrot.lane.b32.xlu0 %v1228, 3
        %v1385 = vpop.permute.xlu0 %1384
        %1386 = vrot.lane.b32.xlu0 %v1230, 3
        %v1387 = vpop.permute.xlu0 %1386
        %1388 = vrot.lane.b32.xlu0 %v1233, 3
        %v1389 = vpop.permute.xlu0 %1388
        %1390 = vrot.lane.b32.xlu0 %v1235, 3
        %v1391 = vpop.permute.xlu0 %1390
        %1392 = vrot.lane.b32.xlu0 %v1238, 3
        %v1393 = vpop.permute.xlu0 %1392
        %1394 = vrot.lane.b32.xlu0 %v1240, 3
        %v1395 = vpop.permute.xlu0 %1394
        %1396 = vrot.lane.b32.xlu0 %v1243, 3
        %v1397 = vpop.permute.xlu0 %1396
        %1398 = vrot.lane.b32.xlu0 %v1245, 3
        %v1399 = vpop.permute.xlu0 %1398
        %1400 = vrot.lane.b32.xlu0 %v1248, 3
        %v1401 = vpop.permute.xlu0 %1400
        %1402 = vrot.lane.b32.xlu0 %v1250, 3
        %v1403 = vpop.permute.xlu0 %1402
        %1404 = vrot.lane.b32.xlu0 %v1253, 3
        %v1405 = vpop.permute.xlu0 %1404
        %1406 = vrot.lane.b32.xlu0 %v1255, 3
        %v1407 = vpop.permute.xlu0 %1406
        %1439 = vrot.lane.b32.xlu0 %v1258, 6
        %v1440 = vpop.permute.xlu0 %1439
        %1441 = vrot.lane.b32.xlu0 %v1261, 6
        %v1442 = vpop.permute.xlu0 %1441
        %1443 = vrot.lane.b32.xlu0 %v1263, 6
        %v1444 = vpop.permute.xlu0 %1443
        %1445 = vrot.lane.b32.xlu0 %v1266, 6
        %v1446 = vpop.permute.xlu0 %1445
        %1447 = vrot.lane.b32.xlu0 %v1268, 6
        %v1448 = vpop.permute.xlu0 %1447
        %1449 = vrot.lane.b32.xlu0 %v1271, 6
        %v1450 = vpop.permute.xlu0 %1449
        %1451 = vrot.lane.b32.xlu0 %v1273, 6
        %v1452 = vpop.permute.xlu0 %1451
        %1453 = vrot.lane.b32.xlu0 %v1276, 6
        %v1454 = vpop.permute.xlu0 %1453
        %1455 = vrot.lane.b32.xlu0 %v1278, 6
        %v1456 = vpop.permute.xlu0 %1455
        %1457 = vrot.lane.b32.xlu0 %v1281, 6
        %v1458 = vpop.permute.xlu0 %1457
        %1459 = vrot.lane.b32.xlu0 %v1283, 6
        %v1460 = vpop.permute.xlu0 %1459
        %1461 = vrot.lane.b32.xlu0 %v1286, 6
        %v1462 = vpop.permute.xlu0 %1461
        %1463 = vrot.lane.b32.xlu0 %v1288, 6
        %v1464 = vpop.permute.xlu0 %1463
        %1465 = vrot.lane.b32.xlu0 %v1291, 6
        %v1466 = vpop.permute.xlu0 %1465
        %1467 = vrot.lane.b32.xlu0 %v1293, 6
        %v1468 = vpop.permute.xlu0 %1467
        %1469 = vrot.lane.b32.xlu0 %v1296, 6
        %v1470 = vpop.permute.xlu0 %1469
        %1471 = vrot.lane.b32.xlu0 %v1298, 6
        %v1472 = vpop.permute.xlu0 %1471
        %1473 = vrot.lane.b32.xlu0 %v1301, 6
        %v1474 = vpop.permute.xlu0 %1473
        %1475 = vrot.lane.b32.xlu0 %v1303, 6
        %v1476 = vpop.permute.xlu0 %1475
        %1477 = vrot.lane.b32.xlu0 %v1306, 6
        %v1478 = vpop.permute.xlu0 %1477
        %1479 = vrot.lane.b32.xlu0 %v1308, 6
        %v1480 = vpop.permute.xlu0 %1479
        %1481 = vrot.lane.b32.xlu0 %v1311, 6
        %v1482 = vpop.permute.xlu0 %1481
        %1483 = vrot.lane.b32.xlu0 %v1313, 6
        %v1484 = vpop.permute.xlu0 %1483
        %1485 = vrot.lane.b32.xlu0 %v1316, 6
        %v1486 = vpop.permute.xlu0 %1485
        %1487 = vrot.lane.b32.xlu0 %v1318, 6
        %v1488 = vpop.permute.xlu0 %1487
        %1489 = vrot.lane.b32.xlu0 %v1321, 6
        %v1490 = vpop.permute.xlu0 %1489
        %1491 = vrot.lane.b32.xlu0 %v1323, 6
        %v1492 = vpop.permute.xlu0 %1491
        %1493 = vrot.lane.b32.xlu0 %v1326, 6
        %v1494 = vpop.permute.xlu0 %1493
        %1495 = vrot.lane.b32.xlu0 %v1328, 6
        %v1496 = vpop.permute.xlu0 %1495
        %1497 = vrot.lane.b32.xlu0 %v1331, 6
        %v1498 = vpop.permute.xlu0 %1497
        %1499 = vrot.lane.b32.xlu0 %v1333, 6
        %v1500 = vpop.permute.xlu0 %1499
        %1532 = vrot.lane.b32.xlu0 %v1115, 9
        %v1533 = vpop.permute.xlu0 %1532
        %1534 = vrot.lane.b32.xlu0 %v1022, 9
        %v1535 = vpop.permute.xlu0 %1534
        %1536 = vrot.lane.b32.xlu0 %v1116, 9
        %v1537 = vpop.permute.xlu0 %1536
        %1538 = vrot.lane.b32.xlu0 %v1025, 9
        %v1539 = vpop.permute.xlu0 %1538
        %1540 = vrot.lane.b32.xlu0 %v1117, 9
        %v1541 = vpop.permute.xlu0 %1540
        %1542 = vrot.lane.b32.xlu0 %v1028, 9
        %v1543 = vpop.permute.xlu0 %1542
        %1544 = vrot.lane.b32.xlu0 %v1118, 9
        %v1545 = vpop.permute.xlu0 %1544
        %1546 = vrot.lane.b32.xlu0 %v1031, 9
        %v1547 = vpop.permute.xlu0 %1546
        %1548 = vrot.lane.b32.xlu0 %v1119, 9
        %v1549 = vpop.permute.xlu0 %1548
        %1550 = vrot.lane.b32.xlu0 %v1034, 9
        %v1551 = vpop.permute.xlu0 %1550
        %1552 = vrot.lane.b32.xlu0 %v1120, 9
        %v1553 = vpop.permute.xlu0 %1552
        %1554 = vrot.lane.b32.xlu0 %v1037, 9
        %v1555 = vpop.permute.xlu0 %1554
        %1556 = vrot.lane.b32.xlu0 %v1121, 9
        %v1557 = vpop.permute.xlu0 %1556
        %1558 = vrot.lane.b32.xlu0 %v1040, 9
        %v1559 = vpop.permute.xlu0 %1558
        %1560 = vrot.lane.b32.xlu0 %v1122, 9
        %v1561 = vpop.permute.xlu0 %1560
        %1562 = vrot.lane.b32.xlu0 %v1043, 9
        %v1563 = vpop.permute.xlu0 %1562
        %1564 = vrot.lane.b32.xlu0 %v1123, 9
        %v1565 = vpop.permute.xlu0 %1564
        %1566 = vrot.lane.b32.xlu0 %v1046, 9
        %v1567 = vpop.permute.xlu0 %1566
        %1568 = vrot.lane.b32.xlu0 %v1124, 9
        %v1569 = vpop.permute.xlu0 %1568
        %1570 = vrot.lane.b32.xlu0 %v1049, 9
        %v1571 = vpop.permute.xlu0 %1570
        %1572 = vrot.lane.b32.xlu0 %v1125, 9
        %v1573 = vpop.permute.xlu0 %1572
        %1574 = vrot.lane.b32.xlu0 %v1052, 9
        %v1575 = vpop.permute.xlu0 %1574
        %1576 = vrot.lane.b32.xlu0 %v1126, 9
        %v1577 = vpop.permute.xlu0 %1576
        %1578 = vrot.lane.b32.xlu0 %v1055, 9
        %v1579 = vpop.permute.xlu0 %1578
        %1580 = vrot.lane.b32.xlu0 %v1127, 9
        %v1581 = vpop.permute.xlu0 %1580
        %1582 = vrot.lane.b32.xlu0 %v1058, 9
        %v1583 = vpop.permute.xlu0 %1582
        %1584 = vrot.lane.b32.xlu0 %v1128, 9
        %v1585 = vpop.permute.xlu0 %1584
        %1586 = vrot.lane.b32.xlu0 %v1061, 9
        %v1587 = vpop.permute.xlu0 %1586
        %1588 = vrot.lane.b32.xlu0 %v1129, 9
        %v1589 = vpop.permute.xlu0 %1588
        %1590 = vrot.lane.b32.xlu0 %v1064, 9
        %v1591 = vpop.permute.xlu0 %1590
        %1592 = vrot.lane.b32.xlu0 %v1130, 9
        %v1593 = vpop.permute.xlu0 %1592
        %1594 = vrot.lane.b32.xlu0 %v1067, 9
        %v1595 = vpop.permute.xlu0 %1594
        %1628 = vrot.lane.b32.xlu0 %v1183, 12
        %v1629 = vpop.permute.xlu0 %1628
        %1630 = vrot.lane.b32.xlu0 %v1185, 12
        %v1631 = vpop.permute.xlu0 %1630
        %1632 = vrot.lane.b32.xlu0 %v1188, 12
        %v1633 = vpop.permute.xlu0 %1632
        %1634 = vrot.lane.b32.xlu0 %v1190, 12
        %v1635 = vpop.permute.xlu0 %1634
        %1636 = vrot.lane.b32.xlu0 %v1193, 12
        %v1637 = vpop.permute.xlu0 %1636
        %1638 = vrot.lane.b32.xlu0 %v1195, 12
        %v1639 = vpop.permute.xlu0 %1638
        %1640 = vrot.lane.b32.xlu0 %v1198, 12
        %v1641 = vpop.permute.xlu0 %1640
        %1642 = vrot.lane.b32.xlu0 %v1200, 12
        %v1643 = vpop.permute.xlu0 %1642
        %1644 = vrot.lane.b32.xlu0 %v1203, 12
        %v1645 = vpop.permute.xlu0 %1644
        %1646 = vrot.lane.b32.xlu0 %v1205, 12
        %v1647 = vpop.permute.xlu0 %1646
        %1648 = vrot.lane.b32.xlu0 %v1208, 12
        %v1649 = vpop.permute.xlu0 %1648
        %1650 = vrot.lane.b32.xlu0 %v1210, 12
        %v1651 = vpop.permute.xlu0 %1650
        %1652 = vrot.lane.b32.xlu0 %v1213, 12
        %v1653 = vpop.permute.xlu0 %1652
        %1654 = vrot.lane.b32.xlu0 %v1215, 12
        %v1655 = vpop.permute.xlu0 %1654
        %1656 = vrot.lane.b32.xlu0 %v1218, 12
        %v1657 = vpop.permute.xlu0 %1656
        %1658 = vrot.lane.b32.xlu0 %v1220, 12
        %v1659 = vpop.permute.xlu0 %1658
        %1660 = vrot.lane.b32.xlu0 %v1223, 12
        %v1661 = vpop.permute.xlu0 %1660
        %1662 = vrot.lane.b32.xlu0 %v1225, 12
        %v1663 = vpop.permute.xlu0 %1662
        %1664 = vrot.lane.b32.xlu0 %v1228, 12
        %v1665 = vpop.permute.xlu0 %1664
        %1666 = vrot.lane.b32.xlu0 %v1230, 12
        %v1667 = vpop.permute.xlu0 %1666
        %1668 = vrot.lane.b32.xlu0 %v1233, 12
        %v1669 = vpop.permute.xlu0 %1668
        %1670 = vrot.lane.b32.xlu0 %v1235, 12
        %v1671 = vpop.permute.xlu0 %1670
        %1672 = vrot.lane.b32.xlu0 %v1238, 12
        %v1673 = vpop.permute.xlu0 %1672
        %1674 = vrot.lane.b32.xlu0 %v1240, 12
        %v1675 = vpop.permute.xlu0 %1674
        %1676 = vrot.lane.b32.xlu0 %v1243, 12
        %v1677 = vpop.permute.xlu0 %1676
        %1678 = vrot.lane.b32.xlu0 %v1245, 12
        %v1679 = vpop.permute.xlu0 %1678
        %1680 = vrot.lane.b32.xlu0 %v1248, 12
        %v1681 = vpop.permute.xlu0 %1680
        %1682 = vrot.lane.b32.xlu0 %v1250, 12
        %v1683 = vpop.permute.xlu0 %1682
        %1684 = vrot.lane.b32.xlu0 %v1253, 12
        %v1685 = vpop.permute.xlu0 %1684
        %1686 = vrot.lane.b32.xlu0 %v1255, 12
        %v1687 = vpop.permute.xlu0 %1686
        %1688 = vrot.lane.b32.xlu0 %v1338, 12
        %v1689 = vpop.permute.xlu0 %1688
        %1690 = vrot.lane.b32.xlu0 %v1340, 12
        %v1691 = vpop.permute.xlu0 %1690
        %1724 = vrot.lane.b32.xlu0 %v1261, 15
        %v1725 = vpop.permute.xlu0 %1724
        %1726 = vrot.lane.b32.xlu0 %v1263, 15
        %v1727 = vpop.permute.xlu0 %1726
        %1728 = vrot.lane.b32.xlu0 %v1266, 15
        %v1729 = vpop.permute.xlu0 %1728
        %1730 = vrot.lane.b32.xlu0 %v1268, 15
        %v1731 = vpop.permute.xlu0 %1730
        %1732 = vrot.lane.b32.xlu0 %v1271, 15
        %v1733 = vpop.permute.xlu0 %1732
        %1734 = vrot.lane.b32.xlu0 %v1273, 15
        %v1735 = vpop.permute.xlu0 %1734
        %1736 = vrot.lane.b32.xlu0 %v1276, 15
        %v1737 = vpop.permute.xlu0 %1736
        %1738 = vrot.lane.b32.xlu0 %v1278, 15
        %v1739 = vpop.permute.xlu0 %1738
        %1740 = vrot.lane.b32.xlu0 %v1281, 15
        %v1741 = vpop.permute.xlu0 %1740
        %1742 = vrot.lane.b32.xlu0 %v1283, 15
        %v1743 = vpop.permute.xlu0 %1742
        %1744 = vrot.lane.b32.xlu0 %v1286, 15
        %v1745 = vpop.permute.xlu0 %1744
        %1746 = vrot.lane.b32.xlu0 %v1288, 15
        %v1747 = vpop.permute.xlu0 %1746
        %1748 = vrot.lane.b32.xlu0 %v1291, 15
        %v1749 = vpop.permute.xlu0 %1748
        %1750 = vrot.lane.b32.xlu0 %v1293, 15
        %v1751 = vpop.permute.xlu0 %1750
        %1752 = vrot.lane.b32.xlu0 %v1296, 15
        %v1753 = vpop.permute.xlu0 %1752
        %1754 = vrot.lane.b32.xlu0 %v1298, 15
        %v1755 = vpop.permute.xlu0 %1754
        %1756 = vrot.lane.b32.xlu0 %v1301, 15
        %v1757 = vpop.permute.xlu0 %1756
        %1758 = vrot.lane.b32.xlu0 %v1303, 15
        %v1759 = vpop.permute.xlu0 %1758
        %1760 = vrot.lane.b32.xlu0 %v1306, 15
        %v1761 = vpop.permute.xlu0 %1760
        %1762 = vrot.lane.b32.xlu0 %v1308, 15
        %v1763 = vpop.permute.xlu0 %1762
        %1764 = vrot.lane.b32.xlu0 %v1311, 15
        %v1765 = vpop.permute.xlu0 %1764
        %1766 = vrot.lane.b32.xlu0 %v1313, 15
        %v1767 = vpop.permute.xlu0 %1766
        %1768 = vrot.lane.b32.xlu0 %v1316, 15
        %v1769 = vpop.permute.xlu0 %1768
        %1770 = vrot.lane.b32.xlu0 %v1318, 15
        %v1771 = vpop.permute.xlu0 %1770
        %1772 = vrot.lane.b32.xlu0 %v1321, 15
        %v1773 = vpop.permute.xlu0 %1772
        %1774 = vrot.lane.b32.xlu0 %v1323, 15
        %v1775 = vpop.permute.xlu0 %1774
        %1776 = vrot.lane.b32.xlu0 %v1326, 15
        %v1777 = vpop.permute.xlu0 %1776
        %1778 = vrot.lane.b32.xlu0 %v1328, 15
        %v1779 = vpop.permute.xlu0 %1778
        %1780 = vrot.lane.b32.xlu0 %v1331, 15
        %v1781 = vpop.permute.xlu0 %1780
        %1782 = vrot.lane.b32.xlu0 %v1333, 15
        %v1783 = vpop.permute.xlu0 %1782
        %1784 = vrot.lane.b32.xlu0 %v1343, 15
        %v1785 = vpop.permute.xlu0 %1784
        %1786 = vrot.lane.b32.xlu0 %v1345, 15
        %v1787 = vpop.permute.xlu0 %1786
        %1820 = vrot.lane.b32.xlu0 %v1116, 18
        %v1821 = vpop.permute.xlu0 %1820
        %1822 = vrot.lane.b32.xlu0 %v1025, 18
        %v1823 = vpop.permute.xlu0 %1822
        %1824 = vrot.lane.b32.xlu0 %v1117, 18
        %v1825 = vpop.permute.xlu0 %1824
        %1826 = vrot.lane.b32.xlu0 %v1028, 18
        %v1827 = vpop.permute.xlu0 %1826
        %1828 = vrot.lane.b32.xlu0 %v1118, 18
        %v1829 = vpop.permute.xlu0 %1828
        %1830 = vrot.lane.b32.xlu0 %v1031, 18
        %v1831 = vpop.permute.xlu0 %1830
        %1832 = vrot.lane.b32.xlu0 %v1119, 18
        %v1833 = vpop.permute.xlu0 %1832
        %1834 = vrot.lane.b32.xlu0 %v1034, 18
        %v1835 = vpop.permute.xlu0 %1834
        %1836 = vrot.lane.b32.xlu0 %v1120, 18
        %v1837 = vpop.permute.xlu0 %1836
        %1838 = vrot.lane.b32.xlu0 %v1037, 18
        %v1839 = vpop.permute.xlu0 %1838
        %1840 = vrot.lane.b32.xlu0 %v1121, 18
        %v1841 = vpop.permute.xlu0 %1840
        %1842 = vrot.lane.b32.xlu0 %v1040, 18
        %v1843 = vpop.permute.xlu0 %1842
        %1844 = vrot.lane.b32.xlu0 %v1122, 18
        %v1845 = vpop.permute.xlu0 %1844
        %1846 = vrot.lane.b32.xlu0 %v1043, 18
        %v1847 = vpop.permute.xlu0 %1846
        %1848 = vrot.lane.b32.xlu0 %v1123, 18
        %v1849 = vpop.permute.xlu0 %1848
        %1850 = vrot.lane.b32.xlu0 %v1046, 18
        %v1851 = vpop.permute.xlu0 %1850
        %1852 = vrot.lane.b32.xlu0 %v1124, 18
        %v1853 = vpop.permute.xlu0 %1852
        %1854 = vrot.lane.b32.xlu0 %v1049, 18
        %v1855 = vpop.permute.xlu0 %1854
        %1856 = vrot.lane.b32.xlu0 %v1125, 18
        %v1857 = vpop.permute.xlu0 %1856
        %1858 = vrot.lane.b32.xlu0 %v1052, 18
        %v1859 = vpop.permute.xlu0 %1858
        %1860 = vrot.lane.b32.xlu0 %v1126, 18
        %v1861 = vpop.permute.xlu0 %1860
        %1862 = vrot.lane.b32.xlu0 %v1055, 18
        %v1863 = vpop.permute.xlu0 %1862
        %1864 = vrot.lane.b32.xlu0 %v1127, 18
        %v1865 = vpop.permute.xlu0 %1864
        %1866 = vrot.lane.b32.xlu0 %v1058, 18
        %v1867 = vpop.permute.xlu0 %1866
        %1868 = vrot.lane.b32.xlu0 %v1128, 18
        %v1869 = vpop.permute.xlu0 %1868
        %1870 = vrot.lane.b32.xlu0 %v1061, 18
        %v1871 = vpop.permute.xlu0 %1870
        %1872 = vrot.lane.b32.xlu0 %v1129, 18
        %v1873 = vpop.permute.xlu0 %1872
        %1874 = vrot.lane.b32.xlu0 %v1064, 18
        %v1875 = vpop.permute.xlu0 %1874
        %1876 = vrot.lane.b32.xlu0 %v1130, 18
        %v1877 = vpop.permute.xlu0 %1876
        %1878 = vrot.lane.b32.xlu0 %v1067, 18
        %v1879 = vpop.permute.xlu0 %1878
        %1880 = vrot.lane.b32.xlu0 0.0, 18
        %v1881 = vpop.permute.xlu0 %1880
        %1913 = vrot.lane.b32.xlu0 %v1188, 21
        %v1914 = vpop.permute.xlu0 %1913
        %1915 = vrot.lane.b32.xlu0 %v1190, 21
        %v1916 = vpop.permute.xlu0 %1915
        %1917 = vrot.lane.b32.xlu0 %v1193, 21
        %v1918 = vpop.permute.xlu0 %1917
        %1919 = vrot.lane.b32.xlu0 %v1195, 21
        %v1920 = vpop.permute.xlu0 %1919
        %1921 = vrot.lane.b32.xlu0 %v1198, 21
        %v1922 = vpop.permute.xlu0 %1921
        %1923 = vrot.lane.b32.xlu0 %v1200, 21
        %v1924 = vpop.permute.xlu0 %1923
        %1925 = vrot.lane.b32.xlu0 %v1203, 21
        %v1926 = vpop.permute.xlu0 %1925
        %1927 = vrot.lane.b32.xlu0 %v1205, 21
        %v1928 = vpop.permute.xlu0 %1927
        %1929 = vrot.lane.b32.xlu0 %v1208, 21
        %v1930 = vpop.permute.xlu0 %1929
        %1931 = vrot.lane.b32.xlu0 %v1210, 21
        %v1932 = vpop.permute.xlu0 %1931
        %1933 = vrot.lane.b32.xlu0 %v1213, 21
        %v1934 = vpop.permute.xlu0 %1933
        %1935 = vrot.lane.b32.xlu0 %v1215, 21
        %v1936 = vpop.permute.xlu0 %1935
        %1937 = vrot.lane.b32.xlu0 %v1218, 21
        %v1938 = vpop.permute.xlu0 %1937
        %1939 = vrot.lane.b32.xlu0 %v1220, 21
        %v1940 = vpop.permute.xlu0 %1939
        %1941 = vrot.lane.b32.xlu0 %v1223, 21
        %v1942 = vpop.permute.xlu0 %1941
        %1943 = vrot.lane.b32.xlu0 %v1225, 21
        %v1944 = vpop.permute.xlu0 %1943
        %1945 = vrot.lane.b32.xlu0 %v1228, 21
        %v1946 = vpop.permute.xlu0 %1945
        %1947 = vrot.lane.b32.xlu0 %v1230, 21
        %v1948 = vpop.permute.xlu0 %1947
        %1949 = vrot.lane.b32.xlu0 %v1233, 21
        %v1950 = vpop.permute.xlu0 %1949
        %1951 = vrot.lane.b32.xlu0 %v1235, 21
        %v1952 = vpop.permute.xlu0 %1951
        %1953 = vrot.lane.b32.xlu0 %v1238, 21
        %v1954 = vpop.permute.xlu0 %1953
        %1955 = vrot.lane.b32.xlu0 %v1240, 21
        %v1956 = vpop.permute.xlu0 %1955
        %1957 = vrot.lane.b32.xlu0 %v1243, 21
        %v1958 = vpop.permute.xlu0 %1957
        %1959 = vrot.lane.b32.xlu0 %v1245, 21
        %v1960 = vpop.permute.xlu0 %1959
        %1961 = vrot.lane.b32.xlu0 %v1248, 21
        %v1962 = vpop.permute.xlu0 %1961
        %1963 = vrot.lane.b32.xlu0 %v1250, 21
        %v1964 = vpop.permute.xlu0 %1963
        %1965 = vrot.lane.b32.xlu0 %v1253, 21
        %v1966 = vpop.permute.xlu0 %1965
        %1967 = vrot.lane.b32.xlu0 %v1255, 21
        %v1968 = vpop.permute.xlu0 %1967
        %1969 = vrot.lane.b32.xlu0 %v1338, 21
        %v1970 = vpop.permute.xlu0 %1969
        %1971 = vrot.lane.b32.xlu0 %v1340, 21
        %v1972 = vpop.permute.xlu0 %1971
        %1973 = vrot.lane.b32.xlu0 %v1180, 21
        %v1974 = vpop.permute.xlu0 %1973
        %2006 = vrot.lane.b32.xlu0 %v1266, 24
        %v2007 = vpop.permute.xlu0 %2006
        %2008 = vrot.lane.b32.xlu0 %v1268, 24
        %v2009 = vpop.permute.xlu0 %2008
        %2010 = vrot.lane.b32.xlu0 %v1271, 24
        %v2011 = vpop.permute.xlu0 %2010
        %2012 = vrot.lane.b32.xlu0 %v1273, 24
        %v2013 = vpop.permute.xlu0 %2012
        %2014 = vrot.lane.b32.xlu0 %v1276, 24
        %v2015 = vpop.permute.xlu0 %2014
        %2016 = vrot.lane.b32.xlu0 %v1278, 24
        %v2017 = vpop.permute.xlu0 %2016
        %2018 = vrot.lane.b32.xlu0 %v1281, 24
        %v2019 = vpop.permute.xlu0 %2018
        %2020 = vrot.lane.b32.xlu0 %v1283, 24
        %v2021 = vpop.permute.xlu0 %2020
        %2022 = vrot.lane.b32.xlu0 %v1286, 24
        %v2023 = vpop.permute.xlu0 %2022
        %2024 = vrot.lane.b32.xlu0 %v1288, 24
        %v2025 = vpop.permute.xlu0 %2024
        %2026 = vrot.lane.b32.xlu0 %v1291, 24
        %v2027 = vpop.permute.xlu0 %2026
        %2028 = vrot.lane.b32.xlu0 %v1293, 24
        %v2029 = vpop.permute.xlu0 %2028
        %2030 = vrot.lane.b32.xlu0 %v1296, 24
        %v2031 = vpop.permute.xlu0 %2030
        %2032 = vrot.lane.b32.xlu0 %v1298, 24
        %v2033 = vpop.permute.xlu0 %2032
        %2034 = vrot.lane.b32.xlu0 %v1301, 24
        %v2035 = vpop.permute.xlu0 %2034
        %2036 = vrot.lane.b32.xlu0 %v1303, 24
        %v2037 = vpop.permute.xlu0 %2036
        %2038 = vrot.lane.b32.xlu0 %v1306, 24
        %v2039 = vpop.permute.xlu0 %2038
        %2040 = vrot.lane.b32.xlu0 %v1308, 24
        %v2041 = vpop.permute.xlu0 %2040
        %2042 = vrot.lane.b32.xlu0 %v1311, 24
        %v2043 = vpop.permute.xlu0 %2042
        %2044 = vrot.lane.b32.xlu0 %v1313, 24
        %v2045 = vpop.permute.xlu0 %2044
        %2046 = vrot.lane.b32.xlu0 %v1316, 24
        %v2047 = vpop.permute.xlu0 %2046
        %2048 = vrot.lane.b32.xlu0 %v1318, 24
        %v2049 = vpop.permute.xlu0 %2048
        %2050 = vrot.lane.b32.xlu0 %v1321, 24
        %v2051 = vpop.permute.xlu0 %2050
        %2052 = vrot.lane.b32.xlu0 %v1323, 24
        %v2053 = vpop.permute.xlu0 %2052
        %2054 = vrot.lane.b32.xlu0 %v1326, 24
        %v2055 = vpop.permute.xlu0 %2054
        %2056 = vrot.lane.b32.xlu0 %v1328, 24
        %v2057 = vpop.permute.xlu0 %2056
        %2058 = vrot.lane.b32.xlu0 %v1331, 24
        %v2059 = vpop.permute.xlu0 %2058
        %2060 = vrot.lane.b32.xlu0 %v1333, 24
        %v2061 = vpop.permute.xlu0 %2060
        %2062 = vrot.lane.b32.xlu0 %v1343, 24
        %v2063 = vpop.permute.xlu0 %2062
        %2064 = vrot.lane.b32.xlu0 %v1345, 24
        %v2065 = vpop.permute.xlu0 %2064
        %2066 = vrot.lane.b32.xlu0 %v1258, 24
        %v2067 = vpop.permute.xlu0 %2066
        %vm2099 = vcmask 23552
        %v2100 = vsel %vm2099, 0.0, %v1347
        %v2101 = vsel %vm2099, %v1115, %v1349
        %v2102 = vsel %vm2099, %v1022, %v1351
        %v2103 = vsel %vm2099, %v1116, %v1353
        %v2104 = vsel %vm2099, %v1025, %v1355
        %v2105 = vsel %vm2099, %v1117, %v1357
        %v2106 = vsel %vm2099, %v1028, %v1359
        %v2107 = vsel %vm2099, %v1118, %v1361
        %v2108 = vsel %vm2099, %v1031, %v1363
        %v2109 = vsel %vm2099, %v1119, %v1365
        %v2110 = vsel %vm2099, %v1034, %v1367
        %v2111 = vsel %vm2099, %v1120, %v1369
        %v2112 = vsel %vm2099, %v1037, %v1371
        %v2113 = vsel %vm2099, %v1121, %v1373
        %v2114 = vsel %vm2099, %v1040, %v1375
        %v2115 = vsel %vm2099, %v1122, %v1377
        %v2116 = vsel %vm2099, %v1043, %v1379
        %v2117 = vsel %vm2099, %v1123, %v1381
        %v2118 = vsel %vm2099, %v1046, %v1383
        %v2119 = vsel %vm2099, %v1124, %v1385
        %v2120 = vsel %vm2099, %v1049, %v1387
        %v2121 = vsel %vm2099, %v1125, %v1389
        %v2122 = vsel %vm2099, %v1052, %v1391
        %v2123 = vsel %vm2099, %v1126, %v1393
        %v2124 = vsel %vm2099, %v1055, %v1395
        %v2125 = vsel %vm2099, %v1127, %v1397
        %v2126 = vsel %vm2099, %v1058, %v1399
        %v2127 = vsel %vm2099, %v1128, %v1401
        %v2128 = vsel %vm2099, %v1061, %v1403
        %v2129 = vsel %vm2099, %v1129, %v1405
        %v2130 = vsel %vm2099, %v1064, %v1407
        %vm2131 = vcmask 48128
        %v2132 = vsel %vm2131, %v2100, %v1440
        %v2133 = vsel %vm2131, %v2101, %v1442
        %v2134 = vsel %vm2131, %v2102, %v1444
        %v2135 = vsel %vm2131, %v2103, %v1446
        %v2136 = vsel %vm2131, %v2104, %v1448
        %v2137 = vsel %vm2131, %v2105, %v1450
        %v2138 = vsel %vm2131, %v2106, %v1452
        %v2139 = vsel %vm2131, %v2107, %v1454
        %v2140 = vsel %vm2131, %v2108, %v1456
        %v2141 = vsel %vm2131, %v2109, %v1458
        %v2142 = vsel %vm2131, %v2110, %v1460
        %v2143 = vsel %vm2131, %v2111, %v1462
        %v2144 = vsel %vm2131, %v2112, %v1464
        %v2145 = vsel %vm2131, %v2113, %v1466
        %v2146 = vsel %vm2131, %v2114, %v1468
        %v2147 = vsel %vm2131, %v2115, %v1470
        %v2148 = vsel %vm2131, %v2116, %v1472
        %v2149 = vsel %vm2131, %v2117, %v1474
        %v2150 = vsel %vm2131, %v2118, %v1476
        %v2151 = vsel %vm2131, %v2119, %v1478
        %v2152 = vsel %vm2131, %v2120, %v1480
        %v2153 = vsel %vm2131, %v2121, %v1482
        %v2154 = vsel %vm2131, %v2122, %v1484
        %v2155 = vsel %vm2131, %v2123, %v1486
        %v2156 = vsel %vm2131, %v2124, %v1488
        %v2157 = vsel %vm2131, %v2125, %v1490
        %v2158 = vsel %vm2131, %v2126, %v1492
        %v2159 = vsel %vm2131, %v2127, %v1494
        %v2160 = vsel %vm2131, %v2128, %v1496
        %v2161 = vsel %vm2131, %v2129, %v1498
        %v2162 = vsel %vm2131, %v2130, %v1500
        %vm2163 = vcmask 72704
        %v2164 = vsel %vm2163, %v2132, %v1533
        %v2165 = vsel %vm2163, %v2132, %v1535
        %v2166 = vsel %vm2163, %v2133, %v1537
        %v2167 = vsel %vm2163, %v2134, %v1539
        %v2168 = vsel %vm2163, %v2135, %v1541
        %v2169 = vsel %vm2163, %v2136, %v1543
        %v2170 = vsel %vm2163, %v2137, %v1545
        %v2171 = vsel %vm2163, %v2138, %v1547
        %v2172 = vsel %vm2163, %v2139, %v1549
        %v2173 = vsel %vm2163, %v2140, %v1551
        %v2174 = vsel %vm2163, %v2141, %v1553
        %v2175 = vsel %vm2163, %v2142, %v1555
        %v2176 = vsel %vm2163, %v2143, %v1557
        %v2177 = vsel %vm2163, %v2144, %v1559
        %v2178 = vsel %vm2163, %v2145, %v1561
        %v2179 = vsel %vm2163, %v2146, %v1563
        %v2180 = vsel %vm2163, %v2147, %v1565
        %v2181 = vsel %vm2163, %v2148, %v1567
        %v2182 = vsel %vm2163, %v2149, %v1569
        %v2183 = vsel %vm2163, %v2150, %v1571
        %v2184 = vsel %vm2163, %v2151, %v1573
        %v2185 = vsel %vm2163, %v2152, %v1575
        %v2186 = vsel %vm2163, %v2153, %v1577
        %v2187 = vsel %vm2163, %v2154, %v1579
        %v2188 = vsel %vm2163, %v2155, %v1581
        %v2189 = vsel %vm2163, %v2156, %v1583
        %v2190 = vsel %vm2163, %v2157, %v1585
        %v2191 = vsel %vm2163, %v2158, %v1587
        %v2192 = vsel %vm2163, %v2159, %v1589
        %v2193 = vsel %vm2163, %v2160, %v1591
        %v2194 = vsel %vm2163, %v2161, %v1593
        %v2195 = vsel %vm2163, %v2162, %v1595
        %vm2196 = vcmask 97280
        %v2197 = vsel %vm2196, %v2164, %v1629
        %v2198 = vsel %vm2196, %v2165, %v1631
        %v2199 = vsel %vm2196, %v2166, %v1633
        %v2200 = vsel %vm2196, %v2167, %v1635
        %v2201 = vsel %vm2196, %v2168, %v1637
        %v2202 = vsel %vm2196, %v2169, %v1639
        %v2203 = vsel %vm2196, %v2170, %v1641
        %v2204 = vsel %vm2196, %v2171, %v1643
        %v2205 = vsel %vm2196, %v2172, %v1645
        %v2206 = vsel %vm2196, %v2173, %v1647
        %v2207 = vsel %vm2196, %v2174, %v1649
        %v2208 = vsel %vm2196, %v2175, %v1651
        %v2209 = vsel %vm2196, %v2176, %v1653
        %v2210 = vsel %vm2196, %v2177, %v1655
        %v2211 = vsel %vm2196, %v2178, %v1657
        %v2212 = vsel %vm2196, %v2179, %v1659
        %v2213 = vsel %vm2196, %v2180, %v1661
        %v2214 = vsel %vm2196, %v2181, %v1663
        %v2215 = vsel %vm2196, %v2182, %v1665
        %v2216 = vsel %vm2196, %v2183, %v1667
        %v2217 = vsel %vm2196, %v2184, %v1669
        %v2218 = vsel %vm2196, %v2185, %v1671
        %v2219 = vsel %vm2196, %v2186, %v1673
        %v2220 = vsel %vm2196, %v2187, %v1675
        %v2221 = vsel %vm2196, %v2188, %v1677
        %v2222 = vsel %vm2196, %v2189, %v1679
        %v2223 = vsel %vm2196, %v2190, %v1681
        %v2224 = vsel %vm2196, %v2191, %v1683
        %v2225 = vsel %vm2196, %v2192, %v1685
        %v2226 = vsel %vm2196, %v2193, %v1687
        %v2227 = vsel %vm2196, %v2194, %v1689
        %v2228 = vsel %vm2196, %v2195, %v1691
        %vm2229 = vcmask 121856
        %v2230 = vsel %vm2229, %v2197, %v1725
        %v2231 = vsel %vm2229, %v2198, %v1727
        %v2232 = vsel %vm2229, %v2199, %v1729
        %v2233 = vsel %vm2229, %v2200, %v1731
        %v2234 = vsel %vm2229, %v2201, %v1733
        %v2235 = vsel %vm2229, %v2202, %v1735
        %v2236 = vsel %vm2229, %v2203, %v1737
        %v2237 = vsel %vm2229, %v2204, %v1739
        %v2238 = vsel %vm2229, %v2205, %v1741
        %v2239 = vsel %vm2229, %v2206, %v1743
        %v2240 = vsel %vm2229, %v2207, %v1745
        %v2241 = vsel %vm2229, %v2208, %v1747
        %v2242 = vsel %vm2229, %v2209, %v1749
        %v2243 = vsel %vm2229, %v2210, %v1751
        %v2244 = vsel %vm2229, %v2211, %v1753
        %v2245 = vsel %vm2229, %v2212, %v1755
        %v2246 = vsel %vm2229, %v2213, %v1757
        %v2247 = vsel %vm2229, %v2214, %v1759
        %v2248 = vsel %vm2229, %v2215, %v1761
        %v2249 = vsel %vm2229, %v2216, %v1763
        %v2250 = vsel %vm2229, %v2217, %v1765
        %v2251 = vsel %vm2229, %v2218, %v1767
        %v2252 = vsel %vm2229, %v2219, %v1769
        %v2253 = vsel %vm2229, %v2220, %v1771
        %v2254 = vsel %vm2229, %v2221, %v1773
        %v2255 = vsel %vm2229, %v2222, %v1775
        %v2256 = vsel %vm2229, %v2223, %v1777
        %v2257 = vsel %vm2229, %v2224, %v1779
        %v2258 = vsel %vm2229, %v2225, %v1781
        %v2259 = vsel %vm2229, %v2226, %v1783
        %v2260 = vsel %vm2229, %v2227, %v1785
        %v2261 = vsel %vm2229, %v2228, %v1787
        %vm2262 = vcmask 146432
        %v2263 = vsel %vm2262, %v2230, %v1821
        %v2264 = vsel %vm2262, %v2231, %v1823
        %v2265 = vsel %vm2262, %v2232, %v1825
        %v2266 = vsel %vm2262, %v2233, %v1827
        %v2267 = vsel %vm2262, %v2234, %v1829
        %v2268 = vsel %vm2262, %v2235, %v1831
        %v2269 = vsel %vm2262, %v2236, %v1833
        %v2270 = vsel %vm2262, %v2237, %v1835
        %v2271 = vsel %vm2262, %v2238, %v1837
        %v2272 = vsel %vm2262, %v2239, %v1839
        %v2273 = vsel %vm2262, %v2240, %v1841
        %v2274 = vsel %vm2262, %v2241, %v1843
        %v2275 = vsel %vm2262, %v2242, %v1845
        %v2276 = vsel %vm2262, %v2243, %v1847
        %v2277 = vsel %vm2262, %v2244, %v1849
        %v2278 = vsel %vm2262, %v2245, %v1851
        %v2279 = vsel %vm2262, %v2246, %v1853
        %v2280 = vsel %vm2262, %v2247, %v1855
        %v2281 = vsel %vm2262, %v2248, %v1857
        %v2282 = vsel %vm2262, %v2249, %v1859
        %v2283 = vsel %vm2262, %v2250, %v1861
        %v2284 = vsel %vm2262, %v2251, %v1863
        %v2285 = vsel %vm2262, %v2252, %v1865
        %v2286 = vsel %vm2262, %v2253, %v1867
        %v2287 = vsel %vm2262, %v2254, %v1869
        %v2288 = vsel %vm2262, %v2255, %v1871
        %v2289 = vsel %vm2262, %v2256, %v1873
        %v2290 = vsel %vm2262, %v2257, %v1875
        %v2291 = vsel %vm2262, %v2258, %v1877
        %v2292 = vsel %vm2262, %v2259, %v1879
        %v2293 = vsel %vm2262, %v2260, %v1881
        %v2294 = vsel %vm2262, %v2261, %v1881
        %vm2295 = vcmask 171008
        %v2296 = vsel %vm2295, %v2263, %v1914
        %v2297 = vsel %vm2295, %v2264, %v1916
        %v2298 = vsel %vm2295, %v2265, %v1918
        %v2299 = vsel %vm2295, %v2266, %v1920
        %v2300 = vsel %vm2295, %v2267, %v1922
        %v2301 = vsel %vm2295, %v2268, %v1924
        %v2302 = vsel %vm2295, %v2269, %v1926
        %v2303 = vsel %vm2295, %v2270, %v1928
        %v2304 = vsel %vm2295, %v2271, %v1930
        %v2305 = vsel %vm2295, %v2272, %v1932
        %v2306 = vsel %vm2295, %v2273, %v1934
        %v2307 = vsel %vm2295, %v2274, %v1936
        %v2308 = vsel %vm2295, %v2275, %v1938
        %v2309 = vsel %vm2295, %v2276, %v1940
        %v2310 = vsel %vm2295, %v2277, %v1942
        %v2311 = vsel %vm2295, %v2278, %v1944
        %v2312 = vsel %vm2295, %v2279, %v1946
        %v2313 = vsel %vm2295, %v2280, %v1948
        %v2314 = vsel %vm2295, %v2281, %v1950
        %v2315 = vsel %vm2295, %v2282, %v1952
        %v2316 = vsel %vm2295, %v2283, %v1954
        %v2317 = vsel %vm2295, %v2284, %v1956
        %v2318 = vsel %vm2295, %v2285, %v1958
        %v2319 = vsel %vm2295, %v2286, %v1960
        %v2320 = vsel %vm2295, %v2287, %v1962
        %v2321 = vsel %vm2295, %v2288, %v1964
        %v2322 = vsel %vm2295, %v2289, %v1966
        %v2323 = vsel %vm2295, %v2290, %v1968
        %v2324 = vsel %vm2295, %v2291, %v1970
        %v2325 = vsel %vm2295, %v2292, %v1972
        %v2326 = vsel %vm2295, %v2293, %v1974
        %v2327 = vsel %vm2295, %v2294, %v1974
        %vm2328 = vcmask 195584
        %v2329 = vsel %vm2328, %v2296, %v2007
        %v2330 = vsel %vm2328, %v2297, %v2009
        %v2331 = vsel %vm2328, %v2298, %v2011
        %v2332 = vsel %vm2328, %v2299, %v2013
        %v2333 = vsel %vm2328, %v2300, %v2015
        %v2334 = vsel %vm2328, %v2301, %v2017
        %v2335 = vsel %vm2328, %v2302, %v2019
        %v2336 = vsel %vm2328, %v2303, %v2021
        %v2337 = vsel %vm2328, %v2304, %v2023
        %v2338 = vsel %vm2328, %v2305, %v2025
        %v2339 = vsel %vm2328, %v2306, %v2027
        %v2340 = vsel %vm2328, %v2307, %v2029
        %v2341 = vsel %vm2328, %v2308, %v2031
        %v2342 = vsel %vm2328, %v2309, %v2033
        %v2343 = vsel %vm2328, %v2310, %v2035
        %v2344 = vsel %vm2328, %v2311, %v2037
        %v2345 = vsel %vm2328, %v2312, %v2039
        %v2346 = vsel %vm2328, %v2313, %v2041
        %v2347 = vsel %vm2328, %v2314, %v2043
        %v2348 = vsel %vm2328, %v2315, %v2045
        %v2349 = vsel %vm2328, %v2316, %v2047
        %v2350 = vsel %vm2328, %v2317, %v2049
        %v2351 = vsel %vm2328, %v2318, %v2051
        %v2352 = vsel %vm2328, %v2319, %v2053
        %v2353 = vsel %vm2328, %v2320, %v2055
        %v2354 = vsel %vm2328, %v2321, %v2057
        %v2355 = vsel %vm2328, %v2322, %v2059
        %v2356 = vsel %vm2328, %v2323, %v2061
        %v2357 = vsel %vm2328, %v2324, %v2063
        %v2358 = vsel %vm2328, %v2325, %v2065
        %v2359 = vsel %vm2328, %v2326, %v2067
        %v2360 = vsel %vm2328, %v2327, %v2067
        %v2361 = vpack.c.bf16 %v2330, %v2329
        %v2362 = vpack.c.bf16 %v2332, %v2331
        %v2363 = vpack.c.bf16 %v2334, %v2333
        %v2364 = vpack.c.bf16 %v2336, %v2335
        %v2365 = vpack.c.bf16 %v2338, %v2337
        %v2366 = vpack.c.bf16 %v2340, %v2339
        %v2367 = vpack.c.bf16 %v2342, %v2341
        %v2368 = vpack.c.bf16 %v2344, %v2343
        %v2369 = vpack.c.bf16 %v2346, %v2345
        %v2370 = vpack.c.bf16 %v2348, %v2347
        %v2371 = vpack.c.bf16 %v2350, %v2349
        %v2372 = vpack.c.bf16 %v2352, %v2351
        %v2373 = vpack.c.bf16 %v2354, %v2353
        %v2374 = vpack.c.bf16 %v2356, %v2355
        %v2375 = vpack.c.bf16 %v2358, %v2357
        %v2376 = vpack.c.bf16 %v2360, %v2359
        %v2377 = vld [vmem:[%s1] sm:$0xf]
        %v2378 = vld [vmem:[%s1 + $0x4] sm:$0xf]
        %v2379 = vld [vmem:[%s1 + $0x8] sm:$0xf]
        %v2380 = vld [vmem:[%s1 + $0xc] sm:$0x3]
        %v2385 = vunpack.c.l.b16 %v2377
        %v2386 = vunpack.c.l.b16 %v2378
        %v2387 = vunpack.c.l.b16 %v2379
        %v2388 = vunpack.c.l.b16 %v2380
        %v2389 = vpack.c.b16 %v2386, %v2385
        %v2390 = vpack.c.b16 %v2388, %v2387
        %vm2392 = vcmask 220160
        %v2394 = vsel %vm2392, %v2361, 0
        %v2397 = vsel %vm2392, %v2362, 0
        %v2400 = vsel %vm2392, %v2363, 0
        %v2403 = vsel %vm2392, %v2364, 0
        %v2406 = vsel %vm2392, %v2365, 0
        %v2409 = vsel %vm2392, %v2366, 0
        %v2412 = vsel %vm2392, %v2367, 0
        %v2415 = vsel %vm2392, %v2368, 0
        %v2418 = vsel %vm2392, %v2369, 0
        %v2421 = vsel %vm2392, %v2370, 0
        %v2424 = vsel %vm2392, %v2371, 0
        %v2427 = vsel %vm2392, %v2372, 0
        %v2430 = vsel %vm2392, %v2373, 0
        %v2433 = vsel %vm2392, %v2374, 0
        %v2436 = vsel %vm2392, %v2375, 0
        %v2439 = vsel %vm2392, %v2376, 0
        %vm2441 = vcmask 1044480
        %v2442 = vsel %vm2441, 4294967295, 65535
        %v2443 = vsel %vm1256, %v2442, 0
        %v2445 = vand.u32 %v2390, %v2443
        %2447 = vmatprep.subr.bf16.mxu0 0
        %2448 = vmatpush1.bf16.msra.mxu0 %v2389
        %2449 = vmatprep.subr.bf16.mxu0 0
        %2450 = vmatpush1.bf16.msra.mxu0 %v2445
        %2451 = vmatprep.subr.bf16.mxu0 0
        %2452 = vmatpush1.bf16.msra.mxu0 0
        %2453 = vmatprep.subr.bf16.mxu0 0
        %2454 = vmatpush1.bf16.msra.mxu0 0
        %2455 = vmatprep.subr.bf16.mxu0 0
        %2456 = vmatpush1.bf16.msra.mxu0 0
        %2457 = vmatprep.subr.bf16.mxu0 0
        %2458 = vmatpush1.bf16.msra.mxu0 0
        %2459 = vmatprep.subr.bf16.mxu0 0
        %2460 = vmatpush1.bf16.msra.mxu0 0
        %2461 = vmatprep.subr.bf16.mxu0 0
        %2462 = vmatpush1.bf16.msra.mxu0 0
        %2463 = vmatprep.subr.bf16.mxu0 0
        %2464 = vmatpush1.bf16.msra.mxu0 0
        %2465 = vmatprep.subr.bf16.mxu0 0
        %2466 = vmatpush1.bf16.msra.mxu0 0
        %2467 = vmatprep.subr.bf16.mxu0 0
        %2468 = vmatpush1.bf16.msra.mxu0 0
        %2469 = vmatprep.subr.bf16.mxu0 0
        %2470 = vmatpush1.bf16.msra.mxu0 0
        %2471 = vmatprep.subr.bf16.mxu0 0
        %2472 = vmatpush1.bf16.msra.mxu0 0
        %2473 = vmatprep.subr.bf16.mxu0 0
        %2474 = vmatpush1.bf16.msra.mxu0 0
        %2475 = vmatprep.subr.bf16.mxu0 0
        %2476 = vmatpush1.bf16.msra.mxu0 0
        %2477 = vmatprep.subr.bf16.mxu0 0
        %2478 = vmatpush1.bf16.msra.mxu0 0
        %2479 = vmatprep.mubr.bf16.mxu0 0
        %2480 = vmatmul.mubr.bf16.gmra.mrb[0].mxu0 %v2394
        %v2481 = vpop.f32.mrb[0].mxu0
        %v2482 = vadd.f32 0.0, %v2481
        %v2483 = vpop.f32.mrb[0].mxu0
        %v2484 = vpop.f32.mrb[0].mxu0
        %v2485 = vadd.f32 0.0, %v2484
        %v2486 = vpop.f32.mrb[0].mxu0
        %2487 = vmatprep.mubr.bf16.mxu0 0
        %2488 = vmatmul.mubr.bf16.gmra.mrb[0].mxu0 %v2397
        %v2489 = vpop.f32.mrb[0].mxu0
        %v2490 = vadd.f32 0.0, %v2489
        %v2491 = vpop.f32.mrb[0].mxu0
        %v2492 = vpop.f32.mrb[0].mxu0
        %v2493 = vadd.f32 0.0, %v2492
        %v2494 = vpop.f32.mrb[0].mxu0
        %2495 = vmatprep.mubr.bf16.mxu0 0
        %2496 = vmatmul.mubr.bf16.gmra.mrb[0].mxu0 %v2400
        %v2497 = vpop.f32.mrb[0].mxu0
        %v2498 = vadd.f32 0.0, %v2497
        %v2499 = vpop.f32.mrb[0].mxu0
        %v2500 = vpop.f32.mrb[0].mxu0
        %v2501 = vadd.f32 0.0, %v2500
        %v2502 = vpop.f32.mrb[0].mxu0
        %2503 = vmatprep.mubr.bf16.mxu0 0
        %2504 = vmatmul.mubr.bf16.gmra.mrb[0].mxu0 %v2403
        %v2505 = vpop.f32.mrb[0].mxu0
        %v2506 = vadd.f32 0.0, %v2505
        %v2507 = vpop.f32.mrb[0].mxu0
        %v2508 = vpop.f32.mrb[0].mxu0
        %v2509 = vadd.f32 0.0, %v2508
        %v2510 = vpop.f32.mrb[0].mxu0
        %2511 = vmatprep.mubr.bf16.mxu0 0
        %2512 = vmatmul.mubr.bf16.gmra.mrb[0].mxu0 %v2406
        %v2513 = vpop.f32.mrb[0].mxu0
        %v2514 = vadd.f32 0.0, %v2513
        %v2515 = vpop.f32.mrb[0].mxu0
        %v2516 = vpop.f32.mrb[0].mxu0
        %v2517 = vadd.f32 0.0, %v2516
        %v2518 = vpop.f32.mrb[0].mxu0
        %2519 = vmatprep.mubr.bf16.mxu0 0
        %2520 = vmatmul.mubr.bf16.gmra.mrb[0].mxu0 %v2409
        %v2521 = vpop.f32.mrb[0].mxu0
        %v2522 = vadd.f32 0.0, %v2521
        %v2523 = vpop.f32.mrb[0].mxu0
        %v2524 = vpop.f32.mrb[0].mxu0
        %v2525 = vadd.f32 0.0, %v2524
        %v2526 = vpop.f32.mrb[0].mxu0
        %2527 = vmatprep.mubr.bf16.mxu0 0
        %2528 = vmatmul.mubr.bf16.gmra.mrb[0].mxu0 %v2412
        %v2529 = vpop.f32.mrb[0].mxu0
        %v2530 = vadd.f32 0.0, %v2529
        %v2531 = vpop.f32.mrb[0].mxu0
        %v2532 = vpop.f32.mrb[0].mxu0
        %v2533 = vadd.f32 0.0, %v2532
        %v2534 = vpop.f32.mrb[0].mxu0
        %2535 = vmatprep.mubr.bf16.mxu0 0
        %2536 = vmatmul.mubr.bf16.gmra.mrb[0].mxu0 %v2415
        %v2537 = vpop.f32.mrb[0].mxu0
        %v2538 = vadd.f32 0.0, %v2537
        %v2539 = vpop.f32.mrb[0].mxu0
        %v2540 = vpop.f32.mrb[0].mxu0
        %v2541 = vadd.f32 0.0, %v2540
        %v2542 = vpop.f32.mrb[0].mxu0
        %2543 = vmatprep.mubr.bf16.mxu0 0
        %2544 = vmatmul.mubr.bf16.gmra.mrb[0].mxu0 %v2418
        %v2545 = vpop.f32.mrb[0].mxu0
        %v2546 = vadd.f32 0.0, %v2545
        %v2547 = vpop.f32.mrb[0].mxu0
        %v2548 = vpop.f32.mrb[0].mxu0
        %v2549 = vadd.f32 0.0, %v2548
        %v2550 = vpop.f32.mrb[0].mxu0
        %2551 = vmatprep.mubr.bf16.mxu0 0
        %2552 = vmatmul.mubr.bf16.gmra.mrb[0].mxu0 %v2421
        %v2553 = vpop.f32.mrb[0].mxu0
        %v2554 = vadd.f32 0.0, %v2553
        %v2555 = vpop.f32.mrb[0].mxu0
        %v2556 = vpop.f32.mrb[0].mxu0
        %v2557 = vadd.f32 0.0, %v2556
        %v2558 = vpop.f32.mrb[0].mxu0
        %2559 = vmatprep.mubr.bf16.mxu0 0
        %2560 = vmatmul.mubr.bf16.gmra.mrb[0].mxu0 %v2424
        %v2561 = vpop.f32.mrb[0].mxu0
        %v2562 = vadd.f32 0.0, %v2561
        %v2563 = vpop.f32.mrb[0].mxu0
        %v2564 = vpop.f32.mrb[0].mxu0
        %v2565 = vadd.f32 0.0, %v2564
        %v2566 = vpop.f32.mrb[0].mxu0
        %2567 = vmatprep.mubr.bf16.mxu0 0
        %2568 = vmatmul.mubr.bf16.gmra.mrb[0].mxu0 %v2427
        %v2569 = vpop.f32.mrb[0].mxu0
        %v2570 = vadd.f32 0.0, %v2569
        %v2571 = vpop.f32.mrb[0].mxu0
        %v2572 = vpop.f32.mrb[0].mxu0
        %v2573 = vadd.f32 0.0, %v2572
        %v2574 = vpop.f32.mrb[0].mxu0
        %2575 = vmatprep.mubr.bf16.mxu0 0
        %2576 = vmatmul.mubr.bf16.gmra.mrb[0].mxu0 %v2430
        %v2577 = vpop.f32.mrb[0].mxu0
        %v2578 = vadd.f32 0.0, %v2577
        %v2579 = vpop.f32.mrb[0].mxu0
        %v2580 = vpop.f32.mrb[0].mxu0
        %v2581 = vadd.f32 0.0, %v2580
        %v2582 = vpop.f32.mrb[0].mxu0
        %2583 = vmatprep.mubr.bf16.mxu0 0
        %2584 = vmatmul.mubr.bf16.gmra.mrb[0].mxu0 %v2433
        %v2585 = vpop.f32.mrb[0].mxu0
        %v2586 = vadd.f32 0.0, %v2585
        %v2587 = vpop.f32.mrb[0].mxu0
        %v2588 = vpop.f32.mrb[0].mxu0
        %v2589 = vadd.f32 0.0, %v2588
        %v2590 = vpop.f32.mrb[0].mxu0
        %2591 = vmatprep.mubr.bf16.mxu0 0
        %2592 = vmatmul.mubr.bf16.gmra.mrb[0].mxu0 %v2436
        %v2593 = vpop.f32.mrb[0].mxu0
        %v2594 = vadd.f32 0.0, %v2593
        %v2595 = vpop.f32.mrb[0].mxu0
        %v2596 = vpop.f32.mrb[0].mxu0
        %v2597 = vadd.f32 0.0, %v2596
        %v2598 = vpop.f32.mrb[0].mxu0
        %2599 = vmatprep.mubr.bf16.mxu0 0
        %2600 = vmatmul.mubr.bf16.gmra.mrb[0].mxu0 %v2439
        %v2601 = vpop.f32.mrb[0].mxu0
        %v2602 = vadd.f32 0.0, %v2601
        %v2603 = vpop.f32.mrb[0].mxu0
        %v2604 = vpop.f32.mrb[0].mxu0
        %v2605 = vadd.f32 0.0, %v2604
        %v2606 = vpop.f32.mrb[0].mxu0
        %2607 = vdwg.mxu0
        %s2608 = sld [smem:[#allocation3 + $0x4]]
        %s2609 = sld [smem:[#allocation3 + $0x5]]
        %s2610 = sld [smem:[#allocation3 + $0x6]]
        %vm2611 = vcmask 392192
        %v2612 = vsel %vm2611, %v2482, 0.0
        %v2613 = vsel %vm2611, %v2485, 0.0
        %v2614 = vadd.f32 %v2612, %v2613
        %v2615 = vsel %vm2611, %v2490, 0.0
        %v2616 = vadd.f32 %v2614, %v2615
        %v2617 = vsel %vm2611, %v2493, 0.0
        %v2618 = vadd.f32 %v2616, %v2617
        %v2619 = vsel %vm2611, %v2498, 0.0
        %v2620 = vadd.f32 %v2618, %v2619
        %v2621 = vsel %vm2611, %v2501, 0.0
        %v2622 = vadd.f32 %v2620, %v2621
        %v2623 = vsel %vm2611, %v2506, 0.0
        %v2624 = vadd.f32 %v2622, %v2623
        %v2625 = vsel %vm2611, %v2509, 0.0
        %v2626 = vadd.f32 %v2624, %v2625
        %v2627 = vsel %vm2611, %v2514, 0.0
        %v2628 = vadd.f32 %v2626, %v2627
        %v2629 = vsel %vm2611, %v2517, 0.0
        %v2630 = vadd.f32 %v2628, %v2629
        %v2631 = vsel %vm2611, %v2522, 0.0
        %v2632 = vadd.f32 %v2630, %v2631
        %v2633 = vsel %vm2611, %v2525, 0.0
        %v2634 = vadd.f32 %v2632, %v2633
        %v2635 = vsel %vm2611, %v2530, 0.0
        %v2636 = vadd.f32 %v2634, %v2635
        %v2637 = vsel %vm2611, %v2533, 0.0
        %v2638 = vadd.f32 %v2636, %v2637
        %v2639 = vsel %vm2611, %v2538, 0.0
        %v2640 = vadd.f32 %v2638, %v2639
        %v2641 = vsel %vm2611, %v2541, 0.0
        %v2642 = vadd.f32 %v2640, %v2641
        %v2643 = vsel %vm2611, %v2546, 0.0
        %v2644 = vadd.f32 %v2642, %v2643
        %v2645 = vsel %vm2611, %v2549, 0.0
        %v2646 = vadd.f32 %v2644, %v2645
        %v2647 = vsel %vm2611, %v2554, 0.0
        %v2648 = vadd.f32 %v2646, %v2647
        %v2649 = vsel %vm2611, %v2557, 0.0
        %v2650 = vadd.f32 %v2648, %v2649
        %v2651 = vsel %vm2611, %v2562, 0.0
        %v2652 = vadd.f32 %v2650, %v2651
        %v2653 = vsel %vm2611, %v2565, 0.0
        %v2654 = vadd.f32 %v2652, %v2653
        %v2655 = vsel %vm2611, %v2570, 0.0
        %v2656 = vadd.f32 %v2654, %v2655
        %v2657 = vsel %vm2611, %v2573, 0.0
        %v2658 = vadd.f32 %v2656, %v2657
        %v2659 = vsel %vm2611, %v2578, 0.0
        %v2660 = vadd.f32 %v2658, %v2659
        %v2661 = vsel %vm2611, %v2581, 0.0
        %v2662 = vadd.f32 %v2660, %v2661
        %v2663 = vsel %vm2611, %v2586, 0.0
        %v2664 = vadd.f32 %v2662, %v2663
        %v2665 = vsel %vm2611, %v2589, 0.0
        %v2666 = vadd.f32 %v2664, %v2665
        %v2667 = vsel %vm2611, %v2594, 0.0
        %v2668 = vadd.f32 %v2666, %v2667
        %v2669 = vsel %vm2611, %v2597, 0.0
        %v2670 = vadd.f32 %v2668, %v2669
        %v2671 = vsel %vm2611, %v2602, 0.0
        %v2672 = vadd.f32 %v2670, %v2671
        %v2673 = vsel %vm2611, %v2605, 0.0
        %v2674 = vadd.f32 %v2672, %v2673
        %v2675 = vrot.slane %v2674, 4
        %v2676 = vadd.f32 %v2674, %v2675
        %v2677 = vrot.slane %v2676, 2
        %v2678 = vadd.f32 %v2676, %v2677
        %v2679 = vrot.slane %v2678, 1
        %v2680 = vadd.f32 %v2678, %v2679
        %v2681 = vrcp.pop 256.0
        %v2682 = vmul.f32 %v2680, %v2681
        %2684 = vrot.lane.b32.xlu0 %v2682, 1
        %v2685 = vpop.permute.xlu0 %2684
        %vm2687 = vcmask 7168
        %v2688 = vsel %vm2687, 0.0, %v2685
        %vm2689 = vcmask 400384
        %v2690 = vsel %vm2689, %v2688, 0.0
        %v2691 = vstv %s2608
        %v2692 = vmul.f32 %v2691, %v2690
        %v2693 = vstv %s2609
        %v2694 = vmul.f32 %v2693, %v2690
        %2696 = vrot.lane.b32.xlu0 %v2694, 127
        %v2697 = vpop.permute.xlu0 %2696
        %v2699 = vadd.f32 %v2692, %v2697
        %v2700 = vstv %s2610
        %v2701 = vmul.f32 %v2700, %v2690
        %2703 = vrot.lane.b32.xlu0 %v2701, 126
        %v2704 = vpop.permute.xlu0 %2703
        %v2706 = vadd.f32 %v2699, %v2704
        %v2707 = vxor.u32 %v2706, 2147483648
        %v2708 = vmul.f32 %v2707, 1.442695
        %v2709 = vpow.pop %v2708
        %v2710 = vadd.f32 %v2709, 1.0
        %v2711 = vrcp.pop %v2710
        %v2712 = vmul.f32 1.0, %v2711
        %v2713 = vmul.f32 %v2712, %v2712
        %v2714 = vlaneseq
        %v2715 = vshrl.u32 %v2714, 7
        %v2716 = vsub.s32 0, %v2715
        %v2717 = vrot.slane %v2713, %v2716
        %v2718 = vmul.f32 %v2482, %v2717
        %v2719 = vmul.f32 %v2485, %v2717
        %v2720 = vmul.f32 %v2490, %v2717
        %v2721 = vmul.f32 %v2493, %v2717
        %v2722 = vmul.f32 %v2498, %v2717
        %v2723 = vmul.f32 %v2501, %v2717
        %v2724 = vmul.f32 %v2506, %v2717
        %v2725 = vmul.f32 %v2509, %v2717
        %v2726 = vmul.f32 %v2514, %v2717
        %v2727 = vmul.f32 %v2517, %v2717
        %v2728 = vmul.f32 %v2522, %v2717
        %v2729 = vmul.f32 %v2525, %v2717
        %v2730 = vmul.f32 %v2530, %v2717
        %v2731 = vmul.f32 %v2533, %v2717
        %v2732 = vmul.f32 %v2538, %v2717
        %v2733 = vmul.f32 %v2541, %v2717
        %v2734 = vmul.f32 %v2546, %v2717
        %v2735 = vmul.f32 %v2549, %v2717
        %v2736 = vmul.f32 %v2554, %v2717
        %v2737 = vmul.f32 %v2557, %v2717
        %v2738 = vmul.f32 %v2562, %v2717
        %v2739 = vmul.f32 %v2565, %v2717
        %v2740 = vmul.f32 %v2570, %v2717
        %v2741 = vmul.f32 %v2573, %v2717
        %v2742 = vmul.f32 %v2578, %v2717
        %v2743 = vmul.f32 %v2581, %v2717
        %v2744 = vmul.f32 %v2586, %v2717
        %v2745 = vmul.f32 %v2589, %v2717
        %v2746 = vmul.f32 %v2594, %v2717
        %v2747 = vmul.f32 %v2597, %v2717
        %v2748 = vmul.f32 %v2602, %v2717
        %v2749 = vmul.f32 %v2605, %v2717
        %v2782 = vrot.slane %v2718, 7
        %v2783 = vrot.slane %v2719, 7
        %v2784 = vsel %vm1019, %v2782, %v2783
        %v2785 = vrot.slane %v2720, 7
        %v2786 = vrot.slane %v2721, 7
        %v2787 = vsel %vm1019, %v2785, %v2786
        %v2788 = vrot.slane %v2722, 7
        %v2789 = vrot.slane %v2723, 7
        %v2790 = vsel %vm1019, %v2788, %v2789
        %v2791 = vrot.slane %v2724, 7
        %v2792 = vrot.slane %v2725, 7
        %v2793 = vsel %vm1019, %v2791, %v2792
        %v2794 = vrot.slane %v2726, 7
        %v2795 = vrot.slane %v2727, 7
        %v2796 = vsel %vm1019, %v2794, %v2795
        %v2797 = vrot.slane %v2728, 7
        %v2798 = vrot.slane %v2729, 7
        %v2799 = vsel %vm1019, %v2797, %v2798
        %v2800 = vrot.slane %v2730, 7
        %v2801 = vrot.slane %v2731, 7
        %v2802 = vsel %vm1019, %v2800, %v2801
        %v2803 = vrot.slane %v2732, 7
        %v2804 = vrot.slane %v2733, 7
        %v2805 = vsel %vm1019, %v2803, %v2804
        %v2806 = vrot.slane %v2734, 7
        %v2807 = vrot.slane %v2735, 7
        %v2808 = vsel %vm1019, %v2806, %v2807
        %v2809 = vrot.slane %v2736, 7
        %v2810 = vrot.slane %v2737, 7
        %v2811 = vsel %vm1019, %v2809, %v2810
        %v2812 = vrot.slane %v2738, 7
        %v2813 = vrot.slane %v2739, 7
        %v2814 = vsel %vm1019, %v2812, %v2813
        %v2815 = vrot.slane %v2740, 7
        %v2816 = vrot.slane %v2741, 7
        %v2817 = vsel %vm1019, %v2815, %v2816
        %v2818 = vrot.slane %v2742, 7
        %v2819 = vrot.slane %v2743, 7
        %v2820 = vsel %vm1019, %v2818, %v2819
        %v2821 = vrot.slane %v2744, 7
        %v2822 = vrot.slane %v2745, 7
        %v2823 = vsel %vm1019, %v2821, %v2822
        %v2824 = vrot.slane %v2746, 7
        %v2825 = vrot.slane %v2747, 7
        %v2826 = vsel %vm1019, %v2824, %v2825
        %v2827 = vrot.slane %v2748, 7
        %v2828 = vrot.slane %v2749, 7
        %v2829 = vsel %vm1019, %v2827, %v2828
        %v2878 = vsel %vm1019, 0.0, %v2782
        %v2879 = vsel %vm1019, 0.0, %v2785
        %v2880 = vsel %vm1019, 0.0, %v2788
        %v2881 = vsel %vm1019, 0.0, %v2791
        %v2882 = vsel %vm1019, 0.0, %v2794
        %v2883 = vsel %vm1019, 0.0, %v2797
        %v2884 = vsel %vm1019, 0.0, %v2800
        %v2885 = vsel %vm1019, 0.0, %v2803
        %v2886 = vsel %vm1019, 0.0, %v2806
        %v2887 = vsel %vm1019, 0.0, %v2809
        %v2888 = vsel %vm1019, 0.0, %v2812
        %v2889 = vsel %vm1019, 0.0, %v2815
        %v2890 = vsel %vm1019, 0.0, %v2818
        %v2891 = vsel %vm1019, 0.0, %v2821
        %v2892 = vsel %vm1019, 0.0, %v2824
        %v2893 = vsel %vm1019, 0.0, %v2827
        %v2894 = vsel %vm1019, %v2783, 0.0
        %v2895 = vsel %vm1019, %v2786, 0.0
        %v2896 = vsel %vm1019, %v2789, 0.0
        %v2897 = vsel %vm1019, %v2792, 0.0
        %v2898 = vsel %vm1019, %v2795, 0.0
        %v2899 = vsel %vm1019, %v2798, 0.0
        %v2900 = vsel %vm1019, %v2801, 0.0
        %v2901 = vsel %vm1019, %v2804, 0.0
        %v2902 = vsel %vm1019, %v2807, 0.0
        %v2903 = vsel %vm1019, %v2810, 0.0
        %v2904 = vsel %vm1019, %v2813, 0.0
        %v2905 = vsel %vm1019, %v2816, 0.0
        %v2906 = vsel %vm1019, %v2819, 0.0
        %v2907 = vsel %vm1019, %v2822, 0.0
        %v2908 = vsel %vm1019, %v2825, 0.0
        %v2909 = vsel %vm1019, %v2828, 0.0
        %2910 = vst.msk [vmem:[#allocation2] sm:$0xff] %vm2611, 0.0
        %2911 = vst.msk [vmem:[#allocation2 + $0x8] sm:$0xff] %vm2611, 0.0
        %vm2912 = vcmask 386048
        %2913 = vst.msk [vmem:[#allocation2 + $0x10] sm:$0x3] %vm2912, 0.0
        %2914 = vst.msk [vmem:[#allocation2 + $0x18] sm:$0xff] %vm2611, %v2878
        %2915 = vst.msk [vmem:[#allocation2 + $0x20] sm:$0xff] %vm2611, %v2784
        %2916 = vst.msk [vmem:[#allocation2 + $0x28] sm:$0x3] %vm2912, %v2894
        %2917 = vst.msk [vmem:[#allocation2 + $0x30] sm:$0xff] %vm2611, %v2879
        %2918 = vst.msk [vmem:[#allocation2 + $0x38] sm:$0xff] %vm2611, %v2787
        %2919 = vst.msk [vmem:[#allocation2 + $0x40] sm:$0x3] %vm2912, %v2895
        %2920 = vst.msk [vmem:[#allocation2 + $0x48] sm:$0xff] %vm2611, %v2880
        %2921 = vst.msk [vmem:[#allocation2 + $0x50] sm:$0xff] %vm2611, %v2790
        %2922 = vst.msk [vmem:[#allocation2 + $0x58] sm:$0x3] %vm2912, %v2896
        %2923 = vst.msk [vmem:[#allocation2 + $0x60] sm:$0xff] %vm2611, %v2881
        %2924 = vst.msk [vmem:[#allocation2 + $0x68] sm:$0xff] %vm2611, %v2793
        %2925 = vst.msk [vmem:[#allocation2 + $0x70] sm:$0x3] %vm2912, %v2897
        %2926 = vst.msk [vmem:[#allocation2 + $0x78] sm:$0xff] %vm2611, %v2882
        %2927 = vst.msk [vmem:[#allocation2 + $0x80] sm:$0xff] %vm2611, %v2796
        %2928 = vst.msk [vmem:[#allocation2 + $0x88] sm:$0x3] %vm2912, %v2898
        %2929 = vst.msk [vmem:[#allocation2 + $0x90] sm:$0xff] %vm2611, %v2883
        %2930 = vst.msk [vmem:[#allocation2 + $0x98] sm:$0xff] %vm2611, %v2799
        %2931 = vst.msk [vmem:[#allocation2 + $0xa0] sm:$0x3] %vm2912, %v2899
        %2932 = vst.msk [vmem:[#allocation2 + $0xa8] sm:$0xff] %vm2611, %v2884
        %2933 = vst.msk [vmem:[#allocation2 + $0xb0] sm:$0xff] %vm2611, %v2802
        %2934 = vst.msk [vmem:[#allocation2 + $0xb8] sm:$0x3] %vm2912, %v2900
        %2935 = vst.msk [vmem:[#allocation2 + $0xc0] sm:$0xff] %vm2611, %v2885
        %2936 = vst.msk [vmem:[#allocation2 + $0xc8] sm:$0xff] %vm2611, %v2805
        %2937 = vst.msk [vmem:[#allocation2 + $0xd0] sm:$0x3] %vm2912, %v2901
        %2938 = vst.msk [vmem:[#allocation2 + $0xd8] sm:$0xff] %vm2611, %v2886
        %2939 = vst.msk [vmem:[#allocation2 + $0xe0] sm:$0xff] %vm2611, %v2808
        %2940 = vst.msk [vmem:[#allocation2 + $0xe8] sm:$0x3] %vm2912, %v2902
        %2941 = vst.msk [vmem:[#allocation2 + $0xf0] sm:$0xff] %vm2611, %v2887
        %2942 = vst.msk [vmem:[#allocation2 + $0xf8] sm:$0xff] %vm2611, %v2811
        %2943 = vst.msk [vmem:[#allocation2 + $0x100] sm:$0x3] %vm2912, %v2903
        %2944 = vst.msk [vmem:[#allocation2 + $0x108] sm:$0xff] %vm2611, %v2888
        %2945 = vst.msk [vmem:[#allocation2 + $0x110] sm:$0xff] %vm2611, %v2814
        %2946 = vst.msk [vmem:[#allocation2 + $0x118] sm:$0x3] %vm2912, %v2904
        %2947 = vst.msk [vmem:[#allocation2 + $0x120] sm:$0xff] %vm2611, %v2889
        %2948 = vst.msk [vmem:[#allocation2 + $0x128] sm:$0xff] %vm2611, %v2817
        %2949 = vst.msk [vmem:[#allocation2 + $0x130] sm:$0x3] %vm2912, %v2905
        %2950 = vst.msk [vmem:[#allocation2 + $0x138] sm:$0xff] %vm2611, %v2890
        %2951 = vst.msk [vmem:[#allocation2 + $0x140] sm:$0xff] %vm2611, %v2820
        %2952 = vst.msk [vmem:[#allocation2 + $0x148] sm:$0x3] %vm2912, %v2906
        %2953 = vst.msk [vmem:[#allocation2 + $0x150] sm:$0xff] %vm2611, %v2891
        %2954 = vst.msk [vmem:[#allocation2 + $0x158] sm:$0xff] %vm2611, %v2823
        %2955 = vst.msk [vmem:[#allocation2 + $0x160] sm:$0x3] %vm2912, %v2907
        %2956 = vst.msk [vmem:[#allocation2 + $0x168] sm:$0xff] %vm2611, %v2892
        %2957 = vst.msk [vmem:[#allocation2 + $0x170] sm:$0xff] %vm2611, %v2826
        %2958 = vst.msk [vmem:[#allocation2 + $0x178] sm:$0x3] %vm2912, %v2908
        %2959 = vst.msk [vmem:[#allocation2 + $0x180] sm:$0xff] %vm2611, %v2893
        %2960 = vst.msk [vmem:[#allocation2 + $0x188] sm:$0xff] %vm2611, %v2829
        %2961 = vst.msk [vmem:[#allocation2 + $0x190] sm:$0x3] %vm2912, %v2909
        %2962 = vst.msk [vmem:[#allocation2 + $0x198] sm:$0xff] %vm2611, 0.0
        %2963 = vst.msk [vmem:[#allocation2 + $0x1a0] sm:$0xff] %vm2611, 0.0
        %2964 = vst.msk [vmem:[#allocation2 + $0x1a8] sm:$0x3] %vm2912, 0.0
        %v2965 = vld [vmem:[#allocation2] ss:$2 sm:$0xff]
        %s2966 = scalar_lea.vmem [#allocation2], 48
        %v2967 = vld [vmem:[%s2966] ss:$2 sm:$0xff]
        %s2968 = scalar_lea.vmem [#allocation2], 96
        %v2969 = vld [vmem:[%s2968] ss:$2 sm:$0xff]
        %s2970 = scalar_lea.vmem [#allocation2], 144
        %v2971 = vld [vmem:[%s2970] ss:$2 sm:$0xff]
        %s2972 = scalar_lea.vmem [#allocation2], 192
        %v2973 = vld [vmem:[%s2972] ss:$2 sm:$0xff]
        %s2974 = scalar_lea.vmem [#allocation2], 240
        %v2975 = vld [vmem:[%s2974] ss:$2 sm:$0xff]
        %s2976 = scalar_lea.vmem [#allocation2], 288
        %v2977 = vld [vmem:[%s2976] ss:$2 sm:$0xff]
        %s2978 = scalar_lea.vmem [#allocation2], 336
        %v2979 = vld [vmem:[%s2978] ss:$2 sm:$0xff]
        %v2980 = vpack.c.bf16 %v2967, %v2965
        %v2981 = vpack.c.bf16 %v2971, %v2969
        %v2982 = vpack.c.bf16 %v2975, %v2973
        %v2983 = vpack.c.bf16 %v2979, %v2977
        %v2984 = vld [vmem:[%s2] sm:$0xf]
        %v2985 = vld [vmem:[%s2 + $0x4] sm:$0xf]
        %v2986 = vld [vmem:[%s2 + $0x8] sm:$0xf]
        %v2987 = vld [vmem:[%s2 + $0xc] sm:$0xf]
        %v2988 = vld [vmem:[%s2 + $0x10] sm:$0xf]
        %v2989 = vld [vmem:[%s2 + $0x14] sm:$0xf]
        %s2990 = scalar_lea.vmem [#allocation2], 1
        %v2991 = vld [vmem:[%s2990] ss:$2 sm:$0xff]
        %s2992 = scalar_lea.vmem [#allocation2], 49
        %v2993 = vld [vmem:[%s2992] ss:$2 sm:$0xff]
        %s2994 = scalar_lea.vmem [#allocation2], 97
        %v2995 = vld [vmem:[%s2994] ss:$2 sm:$0xff]
        %s2996 = scalar_lea.vmem [#allocation2], 145
        %v2997 = vld [vmem:[%s2996] ss:$2 sm:$0xff]
        %s2998 = scalar_lea.vmem [#allocation2], 193
        %v2999 = vld [vmem:[%s2998] ss:$2 sm:$0xff]
        %s3000 = scalar_lea.vmem [#allocation2], 241
        %v3001 = vld [vmem:[%s3000] ss:$2 sm:$0xff]
        %s3002 = scalar_lea.vmem [#allocation2], 289
        %v3003 = vld [vmem:[%s3002] ss:$2 sm:$0xff]
        %s3004 = scalar_lea.vmem [#allocation2], 337
        %v3005 = vld [vmem:[%s3004] ss:$2 sm:$0xff]
        %v3006 = vpack.c.bf16 %v2993, %v2991
        %v3007 = vpack.c.bf16 %v2997, %v2995
        %v3008 = vpack.c.bf16 %v3001, %v2999
        %v3009 = vpack.c.bf16 %v3005, %v3003
        %s3010 = scalar_lea.vmem %s2, 24
        %v3011 = vld [vmem:[%s3010] sm:$0xf]
        %v3012 = vld [vmem:[%s3010 + $0x4] sm:$0xf]
        %v3013 = vld [vmem:[%s3010 + $0x8] sm:$0xf]
        %v3014 = vld [vmem:[%s3010 + $0xc] sm:$0xf]
        %v3015 = vld [vmem:[%s3010 + $0x10] sm:$0xf]
        %v3016 = vld [vmem:[%s3010 + $0x14] sm:$0xf]
        %v3023 = vunpack.c.l.b16 %v3011
        %v3024 = vunpack.c.l.b16 %v3012
        %v3025 = vunpack.c.l.b16 %v3013
        %v3026 = vunpack.c.l.b16 %v3014
        %v3027 = vunpack.c.l.b16 %v3015
        %v3028 = vunpack.c.l.b16 %v3016
        %v3029 = vpack.c.b16 %v3024, %v3023
        %v3030 = vpack.c.b16 %v3026, %v3025
        %v3031 = vpack.c.b16 %v3028, %v3027
        %v3036 = vsel %vm2611, %v3006, 0
        %v3039 = vsel %vm2611, %v3007, 0
        %v3042 = vsel %vm2611, %v3008, 0
        %v3045 = vsel %vm2611, %v3009, 0
        %3047 = vmatprep.subr.bf16.mxu0 0
        %3048 = vmatpush1.bf16.msra.mxu0 %v3029
        %3049 = vmatprep.subr.bf16.mxu0 0
        %3050 = vmatpush1.bf16.msra.mxu0 %v3030
        %3051 = vmatprep.subr.bf16.mxu0 0
        %3052 = vmatpush1.bf16.msra.mxu0 %v3031
        %3053 = vmatprep.subr.bf16.mxu0 0
        %3054 = vmatpush1.bf16.msra.mxu0 0
        %3055 = vmatprep.subr.bf16.mxu0 0
        %3056 = vmatpush1.bf16.msra.mxu0 0
        %3057 = vmatprep.subr.bf16.mxu0 0
        %3058 = vmatpush1.bf16.msra.mxu0 0
        %3059 = vmatprep.subr.bf16.mxu0 0
        %3060 = vmatpush1.bf16.msra.mxu0 0
        %3061 = vmatprep.subr.bf16.mxu0 0
        %3062 = vmatpush1.bf16.msra.mxu0 0
        %3063 = vmatprep.subr.bf16.mxu0 0
        %3064 = vmatpush1.bf16.msra.mxu0 0
        %3065 = vmatprep.subr.bf16.mxu0 0
        %3066 = vmatpush1.bf16.msra.mxu0 0
        %3067 = vmatprep.subr.bf16.mxu0 0
        %3068 = vmatpush1.bf16.msra.mxu0 0
        %3069 = vmatprep.subr.bf16.mxu0 0
        %3070 = vmatpush1.bf16.msra.mxu0 0
        %3071 = vmatprep.subr.bf16.mxu0 0
        %3072 = vmatpush1.bf16.msra.mxu0 0
        %3073 = vmatprep.subr.bf16.mxu0 0
        %3074 = vmatpush1.bf16.msra.mxu0 0
        %3075 = vmatprep.subr.bf16.mxu0 0
        %3076 = vmatpush1.bf16.msra.mxu0 0
        %3077 = vmatprep.subr.bf16.mxu0 0
        %3078 = vmatpush1.bf16.msra.mxu0 0
        %3079 = vmatprep.mubr.bf16.mxu0 0
        %3080 = vmatmul.mubr.bf16.gmra.mrb[0].mxu0 %v3036
        %v3081 = vpop.f32.mrb[0].mxu0
        %v3082 = vadd.f32 0.0, %v3081
        %v3083 = vpop.f32.mrb[0].mxu0
        %v3084 = vpop.f32.mrb[0].mxu0
        %v3085 = vadd.f32 0.0, %v3084
        %v3086 = vpop.f32.mrb[0].mxu0
        %3087 = vmatprep.mubr.bf16.mxu0 0
        %3088 = vmatmul.mubr.bf16.gmra.mrb[0].mxu0 %v3039
        %v3089 = vpop.f32.mrb[0].mxu0
        %v3090 = vadd.f32 0.0, %v3089
        %v3091 = vpop.f32.mrb[0].mxu0
        %v3092 = vpop.f32.mrb[0].mxu0
        %v3093 = vadd.f32 0.0, %v3092
        %v3094 = vpop.f32.mrb[0].mxu0
        %3095 = vmatprep.mubr.bf16.mxu0 0
        %3096 = vmatmul.mubr.bf16.gmra.mrb[0].mxu0 %v3042
        %v3097 = vpop.f32.mrb[0].mxu0
        %v3098 = vadd.f32 0.0, %v3097
        %v3099 = vpop.f32.mrb[0].mxu0
        %v3100 = vpop.f32.mrb[0].mxu0
        %v3101 = vadd.f32 0.0, %v3100
        %v3102 = vpop.f32.mrb[0].mxu0
        %3103 = vmatprep.mubr.bf16.mxu0 0
        %3104 = vmatmul.mubr.bf16.gmra.mrb[0].mxu0 %v3045
        %v3105 = vpop.f32.mrb[0].mxu0
        %v3106 = vadd.f32 0.0, %v3105
        %v3107 = vpop.f32.mrb[0].mxu0
        %v3108 = vpop.f32.mrb[0].mxu0
        %v3109 = vadd.f32 0.0, %v3108
        %v3110 = vpop.f32.mrb[0].mxu0
        %3111 = vdwg.mxu0
        %v3118 = vunpack.c.l.b16 %v2984
        %v3119 = vunpack.c.l.b16 %v2985
        %v3120 = vunpack.c.l.b16 %v2986
        %v3121 = vunpack.c.l.b16 %v2987
        %v3122 = vunpack.c.l.b16 %v2988
        %v3123 = vunpack.c.l.b16 %v2989
        %v3124 = vpack.c.b16 %v3119, %v3118
        %v3125 = vpack.c.b16 %v3121, %v3120
        %v3126 = vpack.c.b16 %v3123, %v3122
        %v3131 = vsel %vm2611, %v2980, 0
        %v3134 = vsel %vm2611, %v2981, 0
        %v3137 = vsel %vm2611, %v2982, 0
        %v3140 = vsel %vm2611, %v2983, 0
        %3142 = vmatprep.subr.bf16.mxu0 0
        %3143 = vmatpush1.bf16.msra.mxu0 %v3124
        %3144 = vmatprep.subr.bf16.mxu0 0
        %3145 = vmatpush1.bf16.msra.mxu0 %v3125
        %3146 = vmatprep.subr.bf16.mxu0 0
        %3147 = vmatpush1.bf16.msra.mxu0 %v3126
        %3148 = vmatprep.subr.bf16.mxu0 0
        %3149 = vmatpush1.bf16.msra.mxu0 0
        %3150 = vmatprep.subr.bf16.mxu0 0
        %3151 = vmatpush1.bf16.msra.mxu0 0
        %3152 = vmatprep.subr.bf16.mxu0 0
        %3153 = vmatpush1.bf16.msra.mxu0 0
        %3154 = vmatprep.subr.bf16.mxu0 0
        %3155 = vmatpush1.bf16.msra.mxu0 0
        %3156 = vmatprep.subr.bf16.mxu0 0
        %3157 = vmatpush1.bf16.msra.mxu0 0
        %3158 = vmatprep.subr.bf16.mxu0 0
        %3159 = vmatpush1.bf16.msra.mxu0 0
        %3160 = vmatprep.subr.bf16.mxu0 0
        %3161 = vmatpush1.bf16.msra.mxu0 0
        %3162 = vmatprep.subr.bf16.mxu0 0
        %3163 = vmatpush1.bf16.msra.mxu0 0
        %3164 = vmatprep.subr.bf16.mxu0 0
        %3165 = vmatpush1.bf16.msra.mxu0 0
        %3166 = vmatprep.subr.bf16.mxu0 0
        %3167 = vmatpush1.bf16.msra.mxu0 0
        %3168 = vmatprep.subr.bf16.mxu0 0
        %3169 = vmatpush1.bf16.msra.mxu0 0
        %3170 = vmatprep.subr.bf16.mxu0 0
        %3171 = vmatpush1.bf16.msra.mxu0 0
        %3172 = vmatprep.subr.bf16.mxu0 0
        %3173 = vmatpush1.bf16.msra.mxu0 0
        %3174 = vmatprep.mubr.bf16.mxu0 0
        %3175 = vmatmul.mubr.bf16.gmra.mrb[0].mxu0 %v3131
        %v3176 = vpop.f32.mrb[0].mxu0
        %v3177 = vadd.f32 %v3082, %v3176
        %v3178 = vpop.f32.mrb[0].mxu0
        %v3179 = vpop.f32.mrb[0].mxu0
        %v3180 = vadd.f32 %v3085, %v3179
        %v3181 = vpop.f32.mrb[0].mxu0
        %3182 = vmatprep.mubr.bf16.mxu0 0
        %3183 = vmatmul.mubr.bf16.gmra.mrb[0].mxu0 %v3134
        %v3184 = vpop.f32.mrb[0].mxu0
        %v3185 = vadd.f32 %v3090, %v3184
        %v3186 = vpop.f32.mrb[0].mxu0
        %v3187 = vpop.f32.mrb[0].mxu0
        %v3188 = vadd.f32 %v3093, %v3187
        %v3189 = vpop.f32.mrb[0].mxu0
        %3190 = vmatprep.mubr.bf16.mxu0 0
        %3191 = vmatmul.mubr.bf16.gmra.mrb[0].mxu0 %v3137
        %v3192 = vpop.f32.mrb[0].mxu0
        %v3193 = vadd.f32 %v3098, %v3192
        %v3194 = vpop.f32.mrb[0].mxu0
        %v3195 = vpop.f32.mrb[0].mxu0
        %v3196 = vadd.f32 %v3101, %v3195
        %v3197 = vpop.f32.mrb[0].mxu0
        %3198 = vmatprep.mubr.bf16.mxu0 0
        %3199 = vmatmul.mubr.bf16.gmra.mrb[0].mxu0 %v3140
        %v3200 = vpop.f32.mrb[0].mxu0
        %v3201 = vadd.f32 %v3106, %v3200
        %v3202 = vpop.f32.mrb[0].mxu0
        %v3203 = vpop.f32.mrb[0].mxu0
        %v3204 = vadd.f32 %v3109, %v3203
        %v3205 = vpop.f32.mrb[0].mxu0
        %3206 = vdwg.mxu0
        %s3207 = scalar_lea.vmem [#allocation2], 2
        %v3208 = vld [vmem:[%s3207] ss:$2 sm:$0xff]
        %s3209 = scalar_lea.vmem [#allocation2], 50
        %v3210 = vld [vmem:[%s3209] ss:$2 sm:$0xff]
        %s3211 = scalar_lea.vmem [#allocation2], 98
        %v3212 = vld [vmem:[%s3211] ss:$2 sm:$0xff]
        %s3213 = scalar_lea.vmem [#allocation2], 146
        %v3214 = vld [vmem:[%s3213] ss:$2 sm:$0xff]
        %s3215 = scalar_lea.vmem [#allocation2], 194
        %v3216 = vld [vmem:[%s3215] ss:$2 sm:$0xff]
        %s3217 = scalar_lea.vmem [#allocation2], 242
        %v3218 = vld [vmem:[%s3217] ss:$2 sm:$0xff]
        %s3219 = scalar_lea.vmem [#allocation2], 290
        %v3220 = vld [vmem:[%s3219] ss:$2 sm:$0xff]
        %s3221 = scalar_lea.vmem [#allocation2], 338
        %v3222 = vld [vmem:[%s3221] ss:$2 sm:$0xff]
        %v3223 = vpack.c.bf16 %v3210, %v3208
        %v3224 = vpack.c.bf16 %v3214, %v3212
        %v3225 = vpack.c.bf16 %v3218, %v3216
        %v3226 = vpack.c.bf16 %v3222, %v3220
        %s3227 = scalar_lea.vmem %s2, 48
        %v3228 = vld [vmem:[%s3227] sm:$0xf]
        %v3229 = vld [vmem:[%s3227 + $0x4] sm:$0xf]
        %v3230 = vld [vmem:[%s3227 + $0x8] sm:$0xf]
        %v3231 = vld [vmem:[%s3227 + $0xc] sm:$0xf]
        %v3232 = vld [vmem:[%s3227 + $0x10] sm:$0xf]
        %v3233 = vld [vmem:[%s3227 + $0x14] sm:$0xf]
        %v3240 = vunpack.c.l.b16 %v3228
        %v3241 = vunpack.c.l.b16 %v3229
        %v3242 = vunpack.c.l.b16 %v3230
        %v3243 = vunpack.c.l.b16 %v3231
        %v3244 = vunpack.c.l.b16 %v3232
        %v3245 = vunpack.c.l.b16 %v3233
        %v3246 = vpack.c.b16 %v3241, %v3240
        %v3247 = vpack.c.b16 %v3243, %v3242
        %v3248 = vpack.c.b16 %v3245, %v3244
        %v3253 = vsel %vm2611, %v3223, 0
        %v3256 = vsel %vm2611, %v3224, 0
        %v3259 = vsel %vm2611, %v3225, 0
        %v3262 = vsel %vm2611, %v3226, 0
        %3264 = vmatprep.subr.bf16.mxu0 0
        %3265 = vmatpush1.bf16.msra.mxu0 %v3246
        %3266 = vmatprep.subr.bf16.mxu0 0
        %3267 = vmatpush1.bf16.msra.mxu0 %v3247
        %3268 = vmatprep.subr.bf16.mxu0 0
        %3269 = vmatpush1.bf16.msra.mxu0 %v3248
        %3270 = vmatprep.subr.bf16.mxu0 0
        %3271 = vmatpush1.bf16.msra.mxu0 0
        %3272 = vmatprep.subr.bf16.mxu0 0
        %3273 = vmatpush1.bf16.msra.mxu0 0
        %3274 = vmatprep.subr.bf16.mxu0 0
        %3275 = vmatpush1.bf16.msra.mxu0 0
        %3276 = vmatprep.subr.bf16.mxu0 0
        %3277 = vmatpush1.bf16.msra.mxu0 0
        %3278 = vmatprep.subr.bf16.mxu0 0
        %3279 = vmatpush1.bf16.msra.mxu0 0
        %3280 = vmatprep.subr.bf16.mxu0 0
        %3281 = vmatpush1.bf16.msra.mxu0 0
        %3282 = vmatprep.subr.bf16.mxu0 0
        %3283 = vmatpush1.bf16.msra.mxu0 0
        %3284 = vmatprep.subr.bf16.mxu0 0
        %3285 = vmatpush1.bf16.msra.mxu0 0
        %3286 = vmatprep.subr.bf16.mxu0 0
        %3287 = vmatpush1.bf16.msra.mxu0 0
        %3288 = vmatprep.subr.bf16.mxu0 0
        %3289 = vmatpush1.bf16.msra.mxu0 0
        %3290 = vmatprep.subr.bf16.mxu0 0
        %3291 = vmatpush1.bf16.msra.mxu0 0
        %3292 = vmatprep.subr.bf16.mxu0 0
        %3293 = vmatpush1.bf16.msra.mxu0 0
        %3294 = vmatprep.subr.bf16.mxu0 0
        %3295 = vmatpush1.bf16.msra.mxu0 0
        %3296 = vmatprep.mubr.bf16.mxu0 0
        %3297 = vmatmul.mubr.bf16.gmra.mrb[0].mxu0 %v3253
        %v3298 = vpop.f32.mrb[0].mxu0
        %v3299 = vadd.f32 0.0, %v3298
        %v3300 = vpop.f32.mrb[0].mxu0
        %v3301 = vpop.f32.mrb[0].mxu0
        %v3302 = vadd.f32 0.0, %v3301
        %v3303 = vpop.f32.mrb[0].mxu0
        %3304 = vmatprep.mubr.bf16.mxu0 0
        %3305 = vmatmul.mubr.bf16.gmra.mrb[0].mxu0 %v3256
        %v3306 = vpop.f32.mrb[0].mxu0
        %v3307 = vadd.f32 0.0, %v3306
        %v3308 = vpop.f32.mrb[0].mxu0
        %v3309 = vpop.f32.mrb[0].mxu0
        %v3310 = vadd.f32 0.0, %v3309
        %v3311 = vpop.f32.mrb[0].mxu0
        %3312 = vmatprep.mubr.bf16.mxu0 0
        %3313 = vmatmul.mubr.bf16.gmra.mrb[0].mxu0 %v3259
        %v3314 = vpop.f32.mrb[0].mxu0
        %v3315 = vadd.f32 0.0, %v3314
        %v3316 = vpop.f32.mrb[0].mxu0
        %v3317 = vpop.f32.mrb[0].mxu0
        %v3318 = vadd.f32 0.0, %v3317
        %v3319 = vpop.f32.mrb[0].mxu0
        %3320 = vmatprep.mubr.bf16.mxu0 0
        %3321 = vmatmul.mubr.bf16.gmra.mrb[0].mxu0 %v3262
        %v3322 = vpop.f32.mrb[0].mxu0
        %v3323 = vadd.f32 0.0, %v3322
        %v3324 = vpop.f32.mrb[0].mxu0
        %v3325 = vpop.f32.mrb[0].mxu0
        %v3326 = vadd.f32 0.0, %v3325
        %v3327 = vpop.f32.mrb[0].mxu0
        %3328 = vdwg.mxu0
        %v3329 = vadd.f32 %v3177, %v3299
        %v3330 = vadd.f32 %v3180, %v3302
        %v3331 = vadd.f32 %v3185, %v3307
        %v3332 = vadd.f32 %v3188, %v3310
        %v3333 = vadd.f32 %v3193, %v3315
        %v3334 = vadd.f32 %v3196, %v3318
        %v3335 = vadd.f32 %v3201, %v3323
        %v3336 = vadd.f32 %v3204, %v3326
        %s3337 = scalar_lea.vmem [#allocation2], 24
        %v3338 = vld [vmem:[%s3337] ss:$2 sm:$0xff]
        %s3339 = scalar_lea.vmem %s3337, 48 [#allocation2]
        %v3340 = vld [vmem:[%s3339] ss:$2 sm:$0xff]
        %s3341 = scalar_lea.vmem %s3337, 96 [#allocation2]
        %v3342 = vld [vmem:[%s3341] ss:$2 sm:$0xff]
        %s3343 = scalar_lea.vmem %s3337, 144 [#allocation2]
        %v3344 = vld [vmem:[%s3343] ss:$2 sm:$0xff]
        %s3345 = scalar_lea.vmem %s3337, 192 [#allocation2]
        %v3346 = vld [vmem:[%s3345] ss:$2 sm:$0xff]
        %s3347 = scalar_lea.vmem %s3337, 240 [#allocation2]
        %v3348 = vld [vmem:[%s3347] ss:$2 sm:$0xff]
        %s3349 = scalar_lea.vmem %s3337, 288 [#allocation2]
        %v3350 = vld [vmem:[%s3349] ss:$2 sm:$0xff]
        %s3351 = scalar_lea.vmem %s3337, 336 [#allocation2]
        %v3352 = vld [vmem:[%s3351] ss:$2 sm:$0xff]
        %v3353 = vpack.c.bf16 %v3340, %v3338
        %v3354 = vpack.c.bf16 %v3344, %v3342
        %v3355 = vpack.c.bf16 %v3348, %v3346
        %v3356 = vpack.c.bf16 %v3352, %v3350
        %s3357 = scalar_lea.vmem %s2, 72
        %v3358 = vld [vmem:[%s3357] sm:$0xf]
        %v3359 = vld [vmem:[%s3357 + $0x4] sm:$0xf]
        %v3360 = vld [vmem:[%s3357 + $0x8] sm:$0xf]
        %v3361 = vld [vmem:[%s3357 + $0xc] sm:$0xf]
        %v3362 = vld [vmem:[%s3357 + $0x10] sm:$0xf]
        %v3363 = vld [vmem:[%s3357 + $0x14] sm:$0xf]
        %v3370 = vunpack.c.l.b16 %v3358
        %v3371 = vunpack.c.l.b16 %v3359
        %v3372 = vunpack.c.l.b16 %v3360
        %v3373 = vunpack.c.l.b16 %v3361
        %v3374 = vunpack.c.l.b16 %v3362
        %v3375 = vunpack.c.l.b16 %v3363
        %v3376 = vpack.c.b16 %v3371, %v3370
        %v3377 = vpack.c.b16 %v3373, %v3372
        %v3378 = vpack.c.b16 %v3375, %v3374
        %v3383 = vsel %vm2611, %v3353, 0
        %v3386 = vsel %vm2611, %v3354, 0
        %v3389 = vsel %vm2611, %v3355, 0
        %v3392 = vsel %vm2611, %v3356, 0
        %3394 = vmatprep.subr.bf16.mxu0 0
        %3395 = vmatpush1.bf16.msra.mxu0 %v3376
        %3396 = vmatprep.subr.bf16.mxu0 0
        %3397 = vmatpush1.bf16.msra.mxu0 %v3377
        %3398 = vmatprep.subr.bf16.mxu0 0
        %3399 = vmatpush1.bf16.msra.mxu0 %v3378
        %3400 = vmatprep.subr.bf16.mxu0 0
        %3401 = vmatpush1.bf16.msra.mxu0 0
        %3402 = vmatprep.subr.bf16.mxu0 0
        %3403 = vmatpush1.bf16.msra.mxu0 0
        %3404 = vmatprep.subr.bf16.mxu0 0
        %3405 = vmatpush1.bf16.msra.mxu0 0
        %3406 = vmatprep.subr.bf16.mxu0 0
        %3407 = vmatpush1.bf16.msra.mxu0 0
        %3408 = vmatprep.subr.bf16.mxu0 0
        %3409 = vmatpush1.bf16.msra.mxu0 0
        %3410 = vmatprep.subr.bf16.mxu0 0
        %3411 = vmatpush1.bf16.msra.mxu0 0
        %3412 = vmatprep.subr.bf16.mxu0 0
        %3413 = vmatpush1.bf16.msra.mxu0 0
        %3414 = vmatprep.subr.bf16.mxu0 0
        %3415 = vmatpush1.bf16.msra.mxu0 0
        %3416 = vmatprep.subr.bf16.mxu0 0
        %3417 = vmatpush1.bf16.msra.mxu0 0
        %3418 = vmatprep.subr.bf16.mxu0 0
        %3419 = vmatpush1.bf16.msra.mxu0 0
        %3420 = vmatprep.subr.bf16.mxu0 0
        %3421 = vmatpush1.bf16.msra.mxu0 0
        %3422 = vmatprep.subr.bf16.mxu0 0
        %3423 = vmatpush1.bf16.msra.mxu0 0
        %3424 = vmatprep.subr.bf16.mxu0 0
        %3425 = vmatpush1.bf16.msra.mxu0 0
        %3426 = vmatprep.mubr.bf16.mxu0 0
        %3427 = vmatmul.mubr.bf16.gmra.mrb[0].mxu0 %v3383
        %v3428 = vpop.f32.mrb[0].mxu0
        %v3429 = vadd.f32 0.0, %v3428
        %v3430 = vpop.f32.mrb[0].mxu0
        %v3431 = vpop.f32.mrb[0].mxu0
        %v3432 = vadd.f32 0.0, %v3431
        %v3433 = vpop.f32.mrb[0].mxu0
        %3434 = vmatprep.mubr.bf16.mxu0 0
        %3435 = vmatmul.mubr.bf16.gmra.mrb[0].mxu0 %v3386
        %v3436 = vpop.f32.mrb[0].mxu0
        %v3437 = vadd.f32 0.0, %v3436
        %v3438 = vpop.f32.mrb[0].mxu0
        %v3439 = vpop.f32.mrb[0].mxu0
        %v3440 = vadd.f32 0.0, %v3439
        %v3441 = vpop.f32.mrb[0].mxu0
        %3442 = vmatprep.mubr.bf16.mxu0 0
        %3443 = vmatmul.mubr.bf16.gmra.mrb[0].mxu0 %v3389
        %v3444 = vpop.f32.mrb[0].mxu0
        %v3445 = vadd.f32 0.0, %v3444
        %v3446 = vpop.f32.mrb[0].mxu0
        %v3447 = vpop.f32.mrb[0].mxu0
        %v3448 = vadd.f32 0.0, %v3447
        %v3449 = vpop.f32.mrb[0].mxu0
        %3450 = vmatprep.mubr.bf16.mxu0 0
        %3451 = vmatmul.mubr.bf16.gmra.mrb[0].mxu0 %v3392
        %v3452 = vpop.f32.mrb[0].mxu0
        %v3453 = vadd.f32 0.0, %v3452
        %v3454 = vpop.f32.mrb[0].mxu0
        %v3455 = vpop.f32.mrb[0].mxu0
        %v3456 = vadd.f32 0.0, %v3455
        %v3457 = vpop.f32.mrb[0].mxu0
        %3458 = vdwg.mxu0
        %v3459 = vadd.f32 %v3329, %v3429
        %v3460 = vadd.f32 %v3330, %v3432
        %v3461 = vadd.f32 %v3331, %v3437
        %v3462 = vadd.f32 %v3332, %v3440
        %v3463 = vadd.f32 %v3333, %v3445
        %v3464 = vadd.f32 %v3334, %v3448
        %v3465 = vadd.f32 %v3335, %v3453
        %v3466 = vadd.f32 %v3336, %v3456
        %s3467 = scalar_lea.vmem %s3337, 1 [#allocation2]
        %v3468 = vld [vmem:[%s3467] ss:$2 sm:$0xff]
        %s3469 = scalar_lea.vmem %s3337, 49 [#allocation2]
        %v3470 = vld [vmem:[%s3469] ss:$2 sm:$0xff]
        %s3471 = scalar_lea.vmem %s3337, 97 [#allocation2]
        %v3472 = vld [vmem:[%s3471] ss:$2 sm:$0xff]
        %s3473 = scalar_lea.vmem %s3337, 145 [#allocation2]
        %v3474 = vld [vmem:[%s3473] ss:$2 sm:$0xff]
        %s3475 = scalar_lea.vmem %s3337, 193 [#allocation2]
        %v3476 = vld [vmem:[%s3475] ss:$2 sm:$0xff]
        %s3477 = scalar_lea.vmem %s3337, 241 [#allocation2]
        %v3478 = vld [vmem:[%s3477] ss:$2 sm:$0xff]
        %s3479 = scalar_lea.vmem %s3337, 289 [#allocation2]
        %v3480 = vld [vmem:[%s3479] ss:$2 sm:$0xff]
        %s3481 = scalar_lea.vmem %s3337, 337 [#allocation2]
        %v3482 = vld [vmem:[%s3481] ss:$2 sm:$0xff]
        %v3483 = vpack.c.bf16 %v3470, %v3468
        %v3484 = vpack.c.bf16 %v3474, %v3472
        %v3485 = vpack.c.bf16 %v3478, %v3476
        %v3486 = vpack.c.bf16 %v3482, %v3480
        %s3487 = scalar_lea.vmem %s2, 96
        %v3488 = vld [vmem:[%s3487] sm:$0xf]
        %v3489 = vld [vmem:[%s3487 + $0x4] sm:$0xf]
        %v3490 = vld [vmem:[%s3487 + $0x8] sm:$0xf]
        %v3491 = vld [vmem:[%s3487 + $0xc] sm:$0xf]
        %v3492 = vld [vmem:[%s3487 + $0x10] sm:$0xf]
        %v3493 = vld [vmem:[%s3487 + $0x14] sm:$0xf]
        %v3500 = vunpack.c.l.b16 %v3488
        %v3501 = vunpack.c.l.b16 %v3489
        %v3502 = vunpack.c.l.b16 %v3490
        %v3503 = vunpack.c.l.b16 %v3491
        %v3504 = vunpack.c.l.b16 %v3492
        %v3505 = vunpack.c.l.b16 %v3493
        %v3506 = vpack.c.b16 %v3501, %v3500
        %v3507 = vpack.c.b16 %v3503, %v3502
        %v3508 = vpack.c.b16 %v3505, %v3504
        %v3513 = vsel %vm2611, %v3483, 0
        %v3516 = vsel %vm2611, %v3484, 0
        %v3519 = vsel %vm2611, %v3485, 0
        %v3522 = vsel %vm2611, %v3486, 0
        %3524 = vmatprep.subr.bf16.mxu0 0
        %3525 = vmatpush1.bf16.msra.mxu0 %v3506
        %3526 = vmatprep.subr.bf16.mxu0 0
        %3527 = vmatpush1.bf16.msra.mxu0 %v3507
        %3528 = vmatprep.subr.bf16.mxu0 0
        %3529 = vmatpush1.bf16.msra.mxu0 %v3508
        %3530 = vmatprep.subr.bf16.mxu0 0
        %3531 = vmatpush1.bf16.msra.mxu0 0
        %3532 = vmatprep.subr.bf16.mxu0 0
        %3533 = vmatpush1.bf16.msra.mxu0 0
        %3534 = vmatprep.subr.bf16.mxu0 0
        %3535 = vmatpush1.bf16.msra.mxu0 0
        %3536 = vmatprep.subr.bf16.mxu0 0
        %3537 = vmatpush1.bf16.msra.mxu0 0
        %3538 = vmatprep.subr.bf16.mxu0 0
        %3539 = vmatpush1.bf16.msra.mxu0 0
        %3540 = vmatprep.subr.bf16.mxu0 0
        %3541 = vmatpush1.bf16.msra.mxu0 0
        %3542 = vmatprep.subr.bf16.mxu0 0
        %3543 = vmatpush1.bf16.msra.mxu0 0
        %3544 = vmatprep.subr.bf16.mxu0 0
        %3545 = vmatpush1.bf16.msra.mxu0 0
        %3546 = vmatprep.subr.bf16.mxu0 0
        %3547 = vmatpush1.bf16.msra.mxu0 0
        %3548 = vmatprep.subr.bf16.mxu0 0
        %3549 = vmatpush1.bf16.msra.mxu0 0
        %3550 = vmatprep.subr.bf16.mxu0 0
        %3551 = vmatpush1.bf16.msra.mxu0 0
        %3552 = vmatprep.subr.bf16.mxu0 0
        %3553 = vmatpush1.bf16.msra.mxu0 0
        %3554 = vmatprep.subr.bf16.mxu0 0
        %3555 = vmatpush1.bf16.msra.mxu0 0
        %3556 = vmatprep.mubr.bf16.mxu0 0
        %3557 = vmatmul.mubr.bf16.gmra.mrb[0].mxu0 %v3513
        %v3558 = vpop.f32.mrb[0].mxu0
        %v3559 = vadd.f32 0.0, %v3558
        %v3560 = vpop.f32.mrb[0].mxu0
        %v3561 = vpop.f32.mrb[0].mxu0
        %v3562 = vadd.f32 0.0, %v3561
        %v3563 = vpop.f32.mrb[0].mxu0
        %3564 = vmatprep.mubr.bf16.mxu0 0
        %3565 = vmatmul.mubr.bf16.gmra.mrb[0].mxu0 %v3516
        %v3566 = vpop.f32.mrb[0].mxu0
        %v3567 = vadd.f32 0.0, %v3566
        %v3568 = vpop.f32.mrb[0].mxu0
        %v3569 = vpop.f32.mrb[0].mxu0
        %v3570 = vadd.f32 0.0, %v3569
        %v3571 = vpop.f32.mrb[0].mxu0
        %3572 = vmatprep.mubr.bf16.mxu0 0
        %3573 = vmatmul.mubr.bf16.gmra.mrb[0].mxu0 %v3519
        %v3574 = vpop.f32.mrb[0].mxu0
        %v3575 = vadd.f32 0.0, %v3574
        %v3576 = vpop.f32.mrb[0].mxu0
        %v3577 = vpop.f32.mrb[0].mxu0
        %v3578 = vadd.f32 0.0, %v3577
        %v3579 = vpop.f32.mrb[0].mxu0
        %3580 = vmatprep.mubr.bf16.mxu0 0
        %3581 = vmatmul.mubr.bf16.gmra.mrb[0].mxu0 %v3522
        %v3582 = vpop.f32.mrb[0].mxu0
        %v3583 = vadd.f32 0.0, %v3582
        %v3584 = vpop.f32.mrb[0].mxu0
        %v3585 = vpop.f32.mrb[0].mxu0
        %v3586 = vadd.f32 0.0, %v3585
        %v3587 = vpop.f32.mrb[0].mxu0
        %3588 = vdwg.mxu0
        %v3589 = vadd.f32 %v3459, %v3559
        %v3590 = vadd.f32 %v3460, %v3562
        %v3591 = vadd.f32 %v3461, %v3567
        %v3592 = vadd.f32 %v3462, %v3570
        %v3593 = vadd.f32 %v3463, %v3575
        %v3594 = vadd.f32 %v3464, %v3578
        %v3595 = vadd.f32 %v3465, %v3583
        %v3596 = vadd.f32 %v3466, %v3586
        %s3597 = scalar_lea.vmem %s3337, 2 [#allocation2]
        %v3598 = vld [vmem:[%s3597] ss:$2 sm:$0xff]
        %s3599 = scalar_lea.vmem %s3337, 50 [#allocation2]
        %v3600 = vld [vmem:[%s3599] ss:$2 sm:$0xff]
        %s3601 = scalar_lea.vmem %s3337, 98 [#allocation2]
        %v3602 = vld [vmem:[%s3601] ss:$2 sm:$0xff]
        %s3603 = scalar_lea.vmem %s3337, 146 [#allocation2]
        %v3604 = vld [vmem:[%s3603] ss:$2 sm:$0xff]
        %s3605 = scalar_lea.vmem %s3337, 194 [#allocation2]
        %v3606 = vld [vmem:[%s3605] ss:$2 sm:$0xff]
        %s3607 = scalar_lea.vmem %s3337, 242 [#allocation2]
        %v3608 = vld [vmem:[%s3607] ss:$2 sm:$0xff]
        %s3609 = scalar_lea.vmem %s3337, 290 [#allocation2]
        %v3610 = vld [vmem:[%s3609] ss:$2 sm:$0xff]
        %s3611 = scalar_lea.vmem %s3337, 338 [#allocation2]
        %v3612 = vld [vmem:[%s3611] ss:$2 sm:$0xff]
        %v3613 = vpack.c.bf16 %v3600, %v3598
        %v3614 = vpack.c.bf16 %v3604, %v3602
        %v3615 = vpack.c.bf16 %v3608, %v3606
        %v3616 = vpack.c.bf16 %v3612, %v3610
        %s3617 = scalar_lea.vmem %s2, 120
        %v3618 = vld [vmem:[%s3617] sm:$0xf]
        %v3619 = vld [vmem:[%s3617 + $0x4] sm:$0xf]
        %v3620 = vld [vmem:[%s3617 + $0x8] sm:$0xf]
        %v3621 = vld [vmem:[%s3617 + $0xc] sm:$0xf]
        %v3622 = vld [vmem:[%s3617 + $0x10] sm:$0xf]
        %v3623 = vld [vmem:[%s3617 + $0x14] sm:$0xf]
        %v3630 = vunpack.c.l.b16 %v3618
        %v3631 = vunpack.c.l.b16 %v3619
        %v3632 = vunpack.c.l.b16 %v3620
        %v3633 = vunpack.c.l.b16 %v3621
        %v3634 = vunpack.c.l.b16 %v3622
        %v3635 = vunpack.c.l.b16 %v3623
        %v3636 = vpack.c.b16 %v3631, %v3630
        %v3637 = vpack.c.b16 %v3633, %v3632
        %v3638 = vpack.c.b16 %v3635, %v3634
        %v3643 = vsel %vm2611, %v3613, 0
        %v3646 = vsel %vm2611, %v3614, 0
        %v3649 = vsel %vm2611, %v3615, 0
        %v3652 = vsel %vm2611, %v3616, 0
        %3654 = vmatprep.subr.bf16.mxu0 0
        %3655 = vmatpush1.bf16.msra.mxu0 %v3636
        %3656 = vmatprep.subr.bf16.mxu0 0
        %3657 = vmatpush1.bf16.msra.mxu0 %v3637
        %3658 = vmatprep.subr.bf16.mxu0 0
        %3659 = vmatpush1.bf16.msra.mxu0 %v3638
        %3660 = vmatprep.subr.bf16.mxu0 0
        %3661 = vmatpush1.bf16.msra.mxu0 0
        %3662 = vmatprep.subr.bf16.mxu0 0
        %3663 = vmatpush1.bf16.msra.mxu0 0
        %3664 = vmatprep.subr.bf16.mxu0 0
        %3665 = vmatpush1.bf16.msra.mxu0 0
        %3666 = vmatprep.subr.bf16.mxu0 0
        %3667 = vmatpush1.bf16.msra.mxu0 0
        %3668 = vmatprep.subr.bf16.mxu0 0
        %3669 = vmatpush1.bf16.msra.mxu0 0
        %3670 = vmatprep.subr.bf16.mxu0 0
        %3671 = vmatpush1.bf16.msra.mxu0 0
        %3672 = vmatprep.subr.bf16.mxu0 0
        %3673 = vmatpush1.bf16.msra.mxu0 0
        %3674 = vmatprep.subr.bf16.mxu0 0
        %3675 = vmatpush1.bf16.msra.mxu0 0
        %3676 = vmatprep.subr.bf16.mxu0 0
        %3677 = vmatpush1.bf16.msra.mxu0 0
        %3678 = vmatprep.subr.bf16.mxu0 0
        %3679 = vmatpush1.bf16.msra.mxu0 0
        %3680 = vmatprep.subr.bf16.mxu0 0
        %3681 = vmatpush1.bf16.msra.mxu0 0
        %3682 = vmatprep.subr.bf16.mxu0 0
        %3683 = vmatpush1.bf16.msra.mxu0 0
        %3684 = vmatprep.subr.bf16.mxu0 0
        %3685 = vmatpush1.bf16.msra.mxu0 0
        %3686 = vmatprep.mubr.bf16.mxu0 0
        %3687 = vmatmul.mubr.bf16.gmra.mrb[0].mxu0 %v3643
        %v3688 = vpop.f32.mrb[0].mxu0
        %v3689 = vadd.f32 0.0, %v3688
        %v3690 = vpop.f32.mrb[0].mxu0
        %v3691 = vpop.f32.mrb[0].mxu0
        %v3692 = vadd.f32 0.0, %v3691
        %v3693 = vpop.f32.mrb[0].mxu0
        %3694 = vmatprep.mubr.bf16.mxu0 0
        %3695 = vmatmul.mubr.bf16.gmra.mrb[0].mxu0 %v3646
        %v3696 = vpop.f32.mrb[0].mxu0
        %v3697 = vadd.f32 0.0, %v3696
        %v3698 = vpop.f32.mrb[0].mxu0
        %v3699 = vpop.f32.mrb[0].mxu0
        %v3700 = vadd.f32 0.0, %v3699
        %v3701 = vpop.f32.mrb[0].mxu0
        %3702 = vmatprep.mubr.bf16.mxu0 0
        %3703 = vmatmul.mubr.bf16.gmra.mrb[0].mxu0 %v3649
        %v3704 = vpop.f32.mrb[0].mxu0
        %v3705 = vadd.f32 0.0, %v3704
        %v3706 = vpop.f32.mrb[0].mxu0
        %v3707 = vpop.f32.mrb[0].mxu0
        %v3708 = vadd.f32 0.0, %v3707
        %v3709 = vpop.f32.mrb[0].mxu0
        %3710 = vmatprep.mubr.bf16.mxu0 0
        %3711 = vmatmul.mubr.bf16.gmra.mrb[0].mxu0 %v3652
        %v3712 = vpop.f32.mrb[0].mxu0
        %v3713 = vadd.f32 0.0, %v3712
        %v3714 = vpop.f32.mrb[0].mxu0
        %v3715 = vpop.f32.mrb[0].mxu0
        %v3716 = vadd.f32 0.0, %v3715
        %v3717 = vpop.f32.mrb[0].mxu0
        %3718 = vdwg.mxu0
        %v3719 = vadd.f32 %v3589, %v3689
        %v3720 = vadd.f32 %v3590, %v3692
        %v3721 = vadd.f32 %v3591, %v3697
        %v3722 = vadd.f32 %v3592, %v3700
        %v3723 = vadd.f32 %v3593, %v3705
        %v3724 = vadd.f32 %v3594, %v3708
        %v3725 = vadd.f32 %v3595, %v3713
        %v3726 = vadd.f32 %v3596, %v3716
        %s3727 = scalar_lea.vmem [#allocation2], 48
        %v3728 = vld [vmem:[%s3727] ss:$2 sm:$0xff]
        %s3729 = scalar_lea.vmem %s3727, 48 [#allocation2]
        %v3730 = vld [vmem:[%s3729] ss:$2 sm:$0xff]
        %s3731 = scalar_lea.vmem %s3727, 96 [#allocation2]
        %v3732 = vld [vmem:[%s3731] ss:$2 sm:$0xff]
        %s3733 = scalar_lea.vmem %s3727, 144 [#allocation2]
        %v3734 = vld [vmem:[%s3733] ss:$2 sm:$0xff]
        %s3735 = scalar_lea.vmem %s3727, 192 [#allocation2]
        %v3736 = vld [vmem:[%s3735] ss:$2 sm:$0xff]
        %s3737 = scalar_lea.vmem %s3727, 240 [#allocation2]
        %v3738 = vld [vmem:[%s3737] ss:$2 sm:$0xff]
        %s3739 = scalar_lea.vmem %s3727, 288 [#allocation2]
        %v3740 = vld [vmem:[%s3739] ss:$2 sm:$0xff]
        %s3741 = scalar_lea.vmem %s3727, 336 [#allocation2]
        %v3742 = vld [vmem:[%s3741] ss:$2 sm:$0xff]
        %v3743 = vpack.c.bf16 %v3730, %v3728
        %v3744 = vpack.c.bf16 %v3734, %v3732
        %v3745 = vpack.c.bf16 %v3738, %v3736
        %v3746 = vpack.c.bf16 %v3742, %v3740
        %s3747 = scalar_lea.vmem %s2, 144
        %v3748 = vld [vmem:[%s3747] sm:$0xf]
        %v3749 = vld [vmem:[%s3747 + $0x4] sm:$0xf]
        %v3750 = vld [vmem:[%s3747 + $0x8] sm:$0xf]
        %v3751 = vld [vmem:[%s3747 + $0xc] sm:$0xf]
        %v3752 = vld [vmem:[%s3747 + $0x10] sm:$0xf]
        %v3753 = vld [vmem:[%s3747 + $0x14] sm:$0xf]
        %v3760 = vunpack.c.l.b16 %v3748
        %v3761 = vunpack.c.l.b16 %v3749
        %v3762 = vunpack.c.l.b16 %v3750
        %v3763 = vunpack.c.l.b16 %v3751
        %v3764 = vunpack.c.l.b16 %v3752
        %v3765 = vunpack.c.l.b16 %v3753
        %v3766 = vpack.c.b16 %v3761, %v3760
        %v3767 = vpack.c.b16 %v3763, %v3762
        %v3768 = vpack.c.b16 %v3765, %v3764
        %v3773 = vsel %vm2611, %v3743, 0
        %v3776 = vsel %vm2611, %v3744, 0
        %v3779 = vsel %vm2611, %v3745, 0
        %v3782 = vsel %vm2611, %v3746, 0
        %3784 = vmatprep.subr.bf16.mxu0 0
        %3785 = vmatpush1.bf16.msra.mxu0 %v3766
        %3786 = vmatprep.subr.bf16.mxu0 0
        %3787 = vmatpush1.bf16.msra.mxu0 %v3767
        %3788 = vmatprep.subr.bf16.mxu0 0
        %3789 = vmatpush1.bf16.msra.mxu0 %v3768
        %3790 = vmatprep.subr.bf16.mxu0 0
        %3791 = vmatpush1.bf16.msra.mxu0 0
        %3792 = vmatprep.subr.bf16.mxu0 0
        %3793 = vmatpush1.bf16.msra.mxu0 0
        %3794 = vmatprep.subr.bf16.mxu0 0
        %3795 = vmatpush1.bf16.msra.mxu0 0
        %3796 = vmatprep.subr.bf16.mxu0 0
        %3797 = vmatpush1.bf16.msra.mxu0 0
        %3798 = vmatprep.subr.bf16.mxu0 0
        %3799 = vmatpush1.bf16.msra.mxu0 0
        %3800 = vmatprep.subr.bf16.mxu0 0
        %3801 = vmatpush1.bf16.msra.mxu0 0
        %3802 = vmatprep.subr.bf16.mxu0 0
        %3803 = vmatpush1.bf16.msra.mxu0 0
        %3804 = vmatprep.subr.bf16.mxu0 0
        %3805 = vmatpush1.bf16.msra.mxu0 0
        %3806 = vmatprep.subr.bf16.mxu0 0
        %3807 = vmatpush1.bf16.msra.mxu0 0
        %3808 = vmatprep.subr.bf16.mxu0 0
        %3809 = vmatpush1.bf16.msra.mxu0 0
        %3810 = vmatprep.subr.bf16.mxu0 0
        %3811 = vmatpush1.bf16.msra.mxu0 0
        %3812 = vmatprep.subr.bf16.mxu0 0
        %3813 = vmatpush1.bf16.msra.mxu0 0
        %3814 = vmatprep.subr.bf16.mxu0 0
        %3815 = vmatpush1.bf16.msra.mxu0 0
        %3816 = vmatprep.mubr.bf16.mxu0 0
        %3817 = vmatmul.mubr.bf16.gmra.mrb[0].mxu0 %v3773
        %v3818 = vpop.f32.mrb[0].mxu0
        %v3819 = vadd.f32 0.0, %v3818
        %v3820 = vpop.f32.mrb[0].mxu0
        %v3821 = vpop.f32.mrb[0].mxu0
        %v3822 = vadd.f32 0.0, %v3821
        %v3823 = vpop.f32.mrb[0].mxu0
        %3824 = vmatprep.mubr.bf16.mxu0 0
        %3825 = vmatmul.mubr.bf16.gmra.mrb[0].mxu0 %v3776
        %v3826 = vpop.f32.mrb[0].mxu0
        %v3827 = vadd.f32 0.0, %v3826
        %v3828 = vpop.f32.mrb[0].mxu0
        %v3829 = vpop.f32.mrb[0].mxu0
        %v3830 = vadd.f32 0.0, %v3829
        %v3831 = vpop.f32.mrb[0].mxu0
        %3832 = vmatprep.mubr.bf16.mxu0 0
        %3833 = vmatmul.mubr.bf16.gmra.mrb[0].mxu0 %v3779
        %v3834 = vpop.f32.mrb[0].mxu0
        %v3835 = vadd.f32 0.0, %v3834
        %v3836 = vpop.f32.mrb[0].mxu0
        %v3837 = vpop.f32.mrb[0].mxu0
        %v3838 = vadd.f32 0.0, %v3837
        %v3839 = vpop.f32.mrb[0].mxu0
        %3840 = vmatprep.mubr.bf16.mxu0 0
        %3841 = vmatmul.mubr.bf16.gmra.mrb[0].mxu0 %v3782
        %v3842 = vpop.f32.mrb[0].mxu0
        %v3843 = vadd.f32 0.0, %v3842
        %v3844 = vpop.f32.mrb[0].mxu0
        %v3845 = vpop.f32.mrb[0].mxu0
        %v3846 = vadd.f32 0.0, %v3845
        %v3847 = vpop.f32.mrb[0].mxu0
        %3848 = vdwg.mxu0
        %v3849 = vadd.f32 %v3719, %v3819
        %v3850 = vadd.f32 %v3720, %v3822
        %v3851 = vadd.f32 %v3721, %v3827
        %v3852 = vadd.f32 %v3722, %v3830
        %v3853 = vadd.f32 %v3723, %v3835
        %v3854 = vadd.f32 %v3724, %v3838
        %v3855 = vadd.f32 %v3725, %v3843
        %v3856 = vadd.f32 %v3726, %v3846
        %s3857 = scalar_lea.vmem %s3727, 1 [#allocation2]
        %v3858 = vld [vmem:[%s3857] ss:$2 sm:$0xff]
        %s3859 = scalar_lea.vmem %s3727, 49 [#allocation2]
        %v3860 = vld [vmem:[%s3859] ss:$2 sm:$0xff]
        %s3861 = scalar_lea.vmem %s3727, 97 [#allocation2]
        %v3862 = vld [vmem:[%s3861] ss:$2 sm:$0xff]
        %s3863 = scalar_lea.vmem %s3727, 145 [#allocation2]
        %v3864 = vld [vmem:[%s3863] ss:$2 sm:$0xff]
        %s3865 = scalar_lea.vmem %s3727, 193 [#allocation2]
        %v3866 = vld [vmem:[%s3865] ss:$2 sm:$0xff]
        %s3867 = scalar_lea.vmem %s3727, 241 [#allocation2]
        %v3868 = vld [vmem:[%s3867] ss:$2 sm:$0xff]
        %s3869 = scalar_lea.vmem %s3727, 289 [#allocation2]
        %v3870 = vld [vmem:[%s3869] ss:$2 sm:$0xff]
        %s3871 = scalar_lea.vmem %s3727, 337 [#allocation2]
        %v3872 = vld [vmem:[%s3871] ss:$2 sm:$0xff]
        %v3873 = vpack.c.bf16 %v3860, %v3858
        %v3874 = vpack.c.bf16 %v3864, %v3862
        %v3875 = vpack.c.bf16 %v3868, %v3866
        %v3876 = vpack.c.bf16 %v3872, %v3870
        %s3877 = scalar_lea.vmem %s2, 168
        %v3878 = vld [vmem:[%s3877] sm:$0xf]
        %v3879 = vld [vmem:[%s3877 + $0x4] sm:$0xf]
        %v3880 = vld [vmem:[%s3877 + $0x8] sm:$0xf]
        %v3881 = vld [vmem:[%s3877 + $0xc] sm:$0xf]
        %v3882 = vld [vmem:[%s3877 + $0x10] sm:$0xf]
        %v3883 = vld [vmem:[%s3877 + $0x14] sm:$0xf]
        %v3890 = vunpack.c.l.b16 %v3878
        %v3891 = vunpack.c.l.b16 %v3879
        %v3892 = vunpack.c.l.b16 %v3880
        %v3893 = vunpack.c.l.b16 %v3881
        %v3894 = vunpack.c.l.b16 %v3882
        %v3895 = vunpack.c.l.b16 %v3883
        %v3896 = vpack.c.b16 %v3891, %v3890
        %v3897 = vpack.c.b16 %v3893, %v3892
        %v3898 = vpack.c.b16 %v3895, %v3894
        %v3903 = vsel %vm2611, %v3873, 0
        %v3906 = vsel %vm2611, %v3874, 0
        %v3909 = vsel %vm2611, %v3875, 0
        %v3912 = vsel %vm2611, %v3876, 0
        %3914 = vmatprep.subr.bf16.mxu0 0
        %3915 = vmatpush1.bf16.msra.mxu0 %v3896
        %3916 = vmatprep.subr.bf16.mxu0 0
        %3917 = vmatpush1.bf16.msra.mxu0 %v3897
        %3918 = vmatprep.subr.bf16.mxu0 0
        %3919 = vmatpush1.bf16.msra.mxu0 %v3898
        %3920 = vmatprep.subr.bf16.mxu0 0
        %3921 = vmatpush1.bf16.msra.mxu0 0
        %3922 = vmatprep.subr.bf16.mxu0 0
        %3923 = vmatpush1.bf16.msra.mxu0 0
        %3924 = vmatprep.subr.bf16.mxu0 0
        %3925 = vmatpush1.bf16.msra.mxu0 0
        %3926 = vmatprep.subr.bf16.mxu0 0
        %3927 = vmatpush1.bf16.msra.mxu0 0
        %3928 = vmatprep.subr.bf16.mxu0 0
        %3929 = vmatpush1.bf16.msra.mxu0 0
        %3930 = vmatprep.subr.bf16.mxu0 0
        %3931 = vmatpush1.bf16.msra.mxu0 0
        %3932 = vmatprep.subr.bf16.mxu0 0
        %3933 = vmatpush1.bf16.msra.mxu0 0
        %3934 = vmatprep.subr.bf16.mxu0 0
        %3935 = vmatpush1.bf16.msra.mxu0 0
        %3936 = vmatprep.subr.bf16.mxu0 0
        %3937 = vmatpush1.bf16.msra.mxu0 0
        %3938 = vmatprep.subr.bf16.mxu0 0
        %3939 = vmatpush1.bf16.msra.mxu0 0
        %3940 = vmatprep.subr.bf16.mxu0 0
        %3941 = vmatpush1.bf16.msra.mxu0 0
        %3942 = vmatprep.subr.bf16.mxu0 0
        %3943 = vmatpush1.bf16.msra.mxu0 0
        %3944 = vmatprep.subr.bf16.mxu0 0
        %3945 = vmatpush1.bf16.msra.mxu0 0
        %3946 = vmatprep.mubr.bf16.mxu0 0
        %3947 = vmatmul.mubr.bf16.gmra.mrb[0].mxu0 %v3903
        %v3948 = vpop.f32.mrb[0].mxu0
        %v3949 = vadd.f32 0.0, %v3948
        %v3950 = vpop.f32.mrb[0].mxu0
        %v3951 = vpop.f32.mrb[0].mxu0
        %v3952 = vadd.f32 0.0, %v3951
        %v3953 = vpop.f32.mrb[0].mxu0
        %3954 = vmatprep.mubr.bf16.mxu0 0
        %3955 = vmatmul.mubr.bf16.gmra.mrb[0].mxu0 %v3906
        %v3956 = vpop.f32.mrb[0].mxu0
        %v3957 = vadd.f32 0.0, %v3956
        %v3958 = vpop.f32.mrb[0].mxu0
        %v3959 = vpop.f32.mrb[0].mxu0
        %v3960 = vadd.f32 0.0, %v3959
        %v3961 = vpop.f32.mrb[0].mxu0
        %3962 = vmatprep.mubr.bf16.mxu0 0
        %3963 = vmatmul.mubr.bf16.gmra.mrb[0].mxu0 %v3909
        %v3964 = vpop.f32.mrb[0].mxu0
        %v3965 = vadd.f32 0.0, %v3964
        %v3966 = vpop.f32.mrb[0].mxu0
        %v3967 = vpop.f32.mrb[0].mxu0
        %v3968 = vadd.f32 0.0, %v3967
        %v3969 = vpop.f32.mrb[0].mxu0
        %3970 = vmatprep.mubr.bf16.mxu0 0
        %3971 = vmatmul.mubr.bf16.gmra.mrb[0].mxu0 %v3912
        %v3972 = vpop.f32.mrb[0].mxu0
        %v3973 = vadd.f32 0.0, %v3972
        %v3974 = vpop.f32.mrb[0].mxu0
        %v3975 = vpop.f32.mrb[0].mxu0
        %v3976 = vadd.f32 0.0, %v3975
        %v3977 = vpop.f32.mrb[0].mxu0
        %3978 = vdwg.mxu0
        %v3979 = vadd.f32 %v3849, %v3949
        %v3980 = vadd.f32 %v3850, %v3952
        %v3981 = vadd.f32 %v3851, %v3957
        %v3982 = vadd.f32 %v3852, %v3960
        %v3983 = vadd.f32 %v3853, %v3965
        %v3984 = vadd.f32 %v3854, %v3968
        %v3985 = vadd.f32 %v3855, %v3973
        %v3986 = vadd.f32 %v3856, %v3976
        %s3987 = scalar_lea.vmem %s3727, 2 [#allocation2]
        %v3988 = vld [vmem:[%s3987] ss:$2 sm:$0xff]
        %s3989 = scalar_lea.vmem %s3727, 50 [#allocation2]
        %v3990 = vld [vmem:[%s3989] ss:$2 sm:$0xff]
        %s3991 = scalar_lea.vmem %s3727, 98 [#allocation2]
        %v3992 = vld [vmem:[%s3991] ss:$2 sm:$0xff]
        %s3993 = scalar_lea.vmem %s3727, 146 [#allocation2]
        %v3994 = vld [vmem:[%s3993] ss:$2 sm:$0xff]
        %s3995 = scalar_lea.vmem %s3727, 194 [#allocation2]
        %v3996 = vld [vmem:[%s3995] ss:$2 sm:$0xff]
        %s3997 = scalar_lea.vmem %s3727, 242 [#allocation2]
        %v3998 = vld [vmem:[%s3997] ss:$2 sm:$0xff]
        %s3999 = scalar_lea.vmem %s3727, 290 [#allocation2]
        %v4000 = vld [vmem:[%s3999] ss:$2 sm:$0xff]
        %s4001 = scalar_lea.vmem %s3727, 338 [#allocation2]
        %v4002 = vld [vmem:[%s4001] ss:$2 sm:$0xff]
        %v4003 = vpack.c.bf16 %v3990, %v3988
        %v4004 = vpack.c.bf16 %v3994, %v3992
        %v4005 = vpack.c.bf16 %v3998, %v3996
        %v4006 = vpack.c.bf16 %v4002, %v4000
        %s4007 = scalar_lea.vmem %s2, 192
        %v4008 = vld [vmem:[%s4007] sm:$0xf]
        %v4009 = vld [vmem:[%s4007 + $0x4] sm:$0xf]
        %v4010 = vld [vmem:[%s4007 + $0x8] sm:$0xf]
        %v4011 = vld [vmem:[%s4007 + $0xc] sm:$0xf]
        %v4012 = vld [vmem:[%s4007 + $0x10] sm:$0xf]
        %v4013 = vld [vmem:[%s4007 + $0x14] sm:$0xf]
        %v4020 = vunpack.c.l.b16 %v4008
        %v4021 = vunpack.c.l.b16 %v4009
        %v4022 = vunpack.c.l.b16 %v4010
        %v4023 = vunpack.c.l.b16 %v4011
        %v4024 = vunpack.c.l.b16 %v4012
        %v4025 = vunpack.c.l.b16 %v4013
        %v4026 = vpack.c.b16 %v4021, %v4020
        %v4027 = vpack.c.b16 %v4023, %v4022
        %v4028 = vpack.c.b16 %v4025, %v4024
        %v4033 = vsel %vm2611, %v4003, 0
        %v4036 = vsel %vm2611, %v4004, 0
        %v4039 = vsel %vm2611, %v4005, 0
        %v4042 = vsel %vm2611, %v4006, 0
        %4044 = vmatprep.subr.bf16.mxu0 0
        %4045 = vmatpush1.bf16.msra.mxu0 %v4026
        %4046 = vmatprep.subr.bf16.mxu0 0
        %4047 = vmatpush1.bf16.msra.mxu0 %v4027
        %4048 = vmatprep.subr.bf16.mxu0 0
        %4049 = vmatpush1.bf16.msra.mxu0 %v4028
        %4050 = vmatprep.subr.bf16.mxu0 0
        %4051 = vmatpush1.bf16.msra.mxu0 0
        %4052 = vmatprep.subr.bf16.mxu0 0
        %4053 = vmatpush1.bf16.msra.mxu0 0
        %4054 = vmatprep.subr.bf16.mxu0 0
        %4055 = vmatpush1.bf16.msra.mxu0 0
        %4056 = vmatprep.subr.bf16.mxu0 0
        %4057 = vmatpush1.bf16.msra.mxu0 0
        %4058 = vmatprep.subr.bf16.mxu0 0
        %4059 = vmatpush1.bf16.msra.mxu0 0
        %4060 = vmatprep.subr.bf16.mxu0 0
        %4061 = vmatpush1.bf16.msra.mxu0 0
        %4062 = vmatprep.subr.bf16.mxu0 0
        %4063 = vmatpush1.bf16.msra.mxu0 0
        %4064 = vmatprep.subr.bf16.mxu0 0
        %4065 = vmatpush1.bf16.msra.mxu0 0
        %4066 = vmatprep.subr.bf16.mxu0 0
        %4067 = vmatpush1.bf16.msra.mxu0 0
        %4068 = vmatprep.subr.bf16.mxu0 0
        %4069 = vmatpush1.bf16.msra.mxu0 0
        %4070 = vmatprep.subr.bf16.mxu0 0
        %4071 = vmatpush1.bf16.msra.mxu0 0
        %4072 = vmatprep.subr.bf16.mxu0 0
        %4073 = vmatpush1.bf16.msra.mxu0 0
        %4074 = vmatprep.subr.bf16.mxu0 0
        %4075 = vmatpush1.bf16.msra.mxu0 0
        %4076 = vmatprep.mubr.bf16.mxu0 0
        %4077 = vmatmul.mubr.bf16.gmra.mrb[0].mxu0 %v4033
        %v4078 = vpop.f32.mrb[0].mxu0
        %v4079 = vadd.f32 0.0, %v4078
        %v4080 = vpop.f32.mrb[0].mxu0
        %v4081 = vpop.f32.mrb[0].mxu0
        %v4082 = vadd.f32 0.0, %v4081
        %v4083 = vpop.f32.mrb[0].mxu0
        %4084 = vmatprep.mubr.bf16.mxu0 0
        %4085 = vmatmul.mubr.bf16.gmra.mrb[0].mxu0 %v4036
        %v4086 = vpop.f32.mrb[0].mxu0
        %v4087 = vadd.f32 0.0, %v4086
        %v4088 = vpop.f32.mrb[0].mxu0
        %v4089 = vpop.f32.mrb[0].mxu0
        %v4090 = vadd.f32 0.0, %v4089
        %v4091 = vpop.f32.mrb[0].mxu0
        %4092 = vmatprep.mubr.bf16.mxu0 0
        %4093 = vmatmul.mubr.bf16.gmra.mrb[0].mxu0 %v4039
        %v4094 = vpop.f32.mrb[0].mxu0
        %v4095 = vadd.f32 0.0, %v4094
        %v4096 = vpop.f32.mrb[0].mxu0
        %v4097 = vpop.f32.mrb[0].mxu0
        %v4098 = vadd.f32 0.0, %v4097
        %v4099 = vpop.f32.mrb[0].mxu0
        %4100 = vmatprep.mubr.bf16.mxu0 0
        %4101 = vmatmul.mubr.bf16.gmra.mrb[0].mxu0 %v4042
        %v4102 = vpop.f32.mrb[0].mxu0
        %v4103 = vadd.f32 0.0, %v4102
        %v4104 = vpop.f32.mrb[0].mxu0
        %v4105 = vpop.f32.mrb[0].mxu0
        %v4106 = vadd.f32 0.0, %v4105
        %v4107 = vpop.f32.mrb[0].mxu0
        %4108 = vdwg.mxu0
        %v4109 = vadd.f32 %v3979, %v4079
        %v4110 = vadd.f32 %v3980, %v4082
        %v4111 = vadd.f32 %v3981, %v4087
        %v4112 = vadd.f32 %v3982, %v4090
        %v4113 = vadd.f32 %v3983, %v4095
        %v4114 = vadd.f32 %v3984, %v4098
        %v4115 = vadd.f32 %v3985, %v4103
        %v4116 = vadd.f32 %v3986, %v4106
        %vm4117 = vcmask 130048
        %4118 = vst.msk [vmem:[%s204] sm:$0xff] %vm4117, %v4109
        %4119 = vst.msk [vmem:[%s204 + $0x8] sm:$0xff] %vm4117, %v4110
        %4120 = vst.msk [vmem:[%s204 + $0x10] sm:$0xff] %vm4117, %v4111
        %4121 = vst.msk [vmem:[%s204 + $0x18] sm:$0xff] %vm4117, %v4112
        %4122 = vst.msk [vmem:[%s204 + $0x20] sm:$0xff] %vm4117, %v4113
        %4123 = vst.msk [vmem:[%s204 + $0x28] sm:$0xff] %vm4117, %v4114
        %4124 = vst.msk [vmem:[%s204 + $0x30] sm:$0xff] %vm4117, %v4115
        %4125 = vst.msk [vmem:[%s204 + $0x38] sm:$0xff] %vm4117, %v4116
        %s4126 = sand.u32 %s116, 1
        %s4127 = scalar_lea.sflag [#allocation4], %s4126
        %s4128 = sand.u32 %s116, 1
        %s4129 = smul.addr %s4128, 64
        %s4130 = scalar_lea.vmem [#allocation6], %s4129
        // Predicated region
        $region41: #{tpu_custom_call.1} parent=35 // pred_check
          %p4131 = pneg %p126
        $region42: #{tpu_custom_call.1} parent=35 // pred_check_branch
          %4133 = sbr.rel (%p4131) target = $region44
        $region43: #{tpu_custom_call.1} parent=35 // pred_region
          %s4135 = ssub.s32 1024, 1024
          %4136 = vsyncadd %s4127, %s4135
          %s4137 = smul.addr %s19, 8
          %s4138 = smul.addr %s4137, 128
          %s4139 = scalar_lea.hbm %s4, %s4138
          %s4140 = sshll.u32 %s4130, 4
          %s4141 = int_to_ptr.vmem [resolvable:$true] %s4140
          %4146 = dma.vmem_to_hbm [thread:$0]  %s4141, 1024, %s4139, %s4127, 128, 128, 8
        $region44: #{tpu_custom_call.1} parent=35 // pred_fallthru
          _
      $region36: #{tpu_custom_call.1} parent=5 // pred_fallthru
        _
      %p4147 = scmp.le.s32.totalorder 2, %s14
      // Predicated region
      $region45: #{tpu_custom_call.1} parent=5 // pred_check
        %p4148 = pneg %p4147
      $region46: #{tpu_custom_call.1} parent=5 // pred_check_branch
        %4150 = sbr.rel (%p4148) target = $region48
      $region47: #{tpu_custom_call.1} parent=5 // pred_region
        %s4151 = ssub.s32 %s14, 2
        // Predicated region
        $region49: #{tpu_custom_call.1} parent=47 // pred_check
          %p4152 = pneg %p132
        $region50: #{tpu_custom_call.1} parent=47 // pred_check_branch
          %4154 = sbr.rel (%p4152) target = $region52
        $region51: #{tpu_custom_call.1} parent=47 // pred_region
          %s4155 = sand.u32 %s117, 1
          %s4156 = scalar_lea.sflag [#allocation4], %s4155
          %s4157 = sand.u32 %s117, 1
          %s4158 = smul.addr %s4157, 64
          %s4159 = scalar_lea.vmem [#allocation6], %s4158
          %4160 = dma.done %s4156, 1024
        $region52: #{tpu_custom_call.1} parent=47 // pred_fallthru
          _
      $region48: #{tpu_custom_call.1} parent=5 // pred_fallthru
        _
    $region6: #{tpu_custom_call.1} parent=1 // loop_footer
      %s18 = sadd.s32 1, %s14
    $region7: #{tpu_custom_call.1} parent=1 // loop_footer_branch
      %13 = sbr.rel target = $region3
    $region8: #{tpu_custom_call.1} parent=1 // loop_exit
      _
    %4161 = vsyncpa [#allocation4], 1
    %s4162 = scalar_lea.sflag [#allocation4], 1
    %4163 = vsyncpa %s4162, 1
    %4164 = vsyncpa [#allocation5], 1
    %s4165 = scalar_lea.sflag [#allocation5], 1
    %4166 = vsyncpa %s4165, 1

</llo_original>
